<compile_context>
chip_gen: v5e
topology: v5e:2x2
jax: 0.10.0
libtpu: 0.0.40
codegen_flags: <defaults>
</compile_context>

<pallas_src>
import functools

import jax
import jax.numpy as jnp
from jax import lax
from jax.experimental import pallas as pl
from jax.experimental.pallas import tpu as pltpu


def _round_up(x, m):
    return (x + m - 1) // m * m


def _charrnn_kernel(tok_ref, h0_ref, wih0_ref, wihr_ref, whh_ref,
                    bih_ref, bhh_ref, wfc_ref, bfc_ref,
                    out_ref, hid_ref,
                    h_carry, buf_a, buf_b,
                    *, num_layers, t_block, b_block):
    bi = pl.program_id(0)          # batch-block index  ("parallel")
    ti = pl.program_id(1)          # time-chunk index   ("arbitrary")

    # Fresh hidden state at the first time chunk of every batch block.
    @pl.when(ti == 0)
    def _():
        h_carry[...] = h0_ref[...]

    bufs = [buf_a, buf_b]          # ping-pong per-layer activation buffers
    b_base = bi * b_block
    t_base = ti * t_block
    unroll = min(t_block, 8)

    # ---------------- layer 0: token row-gather replaces one-hot @ W_ih ----------
    whh0 = whh_ref[0]                          # (H, H)   hoisted out of the time loop
    b0 = bih_ref[0] + bhh_ref[0]               # (1, H)   hoisted bias sum

    def step0(t, h):
        # one_hot(tok) @ W_ih0^T  ==  W_ih0^T[tok, :]  -> a few sublane loads.
        rows = [wih0_ref[pl.ds(tok_ref[t_base + t, b_base + b], 1), :]
                for b in range(b_block)]
        xproj = jnp.concatenate(rows, axis=0)                    # (b_block, H)
        h_new = jnp.tanh(
            xproj
            + jnp.dot(h, whh0, preferred_element_type=jnp.float32)
            + b0)
        bufs[0][t] = h_new
        return h_new

    h_carry[0] = lax.fori_loop(0, t_block, step0, h_carry[0], unroll=unroll)

    # TODO(synk): nn.RNN applies dropout(p=0.5) between layers only in training mode;
    # eval-mode (inference) semantics are implemented here.

    # ---------------- layers 1..L-1 ----------------------------------------------
    for l in range(1, num_layers):
        wih_l = wihr_ref[l - 1]                # hoisted per-layer weight slices
        whh_l = whh_ref[l]
        b_l = bih_ref[l] + bhh_ref[l]
        src = bufs[(l - 1) % 2]
        dst = bufs[l % 2]

        def stepl(t, h, wih_l=wih_l, whh_l=whh_l, b_l=b_l, src=src, dst=dst):
            y = src[t]                                           # (b_block, H)
            h_new = jnp.tanh(
                jnp.dot(y, wih_l, preferred_element_type=jnp.float32)
                + jnp.dot(h, whh_l, preferred_element_type=jnp.float32)
                + b_l)
            dst[t] = h_new
            return h_new

        h_carry[l] = lax.fori_loop(0, t_block, stepl, h_carry[l], unroll=unroll)

    # ---------------- fc head: one batched matmul over the whole chunk -----------
    y = bufs[(num_layers - 1) % 2][...]                          # (t_block, b_block, H)
    h_dim = y.shape[-1]
    v_dim = out_ref.shape[-1]
    # (t_block, 8, 128k) -> (t_block*8, 128k) is layout-trivial (tile-aligned).
    y2 = y.reshape(t_block * b_block, h_dim)
    logits = (jnp.dot(y2, wfc_ref[...], preferred_element_type=jnp.float32)
              + bfc_ref[...])
    out_ref[...] = logits.reshape(t_block, b_block, v_dim)

    # Final per-layer hidden state (the last time chunk's write is the one kept).
    hid_ref[...] = h_carry[...]


def char_rnn_forward(tokens, hidden, params, *, t_block=None):
    """tokens: (B, T) int32; hidden: (L, B, H) f32.
    Returns (logits (B*T, V), hidden (L, B, H)) — same semantics as CharRNN.forward (eval mode)."""
    B, T = tokens.shape
    L, _, H = hidden.shape
    V = params["w_fc"].shape[1]

    f32 = jnp.float32
    H_pad = _round_up(max(H, 128), 128)
    V_pad = _round_up(max(V, 128), 128)
    B_BLOCK = 8                                 # one sublane group per batch block
    B_pad = _round_up(B, B_BLOCK)

    if t_block is None:                          # largest divisor of T that is <= 128
        t_block = next(d for d in range(min(T, 128), 0, -1) if T % d == 0)
    assert T % t_block == 0

    def pad_to(a, shape):
        return jnp.pad(a, [(0, s - d) for s, d in zip(shape, a.shape)])

    # Token stream: time-major (T, B_pad) int32 in SMEM (assumed small: T*B_pad*4 bytes).
    # Padded batch columns read row 0 of w_ih0 but never touch real rows/outputs.
    tok_tm = pad_to(jnp.transpose(tokens.astype(jnp.int32)), (T, B_pad))

    # Zero-padding keeps padded hidden/vocab units identically zero through tanh.
    h0 = pad_to(hidden.astype(f32), (L, B_pad, H_pad))
    w_ih0 = pad_to(params["w_ih0"].astype(f32), (params["w_ih0"].shape[0], H_pad))
    w_ihr = pad_to(params["w_ih_rest"].astype(f32), (max(L - 1, 1), H_pad, H_pad))
    w_hh = pad_to(params["w_hh"].astype(f32), (L, H_pad, H_pad))
    b_ih = pad_to(params["b_ih"].astype(f32), (L, 1, H_pad))
    b_hh = pad_to(params["b_hh"].astype(f32), (L, 1, H_pad))
    w_fc = pad_to(params["w_fc"].astype(f32), (H_pad, V_pad))
    b_fc = pad_to(params["b_fc"].astype(f32), (1, V_pad))
    # TODO(synk): on v6e/v7x, casting the weight operands to bf16 (keeping f32
    # accumulation + tanh) halves VMEM/DMA traffic; kept f32 here to match torch numerics.

    grid = (B_pad // B_BLOCK, T // t_block)

    def full(a):  # whole-array VMEM block, fetched once (constant index map)
        return pl.BlockSpec(a.shape, lambda *_: (0,) * a.ndim)

    in_specs = [
        pl.BlockSpec(memory_space=pltpu.MemorySpace.SMEM),               # tokens
        pl.BlockSpec((L, B_BLOCK, H_pad), lambda bi, ti: (0, bi, 0)),    # h0
        full(w_ih0), full(w_ihr), full(w_hh),
        full(b_ih), full(b_hh), full(w_fc), full(b_fc),
    ]
    out_specs = (
        pl.BlockSpec((t_block, B_BLOCK, V_pad), lambda bi, ti: (ti, bi, 0)),  # logits
        pl.BlockSpec((L, B_BLOCK, H_pad), lambda bi, ti: (0, bi, 0)),         # hidden
    )
    out_shape = (
        jax.ShapeDtypeStruct((T, B_pad, V_pad), f32),
        jax.ShapeDtypeStruct((L, B_pad, H_pad), f32),
    )
    scratch_shapes = [
        pltpu.VMEM((L, B_BLOCK, H_pad), f32),        # hidden carry across time chunks
        pltpu.VMEM((t_block, B_BLOCK, H_pad), f32),  # layer activations (ping)
        pltpu.VMEM((t_block, B_BLOCK, H_pad), f32),  # layer activations (pong)
    ]

    def nbytes(*arrs):
        return sum(int(a.size) * a.dtype.itemsize for a in arrs)

    est = (2 * nbytes(h0, w_ih0, w_ihr, w_hh, b_ih, b_hh, w_fc, b_fc)
           + 2 * (t_block * B_BLOCK * V_pad + L * B_BLOCK * H_pad) * 4
           + (L + 2 * t_block) * B_BLOCK * H_pad * 4)
    vmem_limit = int(min(max(est + (4 << 20), 16 << 20), 48 << 20))

    kernel = functools.partial(_charrnn_kernel, num_layers=L,
                               t_block=t_block, b_block=B_BLOCK)

    out_pad, hid_pad = pl.pallas_call(
        kernel,
        out_shape=out_shape,
        grid=grid,
        in_specs=in_specs,
        out_specs=out_specs,
        scratch_shapes=scratch_shapes,
        input_output_aliases={1: 1},            # hidden state updated in place
        compiler_params=pltpu.CompilerParams(
            dimension_semantics=("parallel", "arbitrary"),
            vmem_limit_bytes=vmem_limit),
    )(tok_tm, h0, w_ih0, w_ihr, w_hh, b_ih, b_hh, w_fc, b_fc)

    # Match torch: fc(output.reshape(-1, H)) of a batch_first (B, T, H) tensor -> rows
    # are batch-major (b*T + t).
    logits = jnp.transpose(out_pad, (1, 0, 2))[:B, :, :V].reshape(B * T, V)
    hidden_out = hid_pad[:, :B, :H]
    return logits, hidden_out


def init_params(key, input_size, hidden_size, output_size, num_layers):
    # The torch forward one-hots with num_classes = fc.out_features (= output_size),
    # so the RNN's layer-0 input width must equal output_size for the model to run.
    assert input_size == output_size, "CharRNN.forward requires input_size == output_size"
    ks = jax.random.split(key, 7)
    scale = 1.0 / jnp.sqrt(jnp.float32(hidden_size))

    def u(k, shape):
        return jax.random.uniform(k, shape, jnp.float32, -1.0, 1.0) * scale

    return {
        "w_ih0":     u(ks[0], (input_size, hidden_size)),                   # W_ih^T, layer 0
        "w_ih_rest": u(ks[1], (num_layers - 1, hidden_size, hidden_size)),  # W_ih^T, layers 1..L-1
        "w_hh":      u(ks[2], (num_layers, hidden_size, hidden_size)),      # W_hh^T
        "b_ih":      u(ks[3], (num_layers, 1, hidden_size)),
        "b_hh":      u(ks[4], (num_layers, 1, hidden_size)),
        "w_fc":      u(ks[5], (hidden_size, output_size)),                  # W_fc^T
        "b_fc":      u(ks[6], (1, output_size)),
    }


def init_hidden(num_layers, batch_size, hidden_size):
    return jnp.zeros((num_layers, batch_size, hidden_size), jnp.float32)


def _ref_forward(tokens, hidden, params):
    """Pure-JAX reference (eval-mode nn.RNN + Linear) for correctness checking."""
    B, T = tokens.shape
    L, _, H = hidden.shape
    V = params["w_fc"].shape[1]
    x = jax.nn.one_hot(tokens, V, dtype=jnp.float32)            # (B, T, V)
    h = [hidden[l] for l in range(L)]
    outs = []
    for t in range(T):
        inp = x[:, t, :]
        for l in range(L):
            w_ih = params["w_ih0"] if l == 0 else params["w_ih_rest"][l - 1]
            pre = (inp @ w_ih + h[l] @ params["w_hh"][l]
                   + params["b_ih"][l] + params["b_hh"][l])
            h[l] = jnp.tanh(pre)
            inp = h[l]
        outs.append(inp)
    out = jnp.stack(outs, axis=1)                               # (B, T, H)
    logits = out.reshape(-1, H) @ params["w_fc"] + params["b_fc"]
    return logits, jnp.stack(h, axis=0)


if __name__ == "__main__":
    # Small shapes consistent with the module's forward.
    V = 32          # input_size == output_size (vocab)
    H = 32          # hidden_size
    L = 3           # num_layers
    B = 2           # batch
    T = 8           # sequence length

    key = jax.random.PRNGKey(0)
    k_tok, k_par = jax.random.split(key)

    tokens = jax.random.randint(k_tok, (B, T), 0, V, dtype=jnp.int32)
    hidden0 = init_hidden(L, B, H)
    params = init_params(k_par, V, H, V, L)

    logits, hidden1 = jax.jit(char_rnn_forward)(tokens, hidden0, params)
    jax.block_until_ready((logits, hidden1))

    assert logits.shape == (B * T, V)
    assert hidden1.shape == (L, B, H)

    ref_logits, ref_hidden = _ref_forward(tokens, hidden0, params)
    assert jnp.allclose(logits, ref_logits, atol=2e-3, rtol=2e-3)
    assert jnp.allclose(hidden1, ref_hidden, atol=2e-3, rtol=2e-3)

    print("KERNEL_OK")
</pallas_src>

<mosaic_0001>
module attributes {stable_mosaic.version = 11 : i64} {
  func.func @_charrnn_kernel(%arg0: i32, %arg1: i32, %arg2: memref<8x8xi32, #tpu.memory_space<smem>>, %arg3: memref<3x8x128xf32, #tpu.memory_space<vmem>>, %arg4: memref<32x128xf32, #tpu.memory_space<vmem>>, %arg5: memref<2x128x128xf32, #tpu.memory_space<vmem>>, %arg6: memref<3x128x128xf32, #tpu.memory_space<vmem>>, %arg7: memref<3x1x128xf32, #tpu.memory_space<vmem>>, %arg8: memref<3x1x128xf32, #tpu.memory_space<vmem>>, %arg9: memref<128x128xf32, #tpu.memory_space<vmem>>, %arg10: memref<1x128xf32, #tpu.memory_space<vmem>>, %arg11: memref<8x8x128xf32, #tpu.memory_space<vmem>>, %arg12: memref<3x8x128xf32, #tpu.memory_space<vmem>>, %arg13: memref<3x8x128xf32, #tpu.memory_space<vmem>>, %arg14: memref<8x8x128xf32, #tpu.memory_space<vmem>>, %arg15: memref<8x8x128xf32, #tpu.memory_space<vmem>>) attributes {dimension_semantics = [#tpu.dimension_semantics<parallel>, #tpu.dimension_semantics<arbitrary>], iteration_bounds = array<i64: 1, 1>, scalar_prefetch = 0 : i64, scratch_operands = 3 : i64, tpu.core_type = #tpu.core_type<tc>, window_params = [{transform_indices = @transform_0, window_bounds = array<i64: 8, 8>}, {transform_indices = @transform_1, window_bounds = array<i64: 3, 8, 128>}, {pipeline_mode = #tpu.pipeline_mode<synchronous>, transform_indices = @transform_2, window_bounds = array<i64: 32, 128>}, {pipeline_mode = #tpu.pipeline_mode<synchronous>, transform_indices = @transform_3, window_bounds = array<i64: 2, 128, 128>}, {pipeline_mode = #tpu.pipeline_mode<synchronous>, transform_indices = @transform_4, window_bounds = array<i64: 3, 128, 128>}, {pipeline_mode = #tpu.pipeline_mode<synchronous>, transform_indices = @transform_5, window_bounds = array<i64: 3, 1, 128>}, {pipeline_mode = #tpu.pipeline_mode<synchronous>, transform_indices = @transform_6, window_bounds = array<i64: 3, 1, 128>}, {pipeline_mode = #tpu.pipeline_mode<synchronous>, transform_indices = @transform_7, window_bounds = array<i64: 128, 128>}, {pipeline_mode = #tpu.pipeline_mode<synchronous>, transform_indices = @transform_8, window_bounds = array<i64: 1, 128>}, {transform_indices = @transform_9, window_bounds = array<i64: 8, 8, 128>}, {transform_indices = @transform_10, window_bounds = array<i64: 3, 8, 128>}]} {
    %c0_i32 = arith.constant 0 : i32
    %0 = arith.cmpi eq, %arg1, %c0_i32 : i32
    %1 = arith.extui %0 : i1 to i32
    %c0_i32_0 = arith.constant 0 : i32
    %2 = arith.cmpi ne, %1, %c0_i32_0 : i32
    scf.if %2 {
      %c0_334 = arith.constant 0 : index
      %c0_335 = arith.constant 0 : index
      %c0_336 = arith.constant 0 : index
      %792 = vector.load %arg3[%c0_334, %c0_335, %c0_336] : memref<3x8x128xf32, #tpu.memory_space<vmem>>, vector<3x8x128xf32>
      %c0_337 = arith.constant 0 : index
      %c0_338 = arith.constant 0 : index
      %c0_339 = arith.constant 0 : index
      %793 = vector.load %arg13[%c0_337, %c0_338, %c0_339] : memref<3x8x128xf32, #tpu.memory_space<vmem>>, vector<3x8x128xf32>
      tpu.vector_store %arg13[%c0_337, %c0_338, %c0_339], %792 {strides = array<i32>} : memref<3x8x128xf32, #tpu.memory_space<vmem>>, vector<3x8x128xf32>,
    } else {
    }
    %c8_i32 = arith.constant 8 : i32
    %3 = arith.muli %arg0, %c8_i32 : i32
    %c8_i32_1 = arith.constant 8 : i32
    %4 = arith.muli %arg1, %c8_i32_1 : i32
    %c0 = arith.constant 0 : index
    %c0_2 = arith.constant 0 : index
    %c0_3 = arith.constant 0 : index
    %5 = vector.load %arg6[%c0, %c0_2, %c0_3] : memref<3x128x128xf32, #tpu.memory_space<vmem>>, vector<1x128x128xf32>
    %6 = vector.shape_cast %5 : vector<1x128x128xf32> to vector<128x128xf32>
    %c0_4 = arith.constant 0 : index
    %c0_5 = arith.constant 0 : index
    %c0_6 = arith.constant 0 : index
    %7 = vector.load %arg7[%c0_4, %c0_5, %c0_6] : memref<3x1x128xf32, #tpu.memory_space<vmem>>, vector<1x1x128xf32>
    %8 = vector.shape_cast %7 : vector<1x1x128xf32> to vector<1x128xf32>
    %c0_7 = arith.constant 0 : index
    %c0_8 = arith.constant 0 : index
    %c0_9 = arith.constant 0 : index
    %9 = vector.load %arg8[%c0_7, %c0_8, %c0_9] : memref<3x1x128xf32, #tpu.memory_space<vmem>>, vector<1x1x128xf32>
    %10 = vector.shape_cast %9 : vector<1x1x128xf32> to vector<1x128xf32>
    %11 = arith.addf %8, %10 : vector<1x128xf32>
    %c0_10 = arith.constant 0 : index
    %c0_11 = arith.constant 0 : index
    %c0_12 = arith.constant 0 : index
    %12 = vector.load %arg13[%c0_10, %c0_11, %c0_12] : memref<3x8x128xf32, #tpu.memory_space<vmem>>, vector<1x8x128xf32>
    %13 = vector.shape_cast %12 : vector<1x8x128xf32> to vector<8x128xf32>
    %c0_i32_13 = arith.constant 0 : i32
    %14 = arith.addi %4, %c0_i32_13 : i32
    %c0_i32_14 = arith.constant 0 : i32
    %15 = arith.addi %3, %c0_i32_14 : i32
    %16 = arith.index_cast %14 : i32 to index
    %17 = arith.index_cast %15 : i32 to index
    %18 = memref.load %arg2[%16, %17] : memref<8x8xi32, #tpu.memory_space<smem>>
    %19 = arith.index_cast %18 : i32 to index
    %c0_15 = arith.constant 0 : index
    %20 = vector.load %arg4[%19, %c0_15] : memref<32x128xf32, #tpu.memory_space<vmem>>, vector<1x128xf32>
    %21 = arith.addi %4, %c0_i32_13 : i32
    %c1_i32 = arith.constant 1 : i32
    %22 = arith.addi %3, %c1_i32 : i32
    %23 = arith.index_cast %21 : i32 to index
    %24 = arith.index_cast %22 : i32 to index
    %25 = memref.load %arg2[%23, %24] : memref<8x8xi32, #tpu.memory_space<smem>>
    %26 = arith.index_cast %25 : i32 to index
    %c0_16 = arith.constant 0 : index
    %27 = vector.load %arg4[%26, %c0_16] : memref<32x128xf32, #tpu.memory_space<vmem>>, vector<1x128xf32>
    %28 = arith.addi %4, %c0_i32_13 : i32
    %c2_i32 = arith.constant 2 : i32
    %29 = arith.addi %3, %c2_i32 : i32
    %30 = arith.index_cast %28 : i32 to index
    %31 = arith.index_cast %29 : i32 to index
    %32 = memref.load %arg2[%30, %31] : memref<8x8xi32, #tpu.memory_space<smem>>
    %33 = arith.index_cast %32 : i32 to index
    %c0_17 = arith.constant 0 : index
    %34 = vector.load %arg4[%33, %c0_17] : memref<32x128xf32, #tpu.memory_space<vmem>>, vector<1x128xf32>
    %35 = arith.addi %4, %c0_i32_13 : i32
    %c3_i32 = arith.constant 3 : i32
    %36 = arith.addi %3, %c3_i32 : i32
    %37 = arith.index_cast %35 : i32 to index
    %38 = arith.index_cast %36 : i32 to index
    %39 = memref.load %arg2[%37, %38] : memref<8x8xi32, #tpu.memory_space<smem>>
    %40 = arith.index_cast %39 : i32 to index
    %c0_18 = arith.constant 0 : index
    %41 = vector.load %arg4[%40, %c0_18] : memref<32x128xf32, #tpu.memory_space<vmem>>, vector<1x128xf32>
    %42 = arith.addi %4, %c0_i32_13 : i32
    %c4_i32 = arith.constant 4 : i32
    %43 = arith.addi %3, %c4_i32 : i32
    %44 = arith.index_cast %42 : i32 to index
    %45 = arith.index_cast %43 : i32 to index
    %46 = memref.load %arg2[%44, %45] : memref<8x8xi32, #tpu.memory_space<smem>>
    %47 = arith.index_cast %46 : i32 to index
    %c0_19 = arith.constant 0 : index
    %48 = vector.load %arg4[%47, %c0_19] : memref<32x128xf32, #tpu.memory_space<vmem>>, vector<1x128xf32>
    %49 = arith.addi %4, %c0_i32_13 : i32
    %c5_i32 = arith.constant 5 : i32
    %50 = arith.addi %3, %c5_i32 : i32
    %51 = arith.index_cast %49 : i32 to index
    %52 = arith.index_cast %50 : i32 to index
    %53 = memref.load %arg2[%51, %52] : memref<8x8xi32, #tpu.memory_space<smem>>
    %54 = arith.index_cast %53 : i32 to index
    %c0_20 = arith.constant 0 : index
    %55 = vector.load %arg4[%54, %c0_20] : memref<32x128xf32, #tpu.memory_space<vmem>>, vector<1x128xf32>
    %56 = arith.addi %4, %c0_i32_13 : i32
    %c6_i32 = arith.constant 6 : i32
    %57 = arith.addi %3, %c6_i32 : i32
    %58 = arith.index_cast %56 : i32 to index
    %59 = arith.index_cast %57 : i32 to index
    %60 = memref.load %arg2[%58, %59] : memref<8x8xi32, #tpu.memory_space<smem>>
    %61 = arith.index_cast %60 : i32 to index
    %c0_21 = arith.constant 0 : index
    %62 = vector.load %arg4[%61, %c0_21] : memref<32x128xf32, #tpu.memory_space<vmem>>, vector<1x128xf32>
    %63 = arith.addi %4, %c0_i32_13 : i32
    %c7_i32 = arith.constant 7 : i32
    %64 = arith.addi %3, %c7_i32 : i32
    %65 = arith.index_cast %63 : i32 to index
    %66 = arith.index_cast %64 : i32 to index
    %67 = memref.load %arg2[%65, %66] : memref<8x8xi32, #tpu.memory_space<smem>>
    %68 = arith.index_cast %67 : i32 to index
    %c0_22 = arith.constant 0 : index
    %69 = vector.load %arg4[%68, %c0_22] : memref<32x128xf32, #tpu.memory_space<vmem>>, vector<1x128xf32>
    %70 = tpu.concatenate %20, %27, %34, %41, %48, %55, %62, %69 in 0 : vector<1x128xf32>, vector<1x128xf32>, vector<1x128xf32>, vector<1x128xf32>, vector<1x128xf32>, vector<1x128xf32>, vector<1x128xf32>, vector<1x128xf32> -> vector<8x128xf32>
    %cst = arith.constant dense<0.000000e+00> : vector<8x128xf32>
    %71 = tpu.matmul %13, %6, %cst {dimension_numbers = #tpu.dot_dimension_numbers<[1], [0], [0], [1], [0, 0, 1, 1], [], []>} : vector<8x128xf32>, vector<128x128xf32>, vector<8x128xf32> -> vector<8x128xf32>
    %72 = arith.addf %70, %71 : vector<8x128xf32>
    %73 = vector.broadcast %11 : vector<1x128xf32> to vector<8x128xf32>
    %74 = arith.addf %72, %73 : vector<8x128xf32>
    %75 = math.tanh %74 : vector<8x128xf32>
    %76 = arith.index_cast %c0_i32_13 : i32 to index
    %c0_23 = arith.constant 0 : index
    %c0_24 = arith.constant 0 : index
    %77 = vector.load %arg14[%76, %c0_23, %c0_24] : memref<8x8x128xf32, #tpu.memory_space<vmem>>, vector<1x8x128xf32>
    %78 = vector.shape_cast %77 : vector<1x8x128xf32> to vector<8x128xf32>
    %79 = vector.shape_cast %75 : vector<8x128xf32> to vector<1x8x128xf32>
    tpu.vector_store %arg14[%76, %c0_23, %c0_24], %79 {strides = array<i32>} : memref<8x8x128xf32, #tpu.memory_space<vmem>>, vector<1x8x128xf32>,
    %c1_i32_25 = arith.constant 1 : i32
    %80 = arith.addi %4, %c1_i32_25 : i32
    %c0_i32_26 = arith.constant 0 : i32
    %81 = arith.addi %3, %c0_i32_26 : i32
    %82 = arith.index_cast %80 : i32 to index
    %83 = arith.index_cast %81 : i32 to index
    %84 = memref.load %arg2[%82, %83] : memref<8x8xi32, #tpu.memory_space<smem>>
    %85 = arith.index_cast %84 : i32 to index
    %c0_27 = arith.constant 0 : index
    %86 = vector.load %arg4[%85, %c0_27] : memref<32x128xf32, #tpu.memory_space<vmem>>, vector<1x128xf32>
    %87 = arith.addi %4, %c1_i32_25 : i32
    %c1_i32_28 = arith.constant 1 : i32
    %88 = arith.addi %3, %c1_i32_28 : i32
    %89 = arith.index_cast %87 : i32 to index
    %90 = arith.index_cast %88 : i32 to index
    %91 = memref.load %arg2[%89, %90] : memref<8x8xi32, #tpu.memory_space<smem>>
    %92 = arith.index_cast %91 : i32 to index
    %c0_29 = arith.constant 0 : index
    %93 = vector.load %arg4[%92, %c0_29] : memref<32x128xf32, #tpu.memory_space<vmem>>, vector<1x128xf32>
    %94 = arith.addi %4, %c1_i32_25 : i32
    %c2_i32_30 = arith.constant 2 : i32
    %95 = arith.addi %3, %c2_i32_30 : i32
    %96 = arith.index_cast %94 : i32 to index
    %97 = arith.index_cast %95 : i32 to index
    %98 = memref.load %arg2[%96, %97] : memref<8x8xi32, #tpu.memory_space<smem>>
    %99 = arith.index_cast %98 : i32 to index
    %c0_31 = arith.constant 0 : index
    %100 = vector.load %arg4[%99, %c0_31] : memref<32x128xf32, #tpu.memory_space<vmem>>, vector<1x128xf32>
    %101 = arith.addi %4, %c1_i32_25 : i32
    %c3_i32_32 = arith.constant 3 : i32
    %102 = arith.addi %3, %c3_i32_32 : i32
    %103 = arith.index_cast %101 : i32 to index
    %104 = arith.index_cast %102 : i32 to index
    %105 = memref.load %arg2[%103, %104] : memref<8x8xi32, #tpu.memory_space<smem>>
    %106 = arith.index_cast %105 : i32 to index
    %c0_33 = arith.constant 0 : index
    %107 = vector.load %arg4[%106, %c0_33] : memref<32x128xf32, #tpu.memory_space<vmem>>, vector<1x128xf32>
    %108 = arith.addi %4, %c1_i32_25 : i32
    %c4_i32_34 = arith.constant 4 : i32
    %109 = arith.addi %3, %c4_i32_34 : i32
    %110 = arith.index_cast %108 : i32 to index
    %111 = arith.index_cast %109 : i32 to index
    %112 = memref.load %arg2[%110, %111] : memref<8x8xi32, #tpu.memory_space<smem>>
    %113 = arith.index_cast %112 : i32 to index
    %c0_35 = arith.constant 0 : index
    %114 = vector.load %arg4[%113, %c0_35] : memref<32x128xf32, #tpu.memory_space<vmem>>, vector<1x128xf32>
    %115 = arith.addi %4, %c1_i32_25 : i32
    %c5_i32_36 = arith.constant 5 : i32
    %116 = arith.addi %3, %c5_i32_36 : i32
    %117 = arith.index_cast %115 : i32 to index
    %118 = arith.index_cast %116 : i32 to index
    %119 = memref.load %arg2[%117, %118] : memref<8x8xi32, #tpu.memory_space<smem>>
    %120 = arith.index_cast %119 : i32 to index
    %c0_37 = arith.constant 0 : index
    %121 = vector.load %arg4[%120, %c0_37] : memref<32x128xf32, #tpu.memory_space<vmem>>, vector<1x128xf32>
    %122 = arith.addi %4, %c1_i32_25 : i32
    %c6_i32_38 = arith.constant 6 : i32
    %123 = arith.addi %3, %c6_i32_38 : i32
    %124 = arith.index_cast %122 : i32 to index
    %125 = arith.index_cast %123 : i32 to index
    %126 = memref.load %arg2[%124, %125] : memref<8x8xi32, #tpu.memory_space<smem>>
    %127 = arith.index_cast %126 : i32 to index
    %c0_39 = arith.constant 0 : index
    %128 = vector.load %arg4[%127, %c0_39] : memref<32x128xf32, #tpu.memory_space<vmem>>, vector<1x128xf32>
    %129 = arith.addi %4, %c1_i32_25 : i32
    %c7_i32_40 = arith.constant 7 : i32
    %130 = arith.addi %3, %c7_i32_40 : i32
    %131 = arith.index_cast %129 : i32 to index
    %132 = arith.index_cast %130 : i32 to index
    %133 = memref.load %arg2[%131, %132] : memref<8x8xi32, #tpu.memory_space<smem>>
    %134 = arith.index_cast %133 : i32 to index
    %c0_41 = arith.constant 0 : index
    %135 = vector.load %arg4[%134, %c0_41] : memref<32x128xf32, #tpu.memory_space<vmem>>, vector<1x128xf32>
    %136 = tpu.concatenate %86, %93, %100, %107, %114, %121, %128, %135 in 0 : vector<1x128xf32>, vector<1x128xf32>, vector<1x128xf32>, vector<1x128xf32>, vector<1x128xf32>, vector<1x128xf32>, vector<1x128xf32>, vector<1x128xf32> -> vector<8x128xf32>
    %cst_42 = arith.constant dense<0.000000e+00> : vector<8x128xf32>
    %137 = tpu.matmul %75, %6, %cst_42 {dimension_numbers = #tpu.dot_dimension_numbers<[1], [0], [0], [1], [0, 0, 1, 1], [], []>} : vector<8x128xf32>, vector<128x128xf32>, vector<8x128xf32> -> vector<8x128xf32>
    %138 = arith.addf %136, %137 : vector<8x128xf32>
    %139 = vector.broadcast %11 : vector<1x128xf32> to vector<8x128xf32>
    %140 = arith.addf %138, %139 : vector<8x128xf32>
    %141 = math.tanh %140 : vector<8x128xf32>
    %142 = arith.index_cast %c1_i32_25 : i32 to index
    %c0_43 = arith.constant 0 : index
    %c0_44 = arith.constant 0 : index
    %143 = vector.load %arg14[%142, %c0_43, %c0_44] : memref<8x8x128xf32, #tpu.memory_space<vmem>>, vector<1x8x128xf32>
    %144 = vector.shape_cast %143 : vector<1x8x128xf32> to vector<8x128xf32>
    %145 = vector.shape_cast %141 : vector<8x128xf32> to vector<1x8x128xf32>
    tpu.vector_store %arg14[%142, %c0_43, %c0_44], %145 {strides = array<i32>} : memref<8x8x128xf32, #tpu.memory_space<vmem>>, vector<1x8x128xf32>,
    %c2_i32_45 = arith.constant 2 : i32
    %146 = arith.addi %4, %c2_i32_45 : i32
    %c0_i32_46 = arith.constant 0 : i32
    %147 = arith.addi %3, %c0_i32_46 : i32
    %148 = arith.index_cast %146 : i32 to index
    %149 = arith.index_cast %147 : i32 to index
    %150 = memref.load %arg2[%148, %149] : memref<8x8xi32, #tpu.memory_space<smem>>
    %151 = arith.index_cast %150 : i32 to index
    %c0_47 = arith.constant 0 : index
    %152 = vector.load %arg4[%151, %c0_47] : memref<32x128xf32, #tpu.memory_space<vmem>>, vector<1x128xf32>
    %153 = arith.addi %4, %c2_i32_45 : i32
    %c1_i32_48 = arith.constant 1 : i32
    %154 = arith.addi %3, %c1_i32_48 : i32
    %155 = arith.index_cast %153 : i32 to index
    %156 = arith.index_cast %154 : i32 to index
    %157 = memref.load %arg2[%155, %156] : memref<8x8xi32, #tpu.memory_space<smem>>
    %158 = arith.index_cast %157 : i32 to index
    %c0_49 = arith.constant 0 : index
    %159 = vector.load %arg4[%158, %c0_49] : memref<32x128xf32, #tpu.memory_space<vmem>>, vector<1x128xf32>
    %160 = arith.addi %4, %c2_i32_45 : i32
    %c2_i32_50 = arith.constant 2 : i32
    %161 = arith.addi %3, %c2_i32_50 : i32
    %162 = arith.index_cast %160 : i32 to index
    %163 = arith.index_cast %161 : i32 to index
    %164 = memref.load %arg2[%162, %163] : memref<8x8xi32, #tpu.memory_space<smem>>
    %165 = arith.index_cast %164 : i32 to index
    %c0_51 = arith.constant 0 : index
    %166 = vector.load %arg4[%165, %c0_51] : memref<32x128xf32, #tpu.memory_space<vmem>>, vector<1x128xf32>
    %167 = arith.addi %4, %c2_i32_45 : i32
    %c3_i32_52 = arith.constant 3 : i32
    %168 = arith.addi %3, %c3_i32_52 : i32
    %169 = arith.index_cast %167 : i32 to index
    %170 = arith.index_cast %168 : i32 to index
    %171 = memref.load %arg2[%169, %170] : memref<8x8xi32, #tpu.memory_space<smem>>
    %172 = arith.index_cast %171 : i32 to index
    %c0_53 = arith.constant 0 : index
    %173 = vector.load %arg4[%172, %c0_53] : memref<32x128xf32, #tpu.memory_space<vmem>>, vector<1x128xf32>
    %174 = arith.addi %4, %c2_i32_45 : i32
    %c4_i32_54 = arith.constant 4 : i32
    %175 = arith.addi %3, %c4_i32_54 : i32
    %176 = arith.index_cast %174 : i32 to index
    %177 = arith.index_cast %175 : i32 to index
    %178 = memref.load %arg2[%176, %177] : memref<8x8xi32, #tpu.memory_space<smem>>
    %179 = arith.index_cast %178 : i32 to index
    %c0_55 = arith.constant 0 : index
    %180 = vector.load %arg4[%179, %c0_55] : memref<32x128xf32, #tpu.memory_space<vmem>>, vector<1x128xf32>
    %181 = arith.addi %4, %c2_i32_45 : i32
    %c5_i32_56 = arith.constant 5 : i32
    %182 = arith.addi %3, %c5_i32_56 : i32
    %183 = arith.index_cast %181 : i32 to index
    %184 = arith.index_cast %182 : i32 to index
    %185 = memref.load %arg2[%183, %184] : memref<8x8xi32, #tpu.memory_space<smem>>
    %186 = arith.index_cast %185 : i32 to index
    %c0_57 = arith.constant 0 : index
    %187 = vector.load %arg4[%186, %c0_57] : memref<32x128xf32, #tpu.memory_space<vmem>>, vector<1x128xf32>
    %188 = arith.addi %4, %c2_i32_45 : i32
    %c6_i32_58 = arith.constant 6 : i32
    %189 = arith.addi %3, %c6_i32_58 : i32
    %190 = arith.index_cast %188 : i32 to index
    %191 = arith.index_cast %189 : i32 to index
    %192 = memref.load %arg2[%190, %191] : memref<8x8xi32, #tpu.memory_space<smem>>
    %193 = arith.index_cast %192 : i32 to index
    %c0_59 = arith.constant 0 : index
    %194 = vector.load %arg4[%193, %c0_59] : memref<32x128xf32, #tpu.memory_space<vmem>>, vector<1x128xf32>
    %195 = arith.addi %4, %c2_i32_45 : i32
    %c7_i32_60 = arith.constant 7 : i32
    %196 = arith.addi %3, %c7_i32_60 : i32
    %197 = arith.index_cast %195 : i32 to index
    %198 = arith.index_cast %196 : i32 to index
    %199 = memref.load %arg2[%197, %198] : memref<8x8xi32, #tpu.memory_space<smem>>
    %200 = arith.index_cast %199 : i32 to index
    %c0_61 = arith.constant 0 : index
    %201 = vector.load %arg4[%200, %c0_61] : memref<32x128xf32, #tpu.memory_space<vmem>>, vector<1x128xf32>
    %202 = tpu.concatenate %152, %159, %166, %173, %180, %187, %194, %201 in 0 : vector<1x128xf32>, vector<1x128xf32>, vector<1x128xf32>, vector<1x128xf32>, vector<1x128xf32>, vector<1x128xf32>, vector<1x128xf32>, vector<1x128xf32> -> vector<8x128xf32>
    %cst_62 = arith.constant dense<0.000000e+00> : vector<8x128xf32>
    %203 = tpu.matmul %141, %6, %cst_62 {dimension_numbers = #tpu.dot_dimension_numbers<[1], [0], [0], [1], [0, 0, 1, 1], [], []>} : vector<8x128xf32>, vector<128x128xf32>, vector<8x128xf32> -> vector<8x128xf32>
    %204 = arith.addf %202, %203 : vector<8x128xf32>
    %205 = vector.broadcast %11 : vector<1x128xf32> to vector<8x128xf32>
    %206 = arith.addf %204, %205 : vector<8x128xf32>
    %207 = math.tanh %206 : vector<8x128xf32>
    %208 = arith.index_cast %c2_i32_45 : i32 to index
    %c0_63 = arith.constant 0 : index
    %c0_64 = arith.constant 0 : index
    %209 = vector.load %arg14[%208, %c0_63, %c0_64] : memref<8x8x128xf32, #tpu.memory_space<vmem>>, vector<1x8x128xf32>
    %210 = vector.shape_cast %209 : vector<1x8x128xf32> to vector<8x128xf32>
    %211 = vector.shape_cast %207 : vector<8x128xf32> to vector<1x8x128xf32>
    tpu.vector_store %arg14[%208, %c0_63, %c0_64], %211 {strides = array<i32>} : memref<8x8x128xf32, #tpu.memory_space<vmem>>, vector<1x8x128xf32>,
    %c3_i32_65 = arith.constant 3 : i32
    %212 = arith.addi %4, %c3_i32_65 : i32
    %c0_i32_66 = arith.constant 0 : i32
    %213 = arith.addi %3, %c0_i32_66 : i32
    %214 = arith.index_cast %212 : i32 to index
    %215 = arith.index_cast %213 : i32 to index
    %216 = memref.load %arg2[%214, %215] : memref<8x8xi32, #tpu.memory_space<smem>>
    %217 = arith.index_cast %216 : i32 to index
    %c0_67 = arith.constant 0 : index
    %218 = vector.load %arg4[%217, %c0_67] : memref<32x128xf32, #tpu.memory_space<vmem>>, vector<1x128xf32>
    %219 = arith.addi %4, %c3_i32_65 : i32
    %c1_i32_68 = arith.constant 1 : i32
    %220 = arith.addi %3, %c1_i32_68 : i32
    %221 = arith.index_cast %219 : i32 to index
    %222 = arith.index_cast %220 : i32 to index
    %223 = memref.load %arg2[%221, %222] : memref<8x8xi32, #tpu.memory_space<smem>>
    %224 = arith.index_cast %223 : i32 to index
    %c0_69 = arith.constant 0 : index
    %225 = vector.load %arg4[%224, %c0_69] : memref<32x128xf32, #tpu.memory_space<vmem>>, vector<1x128xf32>
    %226 = arith.addi %4, %c3_i32_65 : i32
    %c2_i32_70 = arith.constant 2 : i32
    %227 = arith.addi %3, %c2_i32_70 : i32
    %228 = arith.index_cast %226 : i32 to index
    %229 = arith.index_cast %227 : i32 to index
    %230 = memref.load %arg2[%228, %229] : memref<8x8xi32, #tpu.memory_space<smem>>
    %231 = arith.index_cast %230 : i32 to index
    %c0_71 = arith.constant 0 : index
    %232 = vector.load %arg4[%231, %c0_71] : memref<32x128xf32, #tpu.memory_space<vmem>>, vector<1x128xf32>
    %233 = arith.addi %4, %c3_i32_65 : i32
    %c3_i32_72 = arith.constant 3 : i32
    %234 = arith.addi %3, %c3_i32_72 : i32
    %235 = arith.index_cast %233 : i32 to index
    %236 = arith.index_cast %234 : i32 to index
    %237 = memref.load %arg2[%235, %236] : memref<8x8xi32, #tpu.memory_space<smem>>
    %238 = arith.index_cast %237 : i32 to index
    %c0_73 = arith.constant 0 : index
    %239 = vector.load %arg4[%238, %c0_73] : memref<32x128xf32, #tpu.memory_space<vmem>>, vector<1x128xf32>
    %240 = arith.addi %4, %c3_i32_65 : i32
    %c4_i32_74 = arith.constant 4 : i32
    %241 = arith.addi %3, %c4_i32_74 : i32
    %242 = arith.index_cast %240 : i32 to index
    %243 = arith.index_cast %241 : i32 to index
    %244 = memref.load %arg2[%242, %243] : memref<8x8xi32, #tpu.memory_space<smem>>
    %245 = arith.index_cast %244 : i32 to index
    %c0_75 = arith.constant 0 : index
    %246 = vector.load %arg4[%245, %c0_75] : memref<32x128xf32, #tpu.memory_space<vmem>>, vector<1x128xf32>
    %247 = arith.addi %4, %c3_i32_65 : i32
    %c5_i32_76 = arith.constant 5 : i32
    %248 = arith.addi %3, %c5_i32_76 : i32
    %249 = arith.index_cast %247 : i32 to index
    %250 = arith.index_cast %248 : i32 to index
    %251 = memref.load %arg2[%249, %250] : memref<8x8xi32, #tpu.memory_space<smem>>
    %252 = arith.index_cast %251 : i32 to index
    %c0_77 = arith.constant 0 : index
    %253 = vector.load %arg4[%252, %c0_77] : memref<32x128xf32, #tpu.memory_space<vmem>>, vector<1x128xf32>
    %254 = arith.addi %4, %c3_i32_65 : i32
    %c6_i32_78 = arith.constant 6 : i32
    %255 = arith.addi %3, %c6_i32_78 : i32
    %256 = arith.index_cast %254 : i32 to index
    %257 = arith.index_cast %255 : i32 to index
    %258 = memref.load %arg2[%256, %257] : memref<8x8xi32, #tpu.memory_space<smem>>
    %259 = arith.index_cast %258 : i32 to index
    %c0_79 = arith.constant 0 : index
    %260 = vector.load %arg4[%259, %c0_79] : memref<32x128xf32, #tpu.memory_space<vmem>>, vector<1x128xf32>
    %261 = arith.addi %4, %c3_i32_65 : i32
    %c7_i32_80 = arith.constant 7 : i32
    %262 = arith.addi %3, %c7_i32_80 : i32
    %263 = arith.index_cast %261 : i32 to index
    %264 = arith.index_cast %262 : i32 to index
    %265 = memref.load %arg2[%263, %264] : memref<8x8xi32, #tpu.memory_space<smem>>
    %266 = arith.index_cast %265 : i32 to index
    %c0_81 = arith.constant 0 : index
    %267 = vector.load %arg4[%266, %c0_81] : memref<32x128xf32, #tpu.memory_space<vmem>>, vector<1x128xf32>
    %268 = tpu.concatenate %218, %225, %232, %239, %246, %253, %260, %267 in 0 : vector<1x128xf32>, vector<1x128xf32>, vector<1x128xf32>, vector<1x128xf32>, vector<1x128xf32>, vector<1x128xf32>, vector<1x128xf32>, vector<1x128xf32> -> vector<8x128xf32>
    %cst_82 = arith.constant dense<0.000000e+00> : vector<8x128xf32>
    %269 = tpu.matmul %207, %6, %cst_82 {dimension_numbers = #tpu.dot_dimension_numbers<[1], [0], [0], [1], [0, 0, 1, 1], [], []>} : vector<8x128xf32>, vector<128x128xf32>, vector<8x128xf32> -> vector<8x128xf32>
    %270 = arith.addf %268, %269 : vector<8x128xf32>
    %271 = vector.broadcast %11 : vector<1x128xf32> to vector<8x128xf32>
    %272 = arith.addf %270, %271 : vector<8x128xf32>
    %273 = math.tanh %272 : vector<8x128xf32>
    %274 = arith.index_cast %c3_i32_65 : i32 to index
    %c0_83 = arith.constant 0 : index
    %c0_84 = arith.constant 0 : index
    %275 = vector.load %arg14[%274, %c0_83, %c0_84] : memref<8x8x128xf32, #tpu.memory_space<vmem>>, vector<1x8x128xf32>
    %276 = vector.shape_cast %275 : vector<1x8x128xf32> to vector<8x128xf32>
    %277 = vector.shape_cast %273 : vector<8x128xf32> to vector<1x8x128xf32>
    tpu.vector_store %arg14[%274, %c0_83, %c0_84], %277 {strides = array<i32>} : memref<8x8x128xf32, #tpu.memory_space<vmem>>, vector<1x8x128xf32>,
    %c4_i32_85 = arith.constant 4 : i32
    %278 = arith.addi %4, %c4_i32_85 : i32
    %c0_i32_86 = arith.constant 0 : i32
    %279 = arith.addi %3, %c0_i32_86 : i32
    %280 = arith.index_cast %278 : i32 to index
    %281 = arith.index_cast %279 : i32 to index
    %282 = memref.load %arg2[%280, %281] : memref<8x8xi32, #tpu.memory_space<smem>>
    %283 = arith.index_cast %282 : i32 to index
    %c0_87 = arith.constant 0 : index
    %284 = vector.load %arg4[%283, %c0_87] : memref<32x128xf32, #tpu.memory_space<vmem>>, vector<1x128xf32>
    %285 = arith.addi %4, %c4_i32_85 : i32
    %c1_i32_88 = arith.constant 1 : i32
    %286 = arith.addi %3, %c1_i32_88 : i32
    %287 = arith.index_cast %285 : i32 to index
    %288 = arith.index_cast %286 : i32 to index
    %289 = memref.load %arg2[%287, %288] : memref<8x8xi32, #tpu.memory_space<smem>>
    %290 = arith.index_cast %289 : i32 to index
    %c0_89 = arith.constant 0 : index
    %291 = vector.load %arg4[%290, %c0_89] : memref<32x128xf32, #tpu.memory_space<vmem>>, vector<1x128xf32>
    %292 = arith.addi %4, %c4_i32_85 : i32
    %c2_i32_90 = arith.constant 2 : i32
    %293 = arith.addi %3, %c2_i32_90 : i32
    %294 = arith.index_cast %292 : i32 to index
    %295 = arith.index_cast %293 : i32 to index
    %296 = memref.load %arg2[%294, %295] : memref<8x8xi32, #tpu.memory_space<smem>>
    %297 = arith.index_cast %296 : i32 to index
    %c0_91 = arith.constant 0 : index
    %298 = vector.load %arg4[%297, %c0_91] : memref<32x128xf32, #tpu.memory_space<vmem>>, vector<1x128xf32>
    %299 = arith.addi %4, %c4_i32_85 : i32
    %c3_i32_92 = arith.constant 3 : i32
    %300 = arith.addi %3, %c3_i32_92 : i32
    %301 = arith.index_cast %299 : i32 to index
    %302 = arith.index_cast %300 : i32 to index
    %303 = memref.load %arg2[%301, %302] : memref<8x8xi32, #tpu.memory_space<smem>>
    %304 = arith.index_cast %303 : i32 to index
    %c0_93 = arith.constant 0 : index
    %305 = vector.load %arg4[%304, %c0_93] : memref<32x128xf32, #tpu.memory_space<vmem>>, vector<1x128xf32>
    %306 = arith.addi %4, %c4_i32_85 : i32
    %c4_i32_94 = arith.constant 4 : i32
    %307 = arith.addi %3, %c4_i32_94 : i32
    %308 = arith.index_cast %306 : i32 to index
    %309 = arith.index_cast %307 : i32 to index
    %310 = memref.load %arg2[%308, %309] : memref<8x8xi32, #tpu.memory_space<smem>>
    %311 = arith.index_cast %310 : i32 to index
    %c0_95 = arith.constant 0 : index
    %312 = vector.load %arg4[%311, %c0_95] : memref<32x128xf32, #tpu.memory_space<vmem>>, vector<1x128xf32>
    %313 = arith.addi %4, %c4_i32_85 : i32
    %c5_i32_96 = arith.constant 5 : i32
    %314 = arith.addi %3, %c5_i32_96 : i32
    %315 = arith.index_cast %313 : i32 to index
    %316 = arith.index_cast %314 : i32 to index
    %317 = memref.load %arg2[%315, %316] : memref<8x8xi32, #tpu.memory_space<smem>>
    %318 = arith.index_cast %317 : i32 to index
    %c0_97 = arith.constant 0 : index
    %319 = vector.load %arg4[%318, %c0_97] : memref<32x128xf32, #tpu.memory_space<vmem>>, vector<1x128xf32>
    %320 = arith.addi %4, %c4_i32_85 : i32
    %c6_i32_98 = arith.constant 6 : i32
    %321 = arith.addi %3, %c6_i32_98 : i32
    %322 = arith.index_cast %320 : i32 to index
    %323 = arith.index_cast %321 : i32 to index
    %324 = memref.load %arg2[%322, %323] : memref<8x8xi32, #tpu.memory_space<smem>>
    %325 = arith.index_cast %324 : i32 to index
    %c0_99 = arith.constant 0 : index
    %326 = vector.load %arg4[%325, %c0_99] : memref<32x128xf32, #tpu.memory_space<vmem>>, vector<1x128xf32>
    %327 = arith.addi %4, %c4_i32_85 : i32
    %c7_i32_100 = arith.constant 7 : i32
    %328 = arith.addi %3, %c7_i32_100 : i32
    %329 = arith.index_cast %327 : i32 to index
    %330 = arith.index_cast %328 : i32 to index
    %331 = memref.load %arg2[%329, %330] : memref<8x8xi32, #tpu.memory_space<smem>>
    %332 = arith.index_cast %331 : i32 to index
    %c0_101 = arith.constant 0 : index
    %333 = vector.load %arg4[%332, %c0_101] : memref<32x128xf32, #tpu.memory_space<vmem>>, vector<1x128xf32>
    %334 = tpu.concatenate %284, %291, %298, %305, %312, %319, %326, %333 in 0 : vector<1x128xf32>, vector<1x128xf32>, vector<1x128xf32>, vector<1x128xf32>, vector<1x128xf32>, vector<1x128xf32>, vector<1x128xf32>, vector<1x128xf32> -> vector<8x128xf32>
    %cst_102 = arith.constant dense<0.000000e+00> : vector<8x128xf32>
    %335 = tpu.matmul %273, %6, %cst_102 {dimension_numbers = #tpu.dot_dimension_numbers<[1], [0], [0], [1], [0, 0, 1, 1], [], []>} : vector<8x128xf32>, vector<128x128xf32>, vector<8x128xf32> -> vector<8x128xf32>
    %336 = arith.addf %334, %335 : vector<8x128xf32>
    %337 = vector.broadcast %11 : vector<1x128xf32> to vector<8x128xf32>
    %338 = arith.addf %336, %337 : vector<8x128xf32>
    %339 = math.tanh %338 : vector<8x128xf32>
    %340 = arith.index_cast %c4_i32_85 : i32 to index
    %c0_103 = arith.constant 0 : index
    %c0_104 = arith.constant 0 : index
    %341 = vector.load %arg14[%340, %c0_103, %c0_104] : memref<8x8x128xf32, #tpu.memory_space<vmem>>, vector<1x8x128xf32>
    %342 = vector.shape_cast %341 : vector<1x8x128xf32> to vector<8x128xf32>
    %343 = vector.shape_cast %339 : vector<8x128xf32> to vector<1x8x128xf32>
    tpu.vector_store %arg14[%340, %c0_103, %c0_104], %343 {strides = array<i32>} : memref<8x8x128xf32, #tpu.memory_space<vmem>>, vector<1x8x128xf32>,
    %c5_i32_105 = arith.constant 5 : i32
    %344 = arith.addi %4, %c5_i32_105 : i32
    %c0_i32_106 = arith.constant 0 : i32
    %345 = arith.addi %3, %c0_i32_106 : i32
    %346 = arith.index_cast %344 : i32 to index
    %347 = arith.index_cast %345 : i32 to index
    %348 = memref.load %arg2[%346, %347] : memref<8x8xi32, #tpu.memory_space<smem>>
    %349 = arith.index_cast %348 : i32 to index
    %c0_107 = arith.constant 0 : index
    %350 = vector.load %arg4[%349, %c0_107] : memref<32x128xf32, #tpu.memory_space<vmem>>, vector<1x128xf32>
    %351 = arith.addi %4, %c5_i32_105 : i32
    %c1_i32_108 = arith.constant 1 : i32
    %352 = arith.addi %3, %c1_i32_108 : i32
    %353 = arith.index_cast %351 : i32 to index
    %354 = arith.index_cast %352 : i32 to index
    %355 = memref.load %arg2[%353, %354] : memref<8x8xi32, #tpu.memory_space<smem>>
    %356 = arith.index_cast %355 : i32 to index
    %c0_109 = arith.constant 0 : index
    %357 = vector.load %arg4[%356, %c0_109] : memref<32x128xf32, #tpu.memory_space<vmem>>, vector<1x128xf32>
    %358 = arith.addi %4, %c5_i32_105 : i32
    %c2_i32_110 = arith.constant 2 : i32
    %359 = arith.addi %3, %c2_i32_110 : i32
    %360 = arith.index_cast %358 : i32 to index
    %361 = arith.index_cast %359 : i32 to index
    %362 = memref.load %arg2[%360, %361] : memref<8x8xi32, #tpu.memory_space<smem>>
    %363 = arith.index_cast %362 : i32 to index
    %c0_111 = arith.constant 0 : index
    %364 = vector.load %arg4[%363, %c0_111] : memref<32x128xf32, #tpu.memory_space<vmem>>, vector<1x128xf32>
    %365 = arith.addi %4, %c5_i32_105 : i32
    %c3_i32_112 = arith.constant 3 : i32
    %366 = arith.addi %3, %c3_i32_112 : i32
    %367 = arith.index_cast %365 : i32 to index
    %368 = arith.index_cast %366 : i32 to index
    %369 = memref.load %arg2[%367, %368] : memref<8x8xi32, #tpu.memory_space<smem>>
    %370 = arith.index_cast %369 : i32 to index
    %c0_113 = arith.constant 0 : index
    %371 = vector.load %arg4[%370, %c0_113] : memref<32x128xf32, #tpu.memory_space<vmem>>, vector<1x128xf32>
    %372 = arith.addi %4, %c5_i32_105 : i32
    %c4_i32_114 = arith.constant 4 : i32
    %373 = arith.addi %3, %c4_i32_114 : i32
    %374 = arith.index_cast %372 : i32 to index
    %375 = arith.index_cast %373 : i32 to index
    %376 = memref.load %arg2[%374, %375] : memref<8x8xi32, #tpu.memory_space<smem>>
    %377 = arith.index_cast %376 : i32 to index
    %c0_115 = arith.constant 0 : index
    %378 = vector.load %arg4[%377, %c0_115] : memref<32x128xf32, #tpu.memory_space<vmem>>, vector<1x128xf32>
    %379 = arith.addi %4, %c5_i32_105 : i32
    %c5_i32_116 = arith.constant 5 : i32
    %380 = arith.addi %3, %c5_i32_116 : i32
    %381 = arith.index_cast %379 : i32 to index
    %382 = arith.index_cast %380 : i32 to index
    %383 = memref.load %arg2[%381, %382] : memref<8x8xi32, #tpu.memory_space<smem>>
    %384 = arith.index_cast %383 : i32 to index
    %c0_117 = arith.constant 0 : index
    %385 = vector.load %arg4[%384, %c0_117] : memref<32x128xf32, #tpu.memory_space<vmem>>, vector<1x128xf32>
    %386 = arith.addi %4, %c5_i32_105 : i32
    %c6_i32_118 = arith.constant 6 : i32
    %387 = arith.addi %3, %c6_i32_118 : i32
    %388 = arith.index_cast %386 : i32 to index
    %389 = arith.index_cast %387 : i32 to index
    %390 = memref.load %arg2[%388, %389] : memref<8x8xi32, #tpu.memory_space<smem>>
    %391 = arith.index_cast %390 : i32 to index
    %c0_119 = arith.constant 0 : index
    %392 = vector.load %arg4[%391, %c0_119] : memref<32x128xf32, #tpu.memory_space<vmem>>, vector<1x128xf32>
    %393 = arith.addi %4, %c5_i32_105 : i32
    %c7_i32_120 = arith.constant 7 : i32
    %394 = arith.addi %3, %c7_i32_120 : i32
    %395 = arith.index_cast %393 : i32 to index
    %396 = arith.index_cast %394 : i32 to index
    %397 = memref.load %arg2[%395, %396] : memref<8x8xi32, #tpu.memory_space<smem>>
    %398 = arith.index_cast %397 : i32 to index
    %c0_121 = arith.constant 0 : index
    %399 = vector.load %arg4[%398, %c0_121] : memref<32x128xf32, #tpu.memory_space<vmem>>, vector<1x128xf32>
    %400 = tpu.concatenate %350, %357, %364, %371, %378, %385, %392, %399 in 0 : vector<1x128xf32>, vector<1x128xf32>, vector<1x128xf32>, vector<1x128xf32>, vector<1x128xf32>, vector<1x128xf32>, vector<1x128xf32>, vector<1x128xf32> -> vector<8x128xf32>
    %cst_122 = arith.constant dense<0.000000e+00> : vector<8x128xf32>
    %401 = tpu.matmul %339, %6, %cst_122 {dimension_numbers = #tpu.dot_dimension_numbers<[1], [0], [0], [1], [0, 0, 1, 1], [], []>} : vector<8x128xf32>, vector<128x128xf32>, vector<8x128xf32> -> vector<8x128xf32>
    %402 = arith.addf %400, %401 : vector<8x128xf32>
    %403 = vector.broadcast %11 : vector<1x128xf32> to vector<8x128xf32>
    %404 = arith.addf %402, %403 : vector<8x128xf32>
    %405 = math.tanh %404 : vector<8x128xf32>
    %406 = arith.index_cast %c5_i32_105 : i32 to index
    %c0_123 = arith.constant 0 : index
    %c0_124 = arith.constant 0 : index
    %407 = vector.load %arg14[%406, %c0_123, %c0_124] : memref<8x8x128xf32, #tpu.memory_space<vmem>>, vector<1x8x128xf32>
    %408 = vector.shape_cast %407 : vector<1x8x128xf32> to vector<8x128xf32>
    %409 = vector.shape_cast %405 : vector<8x128xf32> to vector<1x8x128xf32>
    tpu.vector_store %arg14[%406, %c0_123, %c0_124], %409 {strides = array<i32>} : memref<8x8x128xf32, #tpu.memory_space<vmem>>, vector<1x8x128xf32>,
    %c6_i32_125 = arith.constant 6 : i32
    %410 = arith.addi %4, %c6_i32_125 : i32
    %c0_i32_126 = arith.constant 0 : i32
    %411 = arith.addi %3, %c0_i32_126 : i32
    %412 = arith.index_cast %410 : i32 to index
    %413 = arith.index_cast %411 : i32 to index
    %414 = memref.load %arg2[%412, %413] : memref<8x8xi32, #tpu.memory_space<smem>>
    %415 = arith.index_cast %414 : i32 to index
    %c0_127 = arith.constant 0 : index
    %416 = vector.load %arg4[%415, %c0_127] : memref<32x128xf32, #tpu.memory_space<vmem>>, vector<1x128xf32>
    %417 = arith.addi %4, %c6_i32_125 : i32
    %c1_i32_128 = arith.constant 1 : i32
    %418 = arith.addi %3, %c1_i32_128 : i32
    %419 = arith.index_cast %417 : i32 to index
    %420 = arith.index_cast %418 : i32 to index
    %421 = memref.load %arg2[%419, %420] : memref<8x8xi32, #tpu.memory_space<smem>>
    %422 = arith.index_cast %421 : i32 to index
    %c0_129 = arith.constant 0 : index
    %423 = vector.load %arg4[%422, %c0_129] : memref<32x128xf32, #tpu.memory_space<vmem>>, vector<1x128xf32>
    %424 = arith.addi %4, %c6_i32_125 : i32
    %c2_i32_130 = arith.constant 2 : i32
    %425 = arith.addi %3, %c2_i32_130 : i32
    %426 = arith.index_cast %424 : i32 to index
    %427 = arith.index_cast %425 : i32 to index
    %428 = memref.load %arg2[%426, %427] : memref<8x8xi32, #tpu.memory_space<smem>>
    %429 = arith.index_cast %428 : i32 to index
    %c0_131 = arith.constant 0 : index
    %430 = vector.load %arg4[%429, %c0_131] : memref<32x128xf32, #tpu.memory_space<vmem>>, vector<1x128xf32>
    %431 = arith.addi %4, %c6_i32_125 : i32
    %c3_i32_132 = arith.constant 3 : i32
    %432 = arith.addi %3, %c3_i32_132 : i32
    %433 = arith.index_cast %431 : i32 to index
    %434 = arith.index_cast %432 : i32 to index
    %435 = memref.load %arg2[%433, %434] : memref<8x8xi32, #tpu.memory_space<smem>>
    %436 = arith.index_cast %435 : i32 to index
    %c0_133 = arith.constant 0 : index
    %437 = vector.load %arg4[%436, %c0_133] : memref<32x128xf32, #tpu.memory_space<vmem>>, vector<1x128xf32>
    %438 = arith.addi %4, %c6_i32_125 : i32
    %c4_i32_134 = arith.constant 4 : i32
    %439 = arith.addi %3, %c4_i32_134 : i32
    %440 = arith.index_cast %438 : i32 to index
    %441 = arith.index_cast %439 : i32 to index
    %442 = memref.load %arg2[%440, %441] : memref<8x8xi32, #tpu.memory_space<smem>>
    %443 = arith.index_cast %442 : i32 to index
    %c0_135 = arith.constant 0 : index
    %444 = vector.load %arg4[%443, %c0_135] : memref<32x128xf32, #tpu.memory_space<vmem>>, vector<1x128xf32>
    %445 = arith.addi %4, %c6_i32_125 : i32
    %c5_i32_136 = arith.constant 5 : i32
    %446 = arith.addi %3, %c5_i32_136 : i32
    %447 = arith.index_cast %445 : i32 to index
    %448 = arith.index_cast %446 : i32 to index
    %449 = memref.load %arg2[%447, %448] : memref<8x8xi32, #tpu.memory_space<smem>>
    %450 = arith.index_cast %449 : i32 to index
    %c0_137 = arith.constant 0 : index
    %451 = vector.load %arg4[%450, %c0_137] : memref<32x128xf32, #tpu.memory_space<vmem>>, vector<1x128xf32>
    %452 = arith.addi %4, %c6_i32_125 : i32
    %c6_i32_138 = arith.constant 6 : i32
    %453 = arith.addi %3, %c6_i32_138 : i32
    %454 = arith.index_cast %452 : i32 to index
    %455 = arith.index_cast %453 : i32 to index
    %456 = memref.load %arg2[%454, %455] : memref<8x8xi32, #tpu.memory_space<smem>>
    %457 = arith.index_cast %456 : i32 to index
    %c0_139 = arith.constant 0 : index
    %458 = vector.load %arg4[%457, %c0_139] : memref<32x128xf32, #tpu.memory_space<vmem>>, vector<1x128xf32>
    %459 = arith.addi %4, %c6_i32_125 : i32
    %c7_i32_140 = arith.constant 7 : i32
    %460 = arith.addi %3, %c7_i32_140 : i32
    %461 = arith.index_cast %459 : i32 to index
    %462 = arith.index_cast %460 : i32 to index
    %463 = memref.load %arg2[%461, %462] : memref<8x8xi32, #tpu.memory_space<smem>>
    %464 = arith.index_cast %463 : i32 to index
    %c0_141 = arith.constant 0 : index
    %465 = vector.load %arg4[%464, %c0_141] : memref<32x128xf32, #tpu.memory_space<vmem>>, vector<1x128xf32>
    %466 = tpu.concatenate %416, %423, %430, %437, %444, %451, %458, %465 in 0 : vector<1x128xf32>, vector<1x128xf32>, vector<1x128xf32>, vector<1x128xf32>, vector<1x128xf32>, vector<1x128xf32>, vector<1x128xf32>, vector<1x128xf32> -> vector<8x128xf32>
    %cst_142 = arith.constant dense<0.000000e+00> : vector<8x128xf32>
    %467 = tpu.matmul %405, %6, %cst_142 {dimension_numbers = #tpu.dot_dimension_numbers<[1], [0], [0], [1], [0, 0, 1, 1], [], []>} : vector<8x128xf32>, vector<128x128xf32>, vector<8x128xf32> -> vector<8x128xf32>
    %468 = arith.addf %466, %467 : vector<8x128xf32>
    %469 = vector.broadcast %11 : vector<1x128xf32> to vector<8x128xf32>
    %470 = arith.addf %468, %469 : vector<8x128xf32>
    %471 = math.tanh %470 : vector<8x128xf32>
    %472 = arith.index_cast %c6_i32_125 : i32 to index
    %c0_143 = arith.constant 0 : index
    %c0_144 = arith.constant 0 : index
    %473 = vector.load %arg14[%472, %c0_143, %c0_144] : memref<8x8x128xf32, #tpu.memory_space<vmem>>, vector<1x8x128xf32>
    %474 = vector.shape_cast %473 : vector<1x8x128xf32> to vector<8x128xf32>
    %475 = vector.shape_cast %471 : vector<8x128xf32> to vector<1x8x128xf32>
    tpu.vector_store %arg14[%472, %c0_143, %c0_144], %475 {strides = array<i32>} : memref<8x8x128xf32, #tpu.memory_space<vmem>>, vector<1x8x128xf32>,
    %c7_i32_145 = arith.constant 7 : i32
    %476 = arith.addi %4, %c7_i32_145 : i32
    %c0_i32_146 = arith.constant 0 : i32
    %477 = arith.addi %3, %c0_i32_146 : i32
    %478 = arith.index_cast %476 : i32 to index
    %479 = arith.index_cast %477 : i32 to index
    %480 = memref.load %arg2[%478, %479] : memref<8x8xi32, #tpu.memory_space<smem>>
    %481 = arith.index_cast %480 : i32 to index
    %c0_147 = arith.constant 0 : index
    %482 = vector.load %arg4[%481, %c0_147] : memref<32x128xf32, #tpu.memory_space<vmem>>, vector<1x128xf32>
    %483 = arith.addi %4, %c7_i32_145 : i32
    %c1_i32_148 = arith.constant 1 : i32
    %484 = arith.addi %3, %c1_i32_148 : i32
    %485 = arith.index_cast %483 : i32 to index
    %486 = arith.index_cast %484 : i32 to index
    %487 = memref.load %arg2[%485, %486] : memref<8x8xi32, #tpu.memory_space<smem>>
    %488 = arith.index_cast %487 : i32 to index
    %c0_149 = arith.constant 0 : index
    %489 = vector.load %arg4[%488, %c0_149] : memref<32x128xf32, #tpu.memory_space<vmem>>, vector<1x128xf32>
    %490 = arith.addi %4, %c7_i32_145 : i32
    %c2_i32_150 = arith.constant 2 : i32
    %491 = arith.addi %3, %c2_i32_150 : i32
    %492 = arith.index_cast %490 : i32 to index
    %493 = arith.index_cast %491 : i32 to index
    %494 = memref.load %arg2[%492, %493] : memref<8x8xi32, #tpu.memory_space<smem>>
    %495 = arith.index_cast %494 : i32 to index
    %c0_151 = arith.constant 0 : index
    %496 = vector.load %arg4[%495, %c0_151] : memref<32x128xf32, #tpu.memory_space<vmem>>, vector<1x128xf32>
    %497 = arith.addi %4, %c7_i32_145 : i32
    %c3_i32_152 = arith.constant 3 : i32
    %498 = arith.addi %3, %c3_i32_152 : i32
    %499 = arith.index_cast %497 : i32 to index
    %500 = arith.index_cast %498 : i32 to index
    %501 = memref.load %arg2[%499, %500] : memref<8x8xi32, #tpu.memory_space<smem>>
    %502 = arith.index_cast %501 : i32 to index
    %c0_153 = arith.constant 0 : index
    %503 = vector.load %arg4[%502, %c0_153] : memref<32x128xf32, #tpu.memory_space<vmem>>, vector<1x128xf32>
    %504 = arith.addi %4, %c7_i32_145 : i32
    %c4_i32_154 = arith.constant 4 : i32
    %505 = arith.addi %3, %c4_i32_154 : i32
    %506 = arith.index_cast %504 : i32 to index
    %507 = arith.index_cast %505 : i32 to index
    %508 = memref.load %arg2[%506, %507] : memref<8x8xi32, #tpu.memory_space<smem>>
    %509 = arith.index_cast %508 : i32 to index
    %c0_155 = arith.constant 0 : index
    %510 = vector.load %arg4[%509, %c0_155] : memref<32x128xf32, #tpu.memory_space<vmem>>, vector<1x128xf32>
    %511 = arith.addi %4, %c7_i32_145 : i32
    %c5_i32_156 = arith.constant 5 : i32
    %512 = arith.addi %3, %c5_i32_156 : i32
    %513 = arith.index_cast %511 : i32 to index
    %514 = arith.index_cast %512 : i32 to index
    %515 = memref.load %arg2[%513, %514] : memref<8x8xi32, #tpu.memory_space<smem>>
    %516 = arith.index_cast %515 : i32 to index
    %c0_157 = arith.constant 0 : index
    %517 = vector.load %arg4[%516, %c0_157] : memref<32x128xf32, #tpu.memory_space<vmem>>, vector<1x128xf32>
    %518 = arith.addi %4, %c7_i32_145 : i32
    %c6_i32_158 = arith.constant 6 : i32
    %519 = arith.addi %3, %c6_i32_158 : i32
    %520 = arith.index_cast %518 : i32 to index
    %521 = arith.index_cast %519 : i32 to index
    %522 = memref.load %arg2[%520, %521] : memref<8x8xi32, #tpu.memory_space<smem>>
    %523 = arith.index_cast %522 : i32 to index
    %c0_159 = arith.constant 0 : index
    %524 = vector.load %arg4[%523, %c0_159] : memref<32x128xf32, #tpu.memory_space<vmem>>, vector<1x128xf32>
    %525 = arith.addi %4, %c7_i32_145 : i32
    %c7_i32_160 = arith.constant 7 : i32
    %526 = arith.addi %3, %c7_i32_160 : i32
    %527 = arith.index_cast %525 : i32 to index
    %528 = arith.index_cast %526 : i32 to index
    %529 = memref.load %arg2[%527, %528] : memref<8x8xi32, #tpu.memory_space<smem>>
    %530 = arith.index_cast %529 : i32 to index
    %c0_161 = arith.constant 0 : index
    %531 = vector.load %arg4[%530, %c0_161] : memref<32x128xf32, #tpu.memory_space<vmem>>, vector<1x128xf32>
    %532 = tpu.concatenate %482, %489, %496, %503, %510, %517, %524, %531 in 0 : vector<1x128xf32>, vector<1x128xf32>, vector<1x128xf32>, vector<1x128xf32>, vector<1x128xf32>, vector<1x128xf32>, vector<1x128xf32>, vector<1x128xf32> -> vector<8x128xf32>
    %cst_162 = arith.constant dense<0.000000e+00> : vector<8x128xf32>
    %533 = tpu.matmul %471, %6, %cst_162 {dimension_numbers = #tpu.dot_dimension_numbers<[1], [0], [0], [1], [0, 0, 1, 1], [], []>} : vector<8x128xf32>, vector<128x128xf32>, vector<8x128xf32> -> vector<8x128xf32>
    %534 = arith.addf %532, %533 : vector<8x128xf32>
    %535 = vector.broadcast %11 : vector<1x128xf32> to vector<8x128xf32>
    %536 = arith.addf %534, %535 : vector<8x128xf32>
    %537 = math.tanh %536 : vector<8x128xf32>
    %538 = arith.index_cast %c7_i32_145 : i32 to index
    %c0_163 = arith.constant 0 : index
    %c0_164 = arith.constant 0 : index
    %539 = vector.load %arg14[%538, %c0_163, %c0_164] : memref<8x8x128xf32, #tpu.memory_space<vmem>>, vector<1x8x128xf32>
    %540 = vector.shape_cast %539 : vector<1x8x128xf32> to vector<8x128xf32>
    %541 = vector.shape_cast %537 : vector<8x128xf32> to vector<1x8x128xf32>
    tpu.vector_store %arg14[%538, %c0_163, %c0_164], %541 {strides = array<i32>} : memref<8x8x128xf32, #tpu.memory_space<vmem>>, vector<1x8x128xf32>,
    %c8_i32_165 = arith.constant 8 : i32
    %c0_166 = arith.constant 0 : index
    %c0_167 = arith.constant 0 : index
    %c0_168 = arith.constant 0 : index
    %542 = vector.load %arg13[%c0_166, %c0_167, %c0_168] : memref<3x8x128xf32, #tpu.memory_space<vmem>>, vector<1x8x128xf32>
    %543 = vector.shape_cast %542 : vector<1x8x128xf32> to vector<8x128xf32>
    %544 = vector.shape_cast %537 : vector<8x128xf32> to vector<1x8x128xf32>
    tpu.vector_store %arg13[%c0_166, %c0_167, %c0_168], %544 {strides = array<i32>} : memref<3x8x128xf32, #tpu.memory_space<vmem>>, vector<1x8x128xf32>,
    %c0_169 = arith.constant 0 : index
    %c0_170 = arith.constant 0 : index
    %c0_171 = arith.constant 0 : index
    %545 = vector.load %arg5[%c0_169, %c0_170, %c0_171] : memref<2x128x128xf32, #tpu.memory_space<vmem>>, vector<1x128x128xf32>
    %546 = vector.shape_cast %545 : vector<1x128x128xf32> to vector<128x128xf32>
    %c1 = arith.constant 1 : index
    %c0_172 = arith.constant 0 : index
    %c0_173 = arith.constant 0 : index
    %547 = vector.load %arg6[%c1, %c0_172, %c0_173] : memref<3x128x128xf32, #tpu.memory_space<vmem>>, vector<1x128x128xf32>
    %548 = vector.shape_cast %547 : vector<1x128x128xf32> to vector<128x128xf32>
    %c1_174 = arith.constant 1 : index
    %c0_175 = arith.constant 0 : index
    %c0_176 = arith.constant 0 : index
    %549 = vector.load %arg7[%c1_174, %c0_175, %c0_176] : memref<3x1x128xf32, #tpu.memory_space<vmem>>, vector<1x1x128xf32>
    %550 = vector.shape_cast %549 : vector<1x1x128xf32> to vector<1x128xf32>
    %c1_177 = arith.constant 1 : index
    %c0_178 = arith.constant 0 : index
    %c0_179 = arith.constant 0 : index
    %551 = vector.load %arg8[%c1_177, %c0_178, %c0_179] : memref<3x1x128xf32, #tpu.memory_space<vmem>>, vector<1x1x128xf32>
    %552 = vector.shape_cast %551 : vector<1x1x128xf32> to vector<1x128xf32>
    %553 = arith.addf %550, %552 : vector<1x128xf32>
    %c1_180 = arith.constant 1 : index
    %c0_181 = arith.constant 0 : index
    %c0_182 = arith.constant 0 : index
    %554 = vector.load %arg13[%c1_180, %c0_181, %c0_182] : memref<3x8x128xf32, #tpu.memory_space<vmem>>, vector<1x8x128xf32>
    %555 = vector.shape_cast %554 : vector<1x8x128xf32> to vector<8x128xf32>
    %c0_i32_183 = arith.constant 0 : i32
    %556 = arith.index_cast %c0_i32_183 : i32 to index
    %c0_184 = arith.constant 0 : index
    %c0_185 = arith.constant 0 : index
    %557 = vector.load %arg14[%556, %c0_184, %c0_185] : memref<8x8x128xf32, #tpu.memory_space<vmem>>, vector<1x8x128xf32>
    %558 = vector.shape_cast %557 : vector<1x8x128xf32> to vector<8x128xf32>
    %cst_186 = arith.constant dense<0.000000e+00> : vector<8x128xf32>
    %559 = tpu.matmul %558, %546, %cst_186 {dimension_numbers = #tpu.dot_dimension_numbers<[1], [0], [0], [1], [0, 0, 1, 1], [], []>} : vector<8x128xf32>, vector<128x128xf32>, vector<8x128xf32> -> vector<8x128xf32>
    %cst_187 = arith.constant dense<0.000000e+00> : vector<8x128xf32>
    %560 = tpu.matmul %555, %548, %cst_187 {dimension_numbers = #tpu.dot_dimension_numbers<[1], [0], [0], [1], [0, 0, 1, 1], [], []>} : vector<8x128xf32>, vector<128x128xf32>, vector<8x128xf32> -> vector<8x128xf32>
    %561 = arith.addf %559, %560 : vector<8x128xf32>
    %562 = vector.broadcast %553 : vector<1x128xf32> to vector<8x128xf32>
    %563 = arith.addf %561, %562 : vector<8x128xf32>
    %564 = math.tanh %563 : vector<8x128xf32>
    %565 = arith.index_cast %c0_i32_183 : i32 to index
    %c0_188 = arith.constant 0 : index
    %c0_189 = arith.constant 0 : index
    %566 = vector.load %arg15[%565, %c0_188, %c0_189] : memref<8x8x128xf32, #tpu.memory_space<vmem>>, vector<1x8x128xf32>
    %567 = vector.shape_cast %566 : vector<1x8x128xf32> to vector<8x128xf32>
    %568 = vector.shape_cast %564 : vector<8x128xf32> to vector<1x8x128xf32>
    tpu.vector_store %arg15[%565, %c0_188, %c0_189], %568 {strides = array<i32>} : memref<8x8x128xf32, #tpu.memory_space<vmem>>, vector<1x8x128xf32>,
    %c1_i32_190 = arith.constant 1 : i32
    %569 = arith.index_cast %c1_i32_190 : i32 to index
    %c0_191 = arith.constant 0 : index
    %c0_192 = arith.constant 0 : index
    %570 = vector.load %arg14[%569, %c0_191, %c0_192] : memref<8x8x128xf32, #tpu.memory_space<vmem>>, vector<1x8x128xf32>
    %571 = vector.shape_cast %570 : vector<1x8x128xf32> to vector<8x128xf32>
    %cst_193 = arith.constant dense<0.000000e+00> : vector<8x128xf32>
    %572 = tpu.matmul %571, %546, %cst_193 {dimension_numbers = #tpu.dot_dimension_numbers<[1], [0], [0], [1], [0, 0, 1, 1], [], []>} : vector<8x128xf32>, vector<128x128xf32>, vector<8x128xf32> -> vector<8x128xf32>
    %cst_194 = arith.constant dense<0.000000e+00> : vector<8x128xf32>
    %573 = tpu.matmul %564, %548, %cst_194 {dimension_numbers = #tpu.dot_dimension_numbers<[1], [0], [0], [1], [0, 0, 1, 1], [], []>} : vector<8x128xf32>, vector<128x128xf32>, vector<8x128xf32> -> vector<8x128xf32>
    %574 = arith.addf %572, %573 : vector<8x128xf32>
    %575 = vector.broadcast %553 : vector<1x128xf32> to vector<8x128xf32>
    %576 = arith.addf %574, %575 : vector<8x128xf32>
    %577 = math.tanh %576 : vector<8x128xf32>
    %578 = arith.index_cast %c1_i32_190 : i32 to index
    %c0_195 = arith.constant 0 : index
    %c0_196 = arith.constant 0 : index
    %579 = vector.load %arg15[%578, %c0_195, %c0_196] : memref<8x8x128xf32, #tpu.memory_space<vmem>>, vector<1x8x128xf32>
    %580 = vector.shape_cast %579 : vector<1x8x128xf32> to vector<8x128xf32>
    %581 = vector.shape_cast %577 : vector<8x128xf32> to vector<1x8x128xf32>
    tpu.vector_store %arg15[%578, %c0_195, %c0_196], %581 {strides = array<i32>} : memref<8x8x128xf32, #tpu.memory_space<vmem>>, vector<1x8x128xf32>,
    %c2_i32_197 = arith.constant 2 : i32
    %582 = arith.index_cast %c2_i32_197 : i32 to index
    %c0_198 = arith.constant 0 : index
    %c0_199 = arith.constant 0 : index
    %583 = vector.load %arg14[%582, %c0_198, %c0_199] : memref<8x8x128xf32, #tpu.memory_space<vmem>>, vector<1x8x128xf32>
    %584 = vector.shape_cast %583 : vector<1x8x128xf32> to vector<8x128xf32>
    %cst_200 = arith.constant dense<0.000000e+00> : vector<8x128xf32>
    %585 = tpu.matmul %584, %546, %cst_200 {dimension_numbers = #tpu.dot_dimension_numbers<[1], [0], [0], [1], [0, 0, 1, 1], [], []>} : vector<8x128xf32>, vector<128x128xf32>, vector<8x128xf32> -> vector<8x128xf32>
    %cst_201 = arith.constant dense<0.000000e+00> : vector<8x128xf32>
    %586 = tpu.matmul %577, %548, %cst_201 {dimension_numbers = #tpu.dot_dimension_numbers<[1], [0], [0], [1], [0, 0, 1, 1], [], []>} : vector<8x128xf32>, vector<128x128xf32>, vector<8x128xf32> -> vector<8x128xf32>
    %587 = arith.addf %585, %586 : vector<8x128xf32>
    %588 = vector.broadcast %553 : vector<1x128xf32> to vector<8x128xf32>
    %589 = arith.addf %587, %588 : vector<8x128xf32>
    %590 = math.tanh %589 : vector<8x128xf32>
    %591 = arith.index_cast %c2_i32_197 : i32 to index
    %c0_202 = arith.constant 0 : index
    %c0_203 = arith.constant 0 : index
    %592 = vector.load %arg15[%591, %c0_202, %c0_203] : memref<8x8x128xf32, #tpu.memory_space<vmem>>, vector<1x8x128xf32>
    %593 = vector.shape_cast %592 : vector<1x8x128xf32> to vector<8x128xf32>
    %594 = vector.shape_cast %590 : vector<8x128xf32> to vector<1x8x128xf32>
    tpu.vector_store %arg15[%591, %c0_202, %c0_203], %594 {strides = array<i32>} : memref<8x8x128xf32, #tpu.memory_space<vmem>>, vector<1x8x128xf32>,
    %c3_i32_204 = arith.constant 3 : i32
    %595 = arith.index_cast %c3_i32_204 : i32 to index
    %c0_205 = arith.constant 0 : index
    %c0_206 = arith.constant 0 : index
    %596 = vector.load %arg14[%595, %c0_205, %c0_206] : memref<8x8x128xf32, #tpu.memory_space<vmem>>, vector<1x8x128xf32>
    %597 = vector.shape_cast %596 : vector<1x8x128xf32> to vector<8x128xf32>
    %cst_207 = arith.constant dense<0.000000e+00> : vector<8x128xf32>
    %598 = tpu.matmul %597, %546, %cst_207 {dimension_numbers = #tpu.dot_dimension_numbers<[1], [0], [0], [1], [0, 0, 1, 1], [], []>} : vector<8x128xf32>, vector<128x128xf32>, vector<8x128xf32> -> vector<8x128xf32>
    %cst_208 = arith.constant dense<0.000000e+00> : vector<8x128xf32>
    %599 = tpu.matmul %590, %548, %cst_208 {dimension_numbers = #tpu.dot_dimension_numbers<[1], [0], [0], [1], [0, 0, 1, 1], [], []>} : vector<8x128xf32>, vector<128x128xf32>, vector<8x128xf32> -> vector<8x128xf32>
    %600 = arith.addf %598, %599 : vector<8x128xf32>
    %601 = vector.broadcast %553 : vector<1x128xf32> to vector<8x128xf32>
    %602 = arith.addf %600, %601 : vector<8x128xf32>
    %603 = math.tanh %602 : vector<8x128xf32>
    %604 = arith.index_cast %c3_i32_204 : i32 to index
    %c0_209 = arith.constant 0 : index
    %c0_210 = arith.constant 0 : index
    %605 = vector.load %arg15[%604, %c0_209, %c0_210] : memref<8x8x128xf32, #tpu.memory_space<vmem>>, vector<1x8x128xf32>
    %606 = vector.shape_cast %605 : vector<1x8x128xf32> to vector<8x128xf32>
    %607 = vector.shape_cast %603 : vector<8x128xf32> to vector<1x8x128xf32>
    tpu.vector_store %arg15[%604, %c0_209, %c0_210], %607 {strides = array<i32>} : memref<8x8x128xf32, #tpu.memory_space<vmem>>, vector<1x8x128xf32>,
    %c4_i32_211 = arith.constant 4 : i32
    %608 = arith.index_cast %c4_i32_211 : i32 to index
    %c0_212 = arith.constant 0 : index
    %c0_213 = arith.constant 0 : index
    %609 = vector.load %arg14[%608, %c0_212, %c0_213] : memref<8x8x128xf32, #tpu.memory_space<vmem>>, vector<1x8x128xf32>
    %610 = vector.shape_cast %609 : vector<1x8x128xf32> to vector<8x128xf32>
    %cst_214 = arith.constant dense<0.000000e+00> : vector<8x128xf32>
    %611 = tpu.matmul %610, %546, %cst_214 {dimension_numbers = #tpu.dot_dimension_numbers<[1], [0], [0], [1], [0, 0, 1, 1], [], []>} : vector<8x128xf32>, vector<128x128xf32>, vector<8x128xf32> -> vector<8x128xf32>
    %cst_215 = arith.constant dense<0.000000e+00> : vector<8x128xf32>
    %612 = tpu.matmul %603, %548, %cst_215 {dimension_numbers = #tpu.dot_dimension_numbers<[1], [0], [0], [1], [0, 0, 1, 1], [], []>} : vector<8x128xf32>, vector<128x128xf32>, vector<8x128xf32> -> vector<8x128xf32>
    %613 = arith.addf %611, %612 : vector<8x128xf32>
    %614 = vector.broadcast %553 : vector<1x128xf32> to vector<8x128xf32>
    %615 = arith.addf %613, %614 : vector<8x128xf32>
    %616 = math.tanh %615 : vector<8x128xf32>
    %617 = arith.index_cast %c4_i32_211 : i32 to index
    %c0_216 = arith.constant 0 : index
    %c0_217 = arith.constant 0 : index
    %618 = vector.load %arg15[%617, %c0_216, %c0_217] : memref<8x8x128xf32, #tpu.memory_space<vmem>>, vector<1x8x128xf32>
    %619 = vector.shape_cast %618 : vector<1x8x128xf32> to vector<8x128xf32>
    %620 = vector.shape_cast %616 : vector<8x128xf32> to vector<1x8x128xf32>
    tpu.vector_store %arg15[%617, %c0_216, %c0_217], %620 {strides = array<i32>} : memref<8x8x128xf32, #tpu.memory_space<vmem>>, vector<1x8x128xf32>,
    %c5_i32_218 = arith.constant 5 : i32
    %621 = arith.index_cast %c5_i32_218 : i32 to index
    %c0_219 = arith.constant 0 : index
    %c0_220 = arith.constant 0 : index
    %622 = vector.load %arg14[%621, %c0_219, %c0_220] : memref<8x8x128xf32, #tpu.memory_space<vmem>>, vector<1x8x128xf32>
    %623 = vector.shape_cast %622 : vector<1x8x128xf32> to vector<8x128xf32>
    %cst_221 = arith.constant dense<0.000000e+00> : vector<8x128xf32>
    %624 = tpu.matmul %623, %546, %cst_221 {dimension_numbers = #tpu.dot_dimension_numbers<[1], [0], [0], [1], [0, 0, 1, 1], [], []>} : vector<8x128xf32>, vector<128x128xf32>, vector<8x128xf32> -> vector<8x128xf32>
    %cst_222 = arith.constant dense<0.000000e+00> : vector<8x128xf32>
    %625 = tpu.matmul %616, %548, %cst_222 {dimension_numbers = #tpu.dot_dimension_numbers<[1], [0], [0], [1], [0, 0, 1, 1], [], []>} : vector<8x128xf32>, vector<128x128xf32>, vector<8x128xf32> -> vector<8x128xf32>
    %626 = arith.addf %624, %625 : vector<8x128xf32>
    %627 = vector.broadcast %553 : vector<1x128xf32> to vector<8x128xf32>
    %628 = arith.addf %626, %627 : vector<8x128xf32>
    %629 = math.tanh %628 : vector<8x128xf32>
    %630 = arith.index_cast %c5_i32_218 : i32 to index
    %c0_223 = arith.constant 0 : index
    %c0_224 = arith.constant 0 : index
    %631 = vector.load %arg15[%630, %c0_223, %c0_224] : memref<8x8x128xf32, #tpu.memory_space<vmem>>, vector<1x8x128xf32>
    %632 = vector.shape_cast %631 : vector<1x8x128xf32> to vector<8x128xf32>
    %633 = vector.shape_cast %629 : vector<8x128xf32> to vector<1x8x128xf32>
    tpu.vector_store %arg15[%630, %c0_223, %c0_224], %633 {strides = array<i32>} : memref<8x8x128xf32, #tpu.memory_space<vmem>>, vector<1x8x128xf32>,
    %c6_i32_225 = arith.constant 6 : i32
    %634 = arith.index_cast %c6_i32_225 : i32 to index
    %c0_226 = arith.constant 0 : index
    %c0_227 = arith.constant 0 : index
    %635 = vector.load %arg14[%634, %c0_226, %c0_227] : memref<8x8x128xf32, #tpu.memory_space<vmem>>, vector<1x8x128xf32>
    %636 = vector.shape_cast %635 : vector<1x8x128xf32> to vector<8x128xf32>
    %cst_228 = arith.constant dense<0.000000e+00> : vector<8x128xf32>
    %637 = tpu.matmul %636, %546, %cst_228 {dimension_numbers = #tpu.dot_dimension_numbers<[1], [0], [0], [1], [0, 0, 1, 1], [], []>} : vector<8x128xf32>, vector<128x128xf32>, vector<8x128xf32> -> vector<8x128xf32>
    %cst_229 = arith.constant dense<0.000000e+00> : vector<8x128xf32>
    %638 = tpu.matmul %629, %548, %cst_229 {dimension_numbers = #tpu.dot_dimension_numbers<[1], [0], [0], [1], [0, 0, 1, 1], [], []>} : vector<8x128xf32>, vector<128x128xf32>, vector<8x128xf32> -> vector<8x128xf32>
    %639 = arith.addf %637, %638 : vector<8x128xf32>
    %640 = vector.broadcast %553 : vector<1x128xf32> to vector<8x128xf32>
    %641 = arith.addf %639, %640 : vector<8x128xf32>
    %642 = math.tanh %641 : vector<8x128xf32>
    %643 = arith.index_cast %c6_i32_225 : i32 to index
    %c0_230 = arith.constant 0 : index
    %c0_231 = arith.constant 0 : index
    %644 = vector.load %arg15[%643, %c0_230, %c0_231] : memref<8x8x128xf32, #tpu.memory_space<vmem>>, vector<1x8x128xf32>
    %645 = vector.shape_cast %644 : vector<1x8x128xf32> to vector<8x128xf32>
    %646 = vector.shape_cast %642 : vector<8x128xf32> to vector<1x8x128xf32>
    tpu.vector_store %arg15[%643, %c0_230, %c0_231], %646 {strides = array<i32>} : memref<8x8x128xf32, #tpu.memory_space<vmem>>, vector<1x8x128xf32>,
    %c7_i32_232 = arith.constant 7 : i32
    %647 = arith.index_cast %c7_i32_232 : i32 to index
    %c0_233 = arith.constant 0 : index
    %c0_234 = arith.constant 0 : index
    %648 = vector.load %arg14[%647, %c0_233, %c0_234] : memref<8x8x128xf32, #tpu.memory_space<vmem>>, vector<1x8x128xf32>
    %649 = vector.shape_cast %648 : vector<1x8x128xf32> to vector<8x128xf32>
    %cst_235 = arith.constant dense<0.000000e+00> : vector<8x128xf32>
    %650 = tpu.matmul %649, %546, %cst_235 {dimension_numbers = #tpu.dot_dimension_numbers<[1], [0], [0], [1], [0, 0, 1, 1], [], []>} : vector<8x128xf32>, vector<128x128xf32>, vector<8x128xf32> -> vector<8x128xf32>
    %cst_236 = arith.constant dense<0.000000e+00> : vector<8x128xf32>
    %651 = tpu.matmul %642, %548, %cst_236 {dimension_numbers = #tpu.dot_dimension_numbers<[1], [0], [0], [1], [0, 0, 1, 1], [], []>} : vector<8x128xf32>, vector<128x128xf32>, vector<8x128xf32> -> vector<8x128xf32>
    %652 = arith.addf %650, %651 : vector<8x128xf32>
    %653 = vector.broadcast %553 : vector<1x128xf32> to vector<8x128xf32>
    %654 = arith.addf %652, %653 : vector<8x128xf32>
    %655 = math.tanh %654 : vector<8x128xf32>
    %656 = arith.index_cast %c7_i32_232 : i32 to index
    %c0_237 = arith.constant 0 : index
    %c0_238 = arith.constant 0 : index
    %657 = vector.load %arg15[%656, %c0_237, %c0_238] : memref<8x8x128xf32, #tpu.memory_space<vmem>>, vector<1x8x128xf32>
    %658 = vector.shape_cast %657 : vector<1x8x128xf32> to vector<8x128xf32>
    %659 = vector.shape_cast %655 : vector<8x128xf32> to vector<1x8x128xf32>
    tpu.vector_store %arg15[%656, %c0_237, %c0_238], %659 {strides = array<i32>} : memref<8x8x128xf32, #tpu.memory_space<vmem>>, vector<1x8x128xf32>,
    %c8_i32_239 = arith.constant 8 : i32
    %c1_240 = arith.constant 1 : index
    %c0_241 = arith.constant 0 : index
    %c0_242 = arith.constant 0 : index
    %660 = vector.load %arg13[%c1_240, %c0_241, %c0_242] : memref<3x8x128xf32, #tpu.memory_space<vmem>>, vector<1x8x128xf32>
    %661 = vector.shape_cast %660 : vector<1x8x128xf32> to vector<8x128xf32>
    %662 = vector.shape_cast %655 : vector<8x128xf32> to vector<1x8x128xf32>
    tpu.vector_store %arg13[%c1_240, %c0_241, %c0_242], %662 {strides = array<i32>} : memref<3x8x128xf32, #tpu.memory_space<vmem>>, vector<1x8x128xf32>,
    %c1_243 = arith.constant 1 : index
    %c0_244 = arith.constant 0 : index
    %c0_245 = arith.constant 0 : index
    %663 = vector.load %arg5[%c1_243, %c0_244, %c0_245] : memref<2x128x128xf32, #tpu.memory_space<vmem>>, vector<1x128x128xf32>
    %664 = vector.shape_cast %663 : vector<1x128x128xf32> to vector<128x128xf32>
    %c2 = arith.constant 2 : index
    %c0_246 = arith.constant 0 : index
    %c0_247 = arith.constant 0 : index
    %665 = vector.load %arg6[%c2, %c0_246, %c0_247] : memref<3x128x128xf32, #tpu.memory_space<vmem>>, vector<1x128x128xf32>
    %666 = vector.shape_cast %665 : vector<1x128x128xf32> to vector<128x128xf32>
    %c2_248 = arith.constant 2 : index
    %c0_249 = arith.constant 0 : index
    %c0_250 = arith.constant 0 : index
    %667 = vector.load %arg7[%c2_248, %c0_249, %c0_250] : memref<3x1x128xf32, #tpu.memory_space<vmem>>, vector<1x1x128xf32>
    %668 = vector.shape_cast %667 : vector<1x1x128xf32> to vector<1x128xf32>
    %c2_251 = arith.constant 2 : index
    %c0_252 = arith.constant 0 : index
    %c0_253 = arith.constant 0 : index
    %669 = vector.load %arg8[%c2_251, %c0_252, %c0_253] : memref<3x1x128xf32, #tpu.memory_space<vmem>>, vector<1x1x128xf32>
    %670 = vector.shape_cast %669 : vector<1x1x128xf32> to vector<1x128xf32>
    %671 = arith.addf %668, %670 : vector<1x128xf32>
    %c2_254 = arith.constant 2 : index
    %c0_255 = arith.constant 0 : index
    %c0_256 = arith.constant 0 : index
    %672 = vector.load %arg13[%c2_254, %c0_255, %c0_256] : memref<3x8x128xf32, #tpu.memory_space<vmem>>, vector<1x8x128xf32>
    %673 = vector.shape_cast %672 : vector<1x8x128xf32> to vector<8x128xf32>
    %c0_i32_257 = arith.constant 0 : i32
    %674 = arith.index_cast %c0_i32_257 : i32 to index
    %c0_258 = arith.constant 0 : index
    %c0_259 = arith.constant 0 : index
    %675 = vector.load %arg15[%674, %c0_258, %c0_259] : memref<8x8x128xf32, #tpu.memory_space<vmem>>, vector<1x8x128xf32>
    %676 = vector.shape_cast %675 : vector<1x8x128xf32> to vector<8x128xf32>
    %cst_260 = arith.constant dense<0.000000e+00> : vector<8x128xf32>
    %677 = tpu.matmul %676, %664, %cst_260 {dimension_numbers = #tpu.dot_dimension_numbers<[1], [0], [0], [1], [0, 0, 1, 1], [], []>} : vector<8x128xf32>, vector<128x128xf32>, vector<8x128xf32> -> vector<8x128xf32>
    %cst_261 = arith.constant dense<0.000000e+00> : vector<8x128xf32>
    %678 = tpu.matmul %673, %666, %cst_261 {dimension_numbers = #tpu.dot_dimension_numbers<[1], [0], [0], [1], [0, 0, 1, 1], [], []>} : vector<8x128xf32>, vector<128x128xf32>, vector<8x128xf32> -> vector<8x128xf32>
    %679 = arith.addf %677, %678 : vector<8x128xf32>
    %680 = vector.broadcast %671 : vector<1x128xf32> to vector<8x128xf32>
    %681 = arith.addf %679, %680 : vector<8x128xf32>
    %682 = math.tanh %681 : vector<8x128xf32>
    %683 = arith.index_cast %c0_i32_257 : i32 to index
    %c0_262 = arith.constant 0 : index
    %c0_263 = arith.constant 0 : index
    %684 = vector.load %arg14[%683, %c0_262, %c0_263] : memref<8x8x128xf32, #tpu.memory_space<vmem>>, vector<1x8x128xf32>
    %685 = vector.shape_cast %684 : vector<1x8x128xf32> to vector<8x128xf32>
    %686 = vector.shape_cast %682 : vector<8x128xf32> to vector<1x8x128xf32>
    tpu.vector_store %arg14[%683, %c0_262, %c0_263], %686 {strides = array<i32>} : memref<8x8x128xf32, #tpu.memory_space<vmem>>, vector<1x8x128xf32>,
    %c1_i32_264 = arith.constant 1 : i32
    %687 = arith.index_cast %c1_i32_264 : i32 to index
    %c0_265 = arith.constant 0 : index
    %c0_266 = arith.constant 0 : index
    %688 = vector.load %arg15[%687, %c0_265, %c0_266] : memref<8x8x128xf32, #tpu.memory_space<vmem>>, vector<1x8x128xf32>
    %689 = vector.shape_cast %688 : vector<1x8x128xf32> to vector<8x128xf32>
    %cst_267 = arith.constant dense<0.000000e+00> : vector<8x128xf32>
    %690 = tpu.matmul %689, %664, %cst_267 {dimension_numbers = #tpu.dot_dimension_numbers<[1], [0], [0], [1], [0, 0, 1, 1], [], []>} : vector<8x128xf32>, vector<128x128xf32>, vector<8x128xf32> -> vector<8x128xf32>
    %cst_268 = arith.constant dense<0.000000e+00> : vector<8x128xf32>
    %691 = tpu.matmul %682, %666, %cst_268 {dimension_numbers = #tpu.dot_dimension_numbers<[1], [0], [0], [1], [0, 0, 1, 1], [], []>} : vector<8x128xf32>, vector<128x128xf32>, vector<8x128xf32> -> vector<8x128xf32>
    %692 = arith.addf %690, %691 : vector<8x128xf32>
    %693 = vector.broadcast %671 : vector<1x128xf32> to vector<8x128xf32>
    %694 = arith.addf %692, %693 : vector<8x128xf32>
    %695 = math.tanh %694 : vector<8x128xf32>
    %696 = arith.index_cast %c1_i32_264 : i32 to index
    %c0_269 = arith.constant 0 : index
    %c0_270 = arith.constant 0 : index
    %697 = vector.load %arg14[%696, %c0_269, %c0_270] : memref<8x8x128xf32, #tpu.memory_space<vmem>>, vector<1x8x128xf32>
    %698 = vector.shape_cast %697 : vector<1x8x128xf32> to vector<8x128xf32>
    %699 = vector.shape_cast %695 : vector<8x128xf32> to vector<1x8x128xf32>
    tpu.vector_store %arg14[%696, %c0_269, %c0_270], %699 {strides = array<i32>} : memref<8x8x128xf32, #tpu.memory_space<vmem>>, vector<1x8x128xf32>,
    %c2_i32_271 = arith.constant 2 : i32
    %700 = arith.index_cast %c2_i32_271 : i32 to index
    %c0_272 = arith.constant 0 : index
    %c0_273 = arith.constant 0 : index
    %701 = vector.load %arg15[%700, %c0_272, %c0_273] : memref<8x8x128xf32, #tpu.memory_space<vmem>>, vector<1x8x128xf32>
    %702 = vector.shape_cast %701 : vector<1x8x128xf32> to vector<8x128xf32>
    %cst_274 = arith.constant dense<0.000000e+00> : vector<8x128xf32>
    %703 = tpu.matmul %702, %664, %cst_274 {dimension_numbers = #tpu.dot_dimension_numbers<[1], [0], [0], [1], [0, 0, 1, 1], [], []>} : vector<8x128xf32>, vector<128x128xf32>, vector<8x128xf32> -> vector<8x128xf32>
    %cst_275 = arith.constant dense<0.000000e+00> : vector<8x128xf32>
    %704 = tpu.matmul %695, %666, %cst_275 {dimension_numbers = #tpu.dot_dimension_numbers<[1], [0], [0], [1], [0, 0, 1, 1], [], []>} : vector<8x128xf32>, vector<128x128xf32>, vector<8x128xf32> -> vector<8x128xf32>
    %705 = arith.addf %703, %704 : vector<8x128xf32>
    %706 = vector.broadcast %671 : vector<1x128xf32> to vector<8x128xf32>
    %707 = arith.addf %705, %706 : vector<8x128xf32>
    %708 = math.tanh %707 : vector<8x128xf32>
    %709 = arith.index_cast %c2_i32_271 : i32 to index
    %c0_276 = arith.constant 0 : index
    %c0_277 = arith.constant 0 : index
    %710 = vector.load %arg14[%709, %c0_276, %c0_277] : memref<8x8x128xf32, #tpu.memory_space<vmem>>, vector<1x8x128xf32>
    %711 = vector.shape_cast %710 : vector<1x8x128xf32> to vector<8x128xf32>
    %712 = vector.shape_cast %708 : vector<8x128xf32> to vector<1x8x128xf32>
    tpu.vector_store %arg14[%709, %c0_276, %c0_277], %712 {strides = array<i32>} : memref<8x8x128xf32, #tpu.memory_space<vmem>>, vector<1x8x128xf32>,
    %c3_i32_278 = arith.constant 3 : i32
    %713 = arith.index_cast %c3_i32_278 : i32 to index
    %c0_279 = arith.constant 0 : index
    %c0_280 = arith.constant 0 : index
    %714 = vector.load %arg15[%713, %c0_279, %c0_280] : memref<8x8x128xf32, #tpu.memory_space<vmem>>, vector<1x8x128xf32>
    %715 = vector.shape_cast %714 : vector<1x8x128xf32> to vector<8x128xf32>
    %cst_281 = arith.constant dense<0.000000e+00> : vector<8x128xf32>
    %716 = tpu.matmul %715, %664, %cst_281 {dimension_numbers = #tpu.dot_dimension_numbers<[1], [0], [0], [1], [0, 0, 1, 1], [], []>} : vector<8x128xf32>, vector<128x128xf32>, vector<8x128xf32> -> vector<8x128xf32>
    %cst_282 = arith.constant dense<0.000000e+00> : vector<8x128xf32>
    %717 = tpu.matmul %708, %666, %cst_282 {dimension_numbers = #tpu.dot_dimension_numbers<[1], [0], [0], [1], [0, 0, 1, 1], [], []>} : vector<8x128xf32>, vector<128x128xf32>, vector<8x128xf32> -> vector<8x128xf32>
    %718 = arith.addf %716, %717 : vector<8x128xf32>
    %719 = vector.broadcast %671 : vector<1x128xf32> to vector<8x128xf32>
    %720 = arith.addf %718, %719 : vector<8x128xf32>
    %721 = math.tanh %720 : vector<8x128xf32>
    %722 = arith.index_cast %c3_i32_278 : i32 to index
    %c0_283 = arith.constant 0 : index
    %c0_284 = arith.constant 0 : index
    %723 = vector.load %arg14[%722, %c0_283, %c0_284] : memref<8x8x128xf32, #tpu.memory_space<vmem>>, vector<1x8x128xf32>
    %724 = vector.shape_cast %723 : vector<1x8x128xf32> to vector<8x128xf32>
    %725 = vector.shape_cast %721 : vector<8x128xf32> to vector<1x8x128xf32>
    tpu.vector_store %arg14[%722, %c0_283, %c0_284], %725 {strides = array<i32>} : memref<8x8x128xf32, #tpu.memory_space<vmem>>, vector<1x8x128xf32>,
    %c4_i32_285 = arith.constant 4 : i32
    %726 = arith.index_cast %c4_i32_285 : i32 to index
    %c0_286 = arith.constant 0 : index
    %c0_287 = arith.constant 0 : index
    %727 = vector.load %arg15[%726, %c0_286, %c0_287] : memref<8x8x128xf32, #tpu.memory_space<vmem>>, vector<1x8x128xf32>
    %728 = vector.shape_cast %727 : vector<1x8x128xf32> to vector<8x128xf32>
    %cst_288 = arith.constant dense<0.000000e+00> : vector<8x128xf32>
    %729 = tpu.matmul %728, %664, %cst_288 {dimension_numbers = #tpu.dot_dimension_numbers<[1], [0], [0], [1], [0, 0, 1, 1], [], []>} : vector<8x128xf32>, vector<128x128xf32>, vector<8x128xf32> -> vector<8x128xf32>
    %cst_289 = arith.constant dense<0.000000e+00> : vector<8x128xf32>
    %730 = tpu.matmul %721, %666, %cst_289 {dimension_numbers = #tpu.dot_dimension_numbers<[1], [0], [0], [1], [0, 0, 1, 1], [], []>} : vector<8x128xf32>, vector<128x128xf32>, vector<8x128xf32> -> vector<8x128xf32>
    %731 = arith.addf %729, %730 : vector<8x128xf32>
    %732 = vector.broadcast %671 : vector<1x128xf32> to vector<8x128xf32>
    %733 = arith.addf %731, %732 : vector<8x128xf32>
    %734 = math.tanh %733 : vector<8x128xf32>
    %735 = arith.index_cast %c4_i32_285 : i32 to index
    %c0_290 = arith.constant 0 : index
    %c0_291 = arith.constant 0 : index
    %736 = vector.load %arg14[%735, %c0_290, %c0_291] : memref<8x8x128xf32, #tpu.memory_space<vmem>>, vector<1x8x128xf32>
    %737 = vector.shape_cast %736 : vector<1x8x128xf32> to vector<8x128xf32>
    %738 = vector.shape_cast %734 : vector<8x128xf32> to vector<1x8x128xf32>
    tpu.vector_store %arg14[%735, %c0_290, %c0_291], %738 {strides = array<i32>} : memref<8x8x128xf32, #tpu.memory_space<vmem>>, vector<1x8x128xf32>,
    %c5_i32_292 = arith.constant 5 : i32
    %739 = arith.index_cast %c5_i32_292 : i32 to index
    %c0_293 = arith.constant 0 : index
    %c0_294 = arith.constant 0 : index
    %740 = vector.load %arg15[%739, %c0_293, %c0_294] : memref<8x8x128xf32, #tpu.memory_space<vmem>>, vector<1x8x128xf32>
    %741 = vector.shape_cast %740 : vector<1x8x128xf32> to vector<8x128xf32>
    %cst_295 = arith.constant dense<0.000000e+00> : vector<8x128xf32>
    %742 = tpu.matmul %741, %664, %cst_295 {dimension_numbers = #tpu.dot_dimension_numbers<[1], [0], [0], [1], [0, 0, 1, 1], [], []>} : vector<8x128xf32>, vector<128x128xf32>, vector<8x128xf32> -> vector<8x128xf32>
    %cst_296 = arith.constant dense<0.000000e+00> : vector<8x128xf32>
    %743 = tpu.matmul %734, %666, %cst_296 {dimension_numbers = #tpu.dot_dimension_numbers<[1], [0], [0], [1], [0, 0, 1, 1], [], []>} : vector<8x128xf32>, vector<128x128xf32>, vector<8x128xf32> -> vector<8x128xf32>
    %744 = arith.addf %742, %743 : vector<8x128xf32>
    %745 = vector.broadcast %671 : vector<1x128xf32> to vector<8x128xf32>
    %746 = arith.addf %744, %745 : vector<8x128xf32>
    %747 = math.tanh %746 : vector<8x128xf32>
    %748 = arith.index_cast %c5_i32_292 : i32 to index
    %c0_297 = arith.constant 0 : index
    %c0_298 = arith.constant 0 : index
    %749 = vector.load %arg14[%748, %c0_297, %c0_298] : memref<8x8x128xf32, #tpu.memory_space<vmem>>, vector<1x8x128xf32>
    %750 = vector.shape_cast %749 : vector<1x8x128xf32> to vector<8x128xf32>
    %751 = vector.shape_cast %747 : vector<8x128xf32> to vector<1x8x128xf32>
    tpu.vector_store %arg14[%748, %c0_297, %c0_298], %751 {strides = array<i32>} : memref<8x8x128xf32, #tpu.memory_space<vmem>>, vector<1x8x128xf32>,
    %c6_i32_299 = arith.constant 6 : i32
    %752 = arith.index_cast %c6_i32_299 : i32 to index
    %c0_300 = arith.constant 0 : index
    %c0_301 = arith.constant 0 : index
    %753 = vector.load %arg15[%752, %c0_300, %c0_301] : memref<8x8x128xf32, #tpu.memory_space<vmem>>, vector<1x8x128xf32>
    %754 = vector.shape_cast %753 : vector<1x8x128xf32> to vector<8x128xf32>
    %cst_302 = arith.constant dense<0.000000e+00> : vector<8x128xf32>
    %755 = tpu.matmul %754, %664, %cst_302 {dimension_numbers = #tpu.dot_dimension_numbers<[1], [0], [0], [1], [0, 0, 1, 1], [], []>} : vector<8x128xf32>, vector<128x128xf32>, vector<8x128xf32> -> vector<8x128xf32>
    %cst_303 = arith.constant dense<0.000000e+00> : vector<8x128xf32>
    %756 = tpu.matmul %747, %666, %cst_303 {dimension_numbers = #tpu.dot_dimension_numbers<[1], [0], [0], [1], [0, 0, 1, 1], [], []>} : vector<8x128xf32>, vector<128x128xf32>, vector<8x128xf32> -> vector<8x128xf32>
    %757 = arith.addf %755, %756 : vector<8x128xf32>
    %758 = vector.broadcast %671 : vector<1x128xf32> to vector<8x128xf32>
    %759 = arith.addf %757, %758 : vector<8x128xf32>
    %760 = math.tanh %759 : vector<8x128xf32>
    %761 = arith.index_cast %c6_i32_299 : i32 to index
    %c0_304 = arith.constant 0 : index
    %c0_305 = arith.constant 0 : index
    %762 = vector.load %arg14[%761, %c0_304, %c0_305] : memref<8x8x128xf32, #tpu.memory_space<vmem>>, vector<1x8x128xf32>
    %763 = vector.shape_cast %762 : vector<1x8x128xf32> to vector<8x128xf32>
    %764 = vector.shape_cast %760 : vector<8x128xf32> to vector<1x8x128xf32>
    tpu.vector_store %arg14[%761, %c0_304, %c0_305], %764 {strides = array<i32>} : memref<8x8x128xf32, #tpu.memory_space<vmem>>, vector<1x8x128xf32>,
    %c7_i32_306 = arith.constant 7 : i32
    %765 = arith.index_cast %c7_i32_306 : i32 to index
    %c0_307 = arith.constant 0 : index
    %c0_308 = arith.constant 0 : index
    %766 = vector.load %arg15[%765, %c0_307, %c0_308] : memref<8x8x128xf32, #tpu.memory_space<vmem>>, vector<1x8x128xf32>
    %767 = vector.shape_cast %766 : vector<1x8x128xf32> to vector<8x128xf32>
    %cst_309 = arith.constant dense<0.000000e+00> : vector<8x128xf32>
    %768 = tpu.matmul %767, %664, %cst_309 {dimension_numbers = #tpu.dot_dimension_numbers<[1], [0], [0], [1], [0, 0, 1, 1], [], []>} : vector<8x128xf32>, vector<128x128xf32>, vector<8x128xf32> -> vector<8x128xf32>
    %cst_310 = arith.constant dense<0.000000e+00> : vector<8x128xf32>
    %769 = tpu.matmul %760, %666, %cst_310 {dimension_numbers = #tpu.dot_dimension_numbers<[1], [0], [0], [1], [0, 0, 1, 1], [], []>} : vector<8x128xf32>, vector<128x128xf32>, vector<8x128xf32> -> vector<8x128xf32>
    %770 = arith.addf %768, %769 : vector<8x128xf32>
    %771 = vector.broadcast %671 : vector<1x128xf32> to vector<8x128xf32>
    %772 = arith.addf %770, %771 : vector<8x128xf32>
    %773 = math.tanh %772 : vector<8x128xf32>
    %774 = arith.index_cast %c7_i32_306 : i32 to index
    %c0_311 = arith.constant 0 : index
    %c0_312 = arith.constant 0 : index
    %775 = vector.load %arg14[%774, %c0_311, %c0_312] : memref<8x8x128xf32, #tpu.memory_space<vmem>>, vector<1x8x128xf32>
    %776 = vector.shape_cast %775 : vector<1x8x128xf32> to vector<8x128xf32>
    %777 = vector.shape_cast %773 : vector<8x128xf32> to vector<1x8x128xf32>
    tpu.vector_store %arg14[%774, %c0_311, %c0_312], %777 {strides = array<i32>} : memref<8x8x128xf32, #tpu.memory_space<vmem>>, vector<1x8x128xf32>,
    %c8_i32_313 = arith.constant 8 : i32
    %c2_314 = arith.constant 2 : index
    %c0_315 = arith.constant 0 : index
    %c0_316 = arith.constant 0 : index
    %778 = vector.load %arg13[%c2_314, %c0_315, %c0_316] : memref<3x8x128xf32, #tpu.memory_space<vmem>>, vector<1x8x128xf32>
    %779 = vector.shape_cast %778 : vector<1x8x128xf32> to vector<8x128xf32>
    %780 = vector.shape_cast %773 : vector<8x128xf32> to vector<1x8x128xf32>
    tpu.vector_store %arg13[%c2_314, %c0_315, %c0_316], %780 {strides = array<i32>} : memref<3x8x128xf32, #tpu.memory_space<vmem>>, vector<1x8x128xf32>,
    %c0_317 = arith.constant 0 : index
    %c0_318 = arith.constant 0 : index
    %c0_319 = arith.constant 0 : index
    %781 = vector.load %arg14[%c0_317, %c0_318, %c0_319] : memref<8x8x128xf32, #tpu.memory_space<vmem>>, vector<8x8x128xf32>
    %782 = vector.shape_cast %781 : vector<8x8x128xf32> to vector<64x128xf32>
    %c0_320 = arith.constant 0 : index
    %c0_321 = arith.constant 0 : index
    %783 = vector.load %arg9[%c0_320, %c0_321] : memref<128x128xf32, #tpu.memory_space<vmem>>, vector<128x128xf32>
    %cst_322 = arith.constant dense<0.000000e+00> : vector<64x128xf32>
    %784 = tpu.matmul %782, %783, %cst_322 {dimension_numbers = #tpu.dot_dimension_numbers<[1], [0], [0], [1], [0, 0, 1, 1], [], []>} : vector<64x128xf32>, vector<128x128xf32>, vector<64x128xf32> -> vector<64x128xf32>
    %c0_323 = arith.constant 0 : index
    %c0_324 = arith.constant 0 : index
    %785 = vector.load %arg10[%c0_323, %c0_324] : memref<1x128xf32, #tpu.memory_space<vmem>>, vector<1x128xf32>
    %786 = vector.broadcast %785 : vector<1x128xf32> to vector<64x128xf32>
    %787 = arith.addf %784, %786 : vector<64x128xf32>
    %788 = vector.shape_cast %787 : vector<64x128xf32> to vector<8x8x128xf32>
    %c0_325 = arith.constant 0 : index
    %c0_326 = arith.constant 0 : index
    %c0_327 = arith.constant 0 : index
    %789 = vector.load %arg11[%c0_325, %c0_326, %c0_327] : memref<8x8x128xf32, #tpu.memory_space<vmem>>, vector<8x8x128xf32>
    tpu.vector_store %arg11[%c0_325, %c0_326, %c0_327], %788 {strides = array<i32>} : memref<8x8x128xf32, #tpu.memory_space<vmem>>, vector<8x8x128xf32>,
    %c0_328 = arith.constant 0 : index
    %c0_329 = arith.constant 0 : index
    %c0_330 = arith.constant 0 : index
    %790 = vector.load %arg13[%c0_328, %c0_329, %c0_330] : memref<3x8x128xf32, #tpu.memory_space<vmem>>, vector<3x8x128xf32>
    %c0_331 = arith.constant 0 : index
    %c0_332 = arith.constant 0 : index
    %c0_333 = arith.constant 0 : index
    %791 = vector.load %arg12[%c0_331, %c0_332, %c0_333] : memref<3x8x128xf32, #tpu.memory_space<vmem>>, vector<3x8x128xf32>
    tpu.vector_store %arg12[%c0_331, %c0_332, %c0_333], %790 {strides = array<i32>} : memref<3x8x128xf32, #tpu.memory_space<vmem>>, vector<3x8x128xf32>,
    return
  }
  func.func @transform_0(%arg0: i32, %arg1: i32) -> (i32, i32) {
    %c0_i32 = arith.constant 0 : i32
    %c0_i32_0 = arith.constant 0 : i32
    %c0_i32_1 = arith.constant 0 : i32
    return %c0_i32, %c0_i32_0 : i32, i32
  }
  func.func @transform_1(%arg0: i32, %arg1: i32) -> (i32, i32, i32) {
    %c0_i32 = arith.constant 0 : i32
    %c0_i32_0 = arith.constant 0 : i32
    %c0_i32_1 = arith.constant 0 : i32
    return %c0_i32, %arg0, %c0_i32_0 : i32, i32, i32
  }
  func.func @transform_2(%arg0: i32, %arg1: i32) -> (i32, i32) {
    %c0_i32 = arith.constant 0 : i32
    %c0_i32_0 = arith.constant 0 : i32
    %c0_i32_1 = arith.constant 0 : i32
    return %c0_i32, %c0_i32_0 : i32, i32
  }
  func.func @transform_3(%arg0: i32, %arg1: i32) -> (i32, i32, i32) {
    %c0_i32 = arith.constant 0 : i32
    %c0_i32_0 = arith.constant 0 : i32
    %c0_i32_1 = arith.constant 0 : i32
    %c0_i32_2 = arith.constant 0 : i32
    return %c0_i32, %c0_i32_0, %c0_i32_1 : i32, i32, i32
  }
  func.func @transform_4(%arg0: i32, %arg1: i32) -> (i32, i32, i32) {
    %c0_i32 = arith.constant 0 : i32
    %c0_i32_0 = arith.constant 0 : i32
    %c0_i32_1 = arith.constant 0 : i32
    %c0_i32_2 = arith.constant 0 : i32
    return %c0_i32, %c0_i32_0, %c0_i32_1 : i32, i32, i32
  }
  func.func @transform_5(%arg0: i32, %arg1: i32) -> (i32, i32, i32) {
    %c0_i32 = arith.constant 0 : i32
    %c0_i32_0 = arith.constant 0 : i32
    %c0_i32_1 = arith.constant 0 : i32
    %c0_i32_2 = arith.constant 0 : i32
    return %c0_i32, %c0_i32_0, %c0_i32_1 : i32, i32, i32
  }
  func.func @transform_6(%arg0: i32, %arg1: i32) -> (i32, i32, i32) {
    %c0_i32 = arith.constant 0 : i32
    %c0_i32_0 = arith.constant 0 : i32
    %c0_i32_1 = arith.constant 0 : i32
    %c0_i32_2 = arith.constant 0 : i32
    return %c0_i32, %c0_i32_0, %c0_i32_1 : i32, i32, i32
  }
  func.func @transform_7(%arg0: i32, %arg1: i32) -> (i32, i32) {
    %c0_i32 = arith.constant 0 : i32
    %c0_i32_0 = arith.constant 0 : i32
    %c0_i32_1 = arith.constant 0 : i32
    return %c0_i32, %c0_i32_0 : i32, i32
  }
  func.func @transform_8(%arg0: i32, %arg1: i32) -> (i32, i32) {
    %c0_i32 = arith.constant 0 : i32
    %c0_i32_0 = arith.constant 0 : i32
    %c0_i32_1 = arith.constant 0 : i32
    return %c0_i32, %c0_i32_0 : i32, i32
  }
  func.func @transform_9(%arg0: i32, %arg1: i32) -> (i32, i32, i32) {
    %c0_i32 = arith.constant 0 : i32
    %c0_i32_0 = arith.constant 0 : i32
    return %arg1, %arg0, %c0_i32 : i32, i32, i32
  }
  func.func @transform_10(%arg0: i32, %arg1: i32) -> (i32, i32, i32) {
    %c0_i32 = arith.constant 0 : i32
    %c0_i32_0 = arith.constant 0 : i32
    %c0_i32_1 = arith.constant 0 : i32
    return %c0_i32, %arg0, %c0_i32_0 : i32, i32, i32
  }
}

</mosaic_0001>

<llo_original>
// kernel: char_rnn_forward.1
$region0: #{char_rnn_forward.1}
  #allocation0 [shape = 'u32[]', space=smem, size = 0x4, offset = 0x4, fixed_abs, tag = 'smem constant byte address 0x4 - core index']
  #allocation1 [shape = 'u32[72,128]{1,0:T(1,128)}', space=vmem, size = 0x9000, scoped, tag = 'internal scratch']
  #allocation2 [shape = 'f32[3,8,128]{2,1,0:T(8,128)}', space=vmem, size = 0x3000, scoped, tag = 'scratch operand']
  #allocation3 [shape = 'f32[8,8,128]{2,1,0:T(8,128)}', space=vmem, size = 0x8000, scoped, tag = 'scratch operand']
  #allocation4 [shape = 'f32[8,8,128]{2,1,0:T(8,128)}', space=vmem, size = 0x8000, scoped, tag = 'scratch operand']
  %s0 = inlined_call_operand.vmem [shape: s32[8,8], index: 0, kind: input, shape index: {}]
  %s1 = inlined_call_operand.vmem [shape: f32[3,8,128], index: 1, kind: input, shape index: {}, may-alias: {1,10}]
  %s2 = inlined_call_operand.vmem [shape: f32[32,128], index: 2, kind: input, shape index: {}]
  %s3 = inlined_call_operand.vmem [shape: f32[2,128,128], index: 3, kind: input, shape index: {}]
  %s4 = inlined_call_operand.vmem [shape: f32[3,128,128], index: 4, kind: input, shape index: {}]
  %s5 = inlined_call_operand.vmem [shape: f32[3,1,128], index: 5, kind: input, shape index: {}]
  %s6 = inlined_call_operand.vmem [shape: f32[3,1,128], index: 6, kind: input, shape index: {}]
  %s7 = inlined_call_operand.vmem [shape: f32[128,128], index: 7, kind: input, shape index: {}]
  %s8 = inlined_call_operand.vmem [shape: f32[1,128], index: 8, kind: input, shape index: {}]
  %s9 = inlined_call_operand.vmem [shape: f32[8,8,128], index: 9, kind: output, shape index: {0}]
  %s10 = inlined_call_operand.vmem [shape: f32[3,8,128], index: 10, kind: output, shape index: {1}, may-alias: {1,10}]
  %11 = xla_tuple %s9, %s10
  %s12 = sld [smem:[#allocation0]]
  $region62: #{char_rnn_forward.1} parent=0
    _
  %s14 = ssub.s32 1, %s12
  %s15 = scalar_select 0, %s14, %s12
  $region1: #{char_rnn_forward.1} parent=0
    #allocation5 [shape = 'u8[4096]{0}', space=smem, size = 0x1000, scoped, tag = 'input window, operand 0, single buffered']
    #allocation6 [shape = 's32[1]{0}', space=sflag, size = 0x4, scoped, tag = 'scoped memory for char_rnn_forward.1']
    %16 = vsyncpa [#allocation6], 0
    // Predicated region
    $region2: #{char_rnn_forward.1} parent=1 // pred_check
      _
    $region3: #{char_rnn_forward.1} parent=1 // pred_check_branch
      %18 = sbr.rel (0) target = $region5
    $region4: #{char_rnn_forward.1} parent=1 // pred_region
      %20 = vsyncadd [#allocation6], 0
      %s22 = sshll.u32 %s0, 4
      %s23 = int_to_ptr.vmem [resolvable:$true] %s22
      %25 = dma.vmem_to_smem %s23, 128, [#allocation5], [#allocation6]
    $region5: #{char_rnn_forward.1} parent=1 // pred_fallthru
      _
    // Predicated region
    $region6: #{char_rnn_forward.1} parent=1 // pred_check
      _
    $region7: #{char_rnn_forward.1} parent=1 // pred_check_branch
      %27 = sbr.rel (0) target = $region9
    $region8: #{char_rnn_forward.1} parent=1 // pred_region
      _
    $region9: #{char_rnn_forward.1} parent=1 // pred_fallthru
      _
    // Predicated region
    $region10: #{char_rnn_forward.1} parent=1 // pred_check
      _
    $region11: #{char_rnn_forward.1} parent=1 // pred_check_branch
      %29 = sbr.rel (0) target = $region13
    $region12: #{char_rnn_forward.1} parent=1 // pred_region
      _
    $region13: #{char_rnn_forward.1} parent=1 // pred_fallthru
      _
    // Predicated region
    $region14: #{char_rnn_forward.1} parent=1 // pred_check
      _
    $region15: #{char_rnn_forward.1} parent=1 // pred_check_branch
      %31 = sbr.rel (0) target = $region17
    $region16: #{char_rnn_forward.1} parent=1 // pred_region
      _
    $region17: #{char_rnn_forward.1} parent=1 // pred_fallthru
      _
    // Predicated region
    $region18: #{char_rnn_forward.1} parent=1 // pred_check
      _
    $region19: #{char_rnn_forward.1} parent=1 // pred_check_branch
      %33 = sbr.rel (0) target = $region21
    $region20: #{char_rnn_forward.1} parent=1 // pred_region
      _
    $region21: #{char_rnn_forward.1} parent=1 // pred_fallthru
      _
    // Predicated region
    $region22: #{char_rnn_forward.1} parent=1 // pred_check
      _
    $region23: #{char_rnn_forward.1} parent=1 // pred_check_branch
      %35 = sbr.rel (0) target = $region25
    $region24: #{char_rnn_forward.1} parent=1 // pred_region
      _
    $region25: #{char_rnn_forward.1} parent=1 // pred_fallthru
      _
    // Predicated region
    $region26: #{char_rnn_forward.1} parent=1 // pred_check
      _
    $region27: #{char_rnn_forward.1} parent=1 // pred_check_branch
      %37 = sbr.rel (0) target = $region29
    $region28: #{char_rnn_forward.1} parent=1 // pred_region
      _
    $region29: #{char_rnn_forward.1} parent=1 // pred_fallthru
      _
    // Predicated region
    $region30: #{char_rnn_forward.1} parent=1 // pred_check
      _
    $region31: #{char_rnn_forward.1} parent=1 // pred_check_branch
      %39 = sbr.rel (0) target = $region33
    $region32: #{char_rnn_forward.1} parent=1 // pred_region
      _
    $region33: #{char_rnn_forward.1} parent=1 // pred_fallthru
      _
    // Predicated region
    $region34: #{char_rnn_forward.1} parent=1 // pred_check
      _
    $region35: #{char_rnn_forward.1} parent=1 // pred_check_branch
      %41 = sbr.rel (0) target = $region37
    $region36: #{char_rnn_forward.1} parent=1 // pred_region
      _
    $region37: #{char_rnn_forward.1} parent=1 // pred_fallthru
      _
    // Predicated region
    $region38: #{char_rnn_forward.1} parent=1 // pred_check
      _
    $region39: #{char_rnn_forward.1} parent=1 // pred_check_branch
      %43 = sbr.rel (0) target = $region41
    $region40: #{char_rnn_forward.1} parent=1 // pred_region
      %45 = dma.done [#allocation6], 128
    $region41: #{char_rnn_forward.1} parent=1 // pred_fallthru
      _
    %46 = sfence
    %p47 = scmp.eq.s32.totalorder 0, 0
    // Predicated region
    $region42: #{char_rnn_forward.1} parent=1 // pred_check
      %p48 = pneg %p47
    $region43: #{char_rnn_forward.1} parent=1 // pred_check_branch
      %50 = sbr.rel (%p48) target = $region45
    $region44: #{char_rnn_forward.1} parent=1 // pred_region
      %v51 = vld [vmem:[%s1] sm:$0xff]
      %v52 = vld [vmem:[%s1 + $0x8] sm:$0xff]
      %v53 = vld [vmem:[%s1 + $0x10] sm:$0xff]
      %54 = vst [vmem:[#allocation2] sm:$0xff] %v51
      %55 = vst [vmem:[#allocation2 + $0x8] sm:$0xff] %v52
      %56 = vst [vmem:[#allocation2 + $0x10] sm:$0xff] %v53
    $region45: #{char_rnn_forward.1} parent=1 // pred_fallthru
      _
    %s57 = smul.u32 0, 8
    %s58 = smul.u32 0, 8
    %v59 = vld [vmem:[%s4] sm:$0xff]
    %v60 = vld [vmem:[%s4 + $0x8] sm:$0xff]
    %v61 = vld [vmem:[%s4 + $0x10] sm:$0xff]
    %v62 = vld [vmem:[%s4 + $0x18] sm:$0xff]
    %v63 = vld [vmem:[%s4 + $0x20] sm:$0xff]
    %v64 = vld [vmem:[%s4 + $0x28] sm:$0xff]
    %v65 = vld [vmem:[%s4 + $0x30] sm:$0xff]
    %v66 = vld [vmem:[%s4 + $0x38] sm:$0xff]
    %v67 = vld [vmem:[%s4 + $0x40] sm:$0xff]
    %v68 = vld [vmem:[%s4 + $0x48] sm:$0xff]
    %v69 = vld [vmem:[%s4 + $0x50] sm:$0xff]
    %v70 = vld [vmem:[%s4 + $0x58] sm:$0xff]
    %v71 = vld [vmem:[%s4 + $0x60] sm:$0xff]
    %v72 = vld [vmem:[%s4 + $0x68] sm:$0xff]
    %v73 = vld [vmem:[%s4 + $0x70] sm:$0xff]
    %v74 = vld [vmem:[%s4 + $0x78] sm:$0xff]
    %v75 = vld [vmem:[%s5] sm:$0x1]
    %v76 = vld [vmem:[%s6] sm:$0x1]
    %v77 = vadd.f32 %v75, %v76
    %v78 = vld [vmem:[#allocation2] sm:$0xff]
    %s79 = sshra.s32 %s57, 7
    %s80 = sand.u32 %s57, 127
    %s81 = sadd.s32 %s79, %s58
    %s82 = smul.u32 %s81, 128
    %s83 = sshra.s32 %s57, 7
    %s84 = sand.u32 %s57, 127
    %s85 = sadd.s32 %s82, %s84
    %s86 = sld [smem:[#allocation5 + %s85]]
    %s87 = scalar_lea.vmem %s2, %s86
    %v88 = vld [vmem:[%s87] sm:$0x1]
    %s89 = sadd.s32 %s57, 1
    %s90 = sshra.s32 %s89, 7
    %s91 = sand.u32 %s89, 127
    %s92 = sadd.s32 %s90, %s58
    %s93 = smul.u32 %s92, 128
    %s94 = sshra.s32 %s89, 7
    %s95 = sand.u32 %s89, 127
    %s96 = sadd.s32 %s93, %s95
    %s97 = sld [smem:[#allocation5 + %s96]]
    %s98 = scalar_lea.vmem %s2, %s97
    %v99 = vld [vmem:[%s98] sm:$0x1]
    %s100 = sadd.s32 %s57, 2
    %s101 = sshra.s32 %s100, 7
    %s102 = sand.u32 %s100, 127
    %s103 = sadd.s32 %s101, %s58
    %s104 = smul.u32 %s103, 128
    %s105 = sshra.s32 %s100, 7
    %s106 = sand.u32 %s100, 127
    %s107 = sadd.s32 %s104, %s106
    %s108 = sld [smem:[#allocation5 + %s107]]
    %s109 = scalar_lea.vmem %s2, %s108
    %v110 = vld [vmem:[%s109] sm:$0x1]
    %s111 = sadd.s32 %s57, 3
    %s112 = sshra.s32 %s111, 7
    %s113 = sand.u32 %s111, 127
    %s114 = sadd.s32 %s112, %s58
    %s115 = smul.u32 %s114, 128
    %s116 = sshra.s32 %s111, 7
    %s117 = sand.u32 %s111, 127
    %s118 = sadd.s32 %s115, %s117
    %s119 = sld [smem:[#allocation5 + %s118]]
    %s120 = scalar_lea.vmem %s2, %s119
    %v121 = vld [vmem:[%s120] sm:$0x1]
    %s122 = sadd.s32 %s57, 4
    %s123 = sshra.s32 %s122, 7
    %s124 = sand.u32 %s122, 127
    %s125 = sadd.s32 %s123, %s58
    %s126 = smul.u32 %s125, 128
    %s127 = sshra.s32 %s122, 7
    %s128 = sand.u32 %s122, 127
    %s129 = sadd.s32 %s126, %s128
    %s130 = sld [smem:[#allocation5 + %s129]]
    %s131 = scalar_lea.vmem %s2, %s130
    %v132 = vld [vmem:[%s131] sm:$0x1]
    %s133 = sadd.s32 %s57, 5
    %s134 = sshra.s32 %s133, 7
    %s135 = sand.u32 %s133, 127
    %s136 = sadd.s32 %s134, %s58
    %s137 = smul.u32 %s136, 128
    %s138 = sshra.s32 %s133, 7
    %s139 = sand.u32 %s133, 127
    %s140 = sadd.s32 %s137, %s139
    %s141 = sld [smem:[#allocation5 + %s140]]
    %s142 = scalar_lea.vmem %s2, %s141
    %v143 = vld [vmem:[%s142] sm:$0x1]
    %s144 = sadd.s32 %s57, 6
    %s145 = sshra.s32 %s144, 7
    %s146 = sand.u32 %s144, 127
    %s147 = sadd.s32 %s145, %s58
    %s148 = smul.u32 %s147, 128
    %s149 = sshra.s32 %s144, 7
    %s150 = sand.u32 %s144, 127
    %s151 = sadd.s32 %s148, %s150
    %s152 = sld [smem:[#allocation5 + %s151]]
    %s153 = scalar_lea.vmem %s2, %s152
    %v154 = vld [vmem:[%s153] sm:$0x1]
    %s155 = sadd.s32 %s57, 7
    %s156 = sshra.s32 %s155, 7
    %s157 = sand.u32 %s155, 127
    %s158 = sadd.s32 %s156, %s58
    %s159 = smul.u32 %s158, 128
    %s160 = sshra.s32 %s155, 7
    %s161 = sand.u32 %s155, 127
    %s162 = sadd.s32 %s159, %s161
    %s163 = sld [smem:[#allocation5 + %s162]]
    %s164 = scalar_lea.vmem %s2, %s163
    %v165 = vld [vmem:[%s164] sm:$0x1]
    %v167 = vrot.slane %v99, 7
    %v170 = vrot.slane %v110, 6
    %v173 = vrot.slane %v121, 5
    %v176 = vrot.slane %v132, 4
    %v179 = vrot.slane %v143, 3
    %v182 = vrot.slane %v154, 2
    %v185 = vrot.slane %v165, 1
    %vm187 = vcmask 1040384
    %v188 = vsel %vm187, %v88, %v167
    %vm189 = vcmask 1041408
    %v190 = vsel %vm189, %v188, %v170
    %vm191 = vcmask 1042432
    %v192 = vsel %vm191, %v190, %v173
    %vm193 = vcmask 1043456
    %v194 = vsel %vm193, %v192, %v176
    %vm195 = vcmask 1044480
    %v196 = vsel %vm195, %v194, %v179
    %vm197 = vcmask 1045504
    %v198 = vsel %vm197, %v196, %v182
    %vm199 = vcmask 1046528
    %v200 = vsel %vm199, %v198, %v185
    %201 = vmatpush.msra.mxu0 %v74
    %202 = vmatpush.msra.mxu0 %v73
    %203 = vmatpush.msra.mxu0 %v72
    %204 = vmatpush.msra.mxu0 %v71
    %205 = vmatpush.msra.mxu0 %v70
    %206 = vmatpush.msra.mxu0 %v69
    %207 = vmatpush.msra.mxu0 %v68
    %208 = vmatpush.msra.mxu0 %v67
    %209 = vmatpush.msra.mxu0 %v66
    %210 = vmatpush.msra.mxu0 %v65
    %211 = vmatpush.msra.mxu0 %v64
    %212 = vmatpush.msra.mxu0 %v63
    %213 = vmatpush.msra.mxu0 %v62
    %214 = vmatpush.msra.mxu0 %v61
    %215 = vmatpush.msra.mxu0 %v60
    %216 = vmatpush.msra.mxu0 %v59
    %217 = vmatmul.f32.gmra.mxu0 %v78
    %v218 = vpop.f32.mrf.mxu0
    %v219 = vadd.f32 0.0, %v218
    %220 = vdwg.mxu0
    %v221 = vadd.f32 %v200, %v219
    %v223 = vperm.slane %v77, 0
    %v225 = vadd.f32 %v221, %v223
    %v226 = vtanh.pop %v225
    %227 = vst [vmem:[#allocation3] sm:$0xff] %v226
    %s228 = sadd.s32 %s58, 1
    %s229 = sadd.s32 %s79, %s228
    %s230 = smul.u32 %s229, 128
    %s231 = sadd.s32 %s230, %s84
    %s232 = sld [smem:[#allocation5 + %s231]]
    %s233 = scalar_lea.vmem %s2, %s232
    %v234 = vld [vmem:[%s233] sm:$0x1]
    %s235 = sadd.s32 %s90, %s228
    %s236 = smul.u32 %s235, 128
    %s237 = sadd.s32 %s236, %s95
    %s238 = sld [smem:[#allocation5 + %s237]]
    %s239 = scalar_lea.vmem %s2, %s238
    %v240 = vld [vmem:[%s239] sm:$0x1]
    %s241 = sadd.s32 %s101, %s228
    %s242 = smul.u32 %s241, 128
    %s243 = sadd.s32 %s242, %s106
    %s244 = sld [smem:[#allocation5 + %s243]]
    %s245 = scalar_lea.vmem %s2, %s244
    %v246 = vld [vmem:[%s245] sm:$0x1]
    %s247 = sadd.s32 %s112, %s228
    %s248 = smul.u32 %s247, 128
    %s249 = sadd.s32 %s248, %s117
    %s250 = sld [smem:[#allocation5 + %s249]]
    %s251 = scalar_lea.vmem %s2, %s250
    %v252 = vld [vmem:[%s251] sm:$0x1]
    %s253 = sadd.s32 %s123, %s228
    %s254 = smul.u32 %s253, 128
    %s255 = sadd.s32 %s254, %s128
    %s256 = sld [smem:[#allocation5 + %s255]]
    %s257 = scalar_lea.vmem %s2, %s256
    %v258 = vld [vmem:[%s257] sm:$0x1]
    %s259 = sadd.s32 %s134, %s228
    %s260 = smul.u32 %s259, 128
    %s261 = sadd.s32 %s260, %s139
    %s262 = sld [smem:[#allocation5 + %s261]]
    %s263 = scalar_lea.vmem %s2, %s262
    %v264 = vld [vmem:[%s263] sm:$0x1]
    %s265 = sadd.s32 %s145, %s228
    %s266 = smul.u32 %s265, 128
    %s267 = sadd.s32 %s266, %s150
    %s268 = sld [smem:[#allocation5 + %s267]]
    %s269 = scalar_lea.vmem %s2, %s268
    %v270 = vld [vmem:[%s269] sm:$0x1]
    %s271 = sadd.s32 %s156, %s228
    %s272 = smul.u32 %s271, 128
    %s273 = sadd.s32 %s272, %s161
    %s274 = sld [smem:[#allocation5 + %s273]]
    %s275 = scalar_lea.vmem %s2, %s274
    %v276 = vld [vmem:[%s275] sm:$0x1]
    %v278 = vrot.slane %v240, 7
    %v281 = vrot.slane %v246, 6
    %v284 = vrot.slane %v252, 5
    %v287 = vrot.slane %v258, 4
    %v290 = vrot.slane %v264, 3
    %v293 = vrot.slane %v270, 2
    %v296 = vrot.slane %v276, 1
    %v298 = vsel %vm187, %v234, %v278
    %v299 = vsel %vm189, %v298, %v281
    %v300 = vsel %vm191, %v299, %v284
    %v301 = vsel %vm193, %v300, %v287
    %v302 = vsel %vm195, %v301, %v290
    %v303 = vsel %vm197, %v302, %v293
    %v304 = vsel %vm199, %v303, %v296
    %305 = vmatpush.msra.mxu0 %v74
    %306 = vmatpush.msra.mxu0 %v73
    %307 = vmatpush.msra.mxu0 %v72
    %308 = vmatpush.msra.mxu0 %v71
    %309 = vmatpush.msra.mxu0 %v70
    %310 = vmatpush.msra.mxu0 %v69
    %311 = vmatpush.msra.mxu0 %v68
    %312 = vmatpush.msra.mxu0 %v67
    %313 = vmatpush.msra.mxu0 %v66
    %314 = vmatpush.msra.mxu0 %v65
    %315 = vmatpush.msra.mxu0 %v64
    %316 = vmatpush.msra.mxu0 %v63
    %317 = vmatpush.msra.mxu0 %v62
    %318 = vmatpush.msra.mxu0 %v61
    %319 = vmatpush.msra.mxu0 %v60
    %320 = vmatpush.msra.mxu0 %v59
    %321 = vmatmul.f32.gmra.mxu0 %v226
    %v322 = vpop.f32.mrf.mxu0
    %v323 = vadd.f32 0.0, %v322
    %324 = vdwg.mxu0
    %v325 = vadd.f32 %v304, %v323
    %v326 = vadd.f32 %v325, %v223
    %v327 = vtanh.pop %v326
    %s328 = scalar_lea.vmem [#allocation3], 8
    %329 = vst [vmem:[%s328] sm:$0xff] %v327
    %s330 = sadd.s32 %s58, 2
    %s331 = sadd.s32 %s79, %s330
    %s332 = smul.u32 %s331, 128
    %s333 = sadd.s32 %s332, %s84
    %s334 = sld [smem:[#allocation5 + %s333]]
    %s335 = scalar_lea.vmem %s2, %s334
    %v336 = vld [vmem:[%s335] sm:$0x1]
    %s337 = sadd.s32 %s90, %s330
    %s338 = smul.u32 %s337, 128
    %s339 = sadd.s32 %s338, %s95
    %s340 = sld [smem:[#allocation5 + %s339]]
    %s341 = scalar_lea.vmem %s2, %s340
    %v342 = vld [vmem:[%s341] sm:$0x1]
    %s343 = sadd.s32 %s101, %s330
    %s344 = smul.u32 %s343, 128
    %s345 = sadd.s32 %s344, %s106
    %s346 = sld [smem:[#allocation5 + %s345]]
    %s347 = scalar_lea.vmem %s2, %s346
    %v348 = vld [vmem:[%s347] sm:$0x1]
    %s349 = sadd.s32 %s112, %s330
    %s350 = smul.u32 %s349, 128
    %s351 = sadd.s32 %s350, %s117
    %s352 = sld [smem:[#allocation5 + %s351]]
    %s353 = scalar_lea.vmem %s2, %s352
    %v354 = vld [vmem:[%s353] sm:$0x1]
    %s355 = sadd.s32 %s123, %s330
    %s356 = smul.u32 %s355, 128
    %s357 = sadd.s32 %s356, %s128
    %s358 = sld [smem:[#allocation5 + %s357]]
    %s359 = scalar_lea.vmem %s2, %s358
    %v360 = vld [vmem:[%s359] sm:$0x1]
    %s361 = sadd.s32 %s134, %s330
    %s362 = smul.u32 %s361, 128
    %s363 = sadd.s32 %s362, %s139
    %s364 = sld [smem:[#allocation5 + %s363]]
    %s365 = scalar_lea.vmem %s2, %s364
    %v366 = vld [vmem:[%s365] sm:$0x1]
    %s367 = sadd.s32 %s145, %s330
    %s368 = smul.u32 %s367, 128
    %s369 = sadd.s32 %s368, %s150
    %s370 = sld [smem:[#allocation5 + %s369]]
    %s371 = scalar_lea.vmem %s2, %s370
    %v372 = vld [vmem:[%s371] sm:$0x1]
    %s373 = sadd.s32 %s156, %s330
    %s374 = smul.u32 %s373, 128
    %s375 = sadd.s32 %s374, %s161
    %s376 = sld [smem:[#allocation5 + %s375]]
    %s377 = scalar_lea.vmem %s2, %s376
    %v378 = vld [vmem:[%s377] sm:$0x1]
    %v380 = vrot.slane %v342, 7
    %v383 = vrot.slane %v348, 6
    %v386 = vrot.slane %v354, 5
    %v389 = vrot.slane %v360, 4
    %v392 = vrot.slane %v366, 3
    %v395 = vrot.slane %v372, 2
    %v398 = vrot.slane %v378, 1
    %v400 = vsel %vm187, %v336, %v380
    %v401 = vsel %vm189, %v400, %v383
    %v402 = vsel %vm191, %v401, %v386
    %v403 = vsel %vm193, %v402, %v389
    %v404 = vsel %vm195, %v403, %v392
    %v405 = vsel %vm197, %v404, %v395
    %v406 = vsel %vm199, %v405, %v398
    %407 = vmatpush.msra.mxu0 %v74
    %408 = vmatpush.msra.mxu0 %v73
    %409 = vmatpush.msra.mxu0 %v72
    %410 = vmatpush.msra.mxu0 %v71
    %411 = vmatpush.msra.mxu0 %v70
    %412 = vmatpush.msra.mxu0 %v69
    %413 = vmatpush.msra.mxu0 %v68
    %414 = vmatpush.msra.mxu0 %v67
    %415 = vmatpush.msra.mxu0 %v66
    %416 = vmatpush.msra.mxu0 %v65
    %417 = vmatpush.msra.mxu0 %v64
    %418 = vmatpush.msra.mxu0 %v63
    %419 = vmatpush.msra.mxu0 %v62
    %420 = vmatpush.msra.mxu0 %v61
    %421 = vmatpush.msra.mxu0 %v60
    %422 = vmatpush.msra.mxu0 %v59
    %423 = vmatmul.f32.gmra.mxu0 %v327
    %v424 = vpop.f32.mrf.mxu0
    %v425 = vadd.f32 0.0, %v424
    %426 = vdwg.mxu0
    %v427 = vadd.f32 %v406, %v425
    %v428 = vadd.f32 %v427, %v223
    %v429 = vtanh.pop %v428
    %s430 = scalar_lea.vmem [#allocation3], 16
    %431 = vst [vmem:[%s430] sm:$0xff] %v429
    %s432 = sadd.s32 %s58, 3
    %s433 = sadd.s32 %s79, %s432
    %s434 = smul.u32 %s433, 128
    %s435 = sadd.s32 %s434, %s84
    %s436 = sld [smem:[#allocation5 + %s435]]
    %s437 = scalar_lea.vmem %s2, %s436
    %v438 = vld [vmem:[%s437] sm:$0x1]
    %s439 = sadd.s32 %s90, %s432
    %s440 = smul.u32 %s439, 128
    %s441 = sadd.s32 %s440, %s95
    %s442 = sld [smem:[#allocation5 + %s441]]
    %s443 = scalar_lea.vmem %s2, %s442
    %v444 = vld [vmem:[%s443] sm:$0x1]
    %s445 = sadd.s32 %s101, %s432
    %s446 = smul.u32 %s445, 128
    %s447 = sadd.s32 %s446, %s106
    %s448 = sld [smem:[#allocation5 + %s447]]
    %s449 = scalar_lea.vmem %s2, %s448
    %v450 = vld [vmem:[%s449] sm:$0x1]
    %s451 = sadd.s32 %s112, %s432
    %s452 = smul.u32 %s451, 128
    %s453 = sadd.s32 %s452, %s117
    %s454 = sld [smem:[#allocation5 + %s453]]
    %s455 = scalar_lea.vmem %s2, %s454
    %v456 = vld [vmem:[%s455] sm:$0x1]
    %s457 = sadd.s32 %s123, %s432
    %s458 = smul.u32 %s457, 128
    %s459 = sadd.s32 %s458, %s128
    %s460 = sld [smem:[#allocation5 + %s459]]
    %s461 = scalar_lea.vmem %s2, %s460
    %v462 = vld [vmem:[%s461] sm:$0x1]
    %s463 = sadd.s32 %s134, %s432
    %s464 = smul.u32 %s463, 128
    %s465 = sadd.s32 %s464, %s139
    %s466 = sld [smem:[#allocation5 + %s465]]
    %s467 = scalar_lea.vmem %s2, %s466
    %v468 = vld [vmem:[%s467] sm:$0x1]
    %s469 = sadd.s32 %s145, %s432
    %s470 = smul.u32 %s469, 128
    %s471 = sadd.s32 %s470, %s150
    %s472 = sld [smem:[#allocation5 + %s471]]
    %s473 = scalar_lea.vmem %s2, %s472
    %v474 = vld [vmem:[%s473] sm:$0x1]
    %s475 = sadd.s32 %s156, %s432
    %s476 = smul.u32 %s475, 128
    %s477 = sadd.s32 %s476, %s161
    %s478 = sld [smem:[#allocation5 + %s477]]
    %s479 = scalar_lea.vmem %s2, %s478
    %v480 = vld [vmem:[%s479] sm:$0x1]
    %v482 = vrot.slane %v444, 7
    %v485 = vrot.slane %v450, 6
    %v488 = vrot.slane %v456, 5
    %v491 = vrot.slane %v462, 4
    %v494 = vrot.slane %v468, 3
    %v497 = vrot.slane %v474, 2
    %v500 = vrot.slane %v480, 1
    %v502 = vsel %vm187, %v438, %v482
    %v503 = vsel %vm189, %v502, %v485
    %v504 = vsel %vm191, %v503, %v488
    %v505 = vsel %vm193, %v504, %v491
    %v506 = vsel %vm195, %v505, %v494
    %v507 = vsel %vm197, %v506, %v497
    %v508 = vsel %vm199, %v507, %v500
    %509 = vmatpush.msra.mxu0 %v74
    %510 = vmatpush.msra.mxu0 %v73
    %511 = vmatpush.msra.mxu0 %v72
    %512 = vmatpush.msra.mxu0 %v71
    %513 = vmatpush.msra.mxu0 %v70
    %514 = vmatpush.msra.mxu0 %v69
    %515 = vmatpush.msra.mxu0 %v68
    %516 = vmatpush.msra.mxu0 %v67
    %517 = vmatpush.msra.mxu0 %v66
    %518 = vmatpush.msra.mxu0 %v65
    %519 = vmatpush.msra.mxu0 %v64
    %520 = vmatpush.msra.mxu0 %v63
    %521 = vmatpush.msra.mxu0 %v62
    %522 = vmatpush.msra.mxu0 %v61
    %523 = vmatpush.msra.mxu0 %v60
    %524 = vmatpush.msra.mxu0 %v59
    %525 = vmatmul.f32.gmra.mxu0 %v429
    %v526 = vpop.f32.mrf.mxu0
    %v527 = vadd.f32 0.0, %v526
    %528 = vdwg.mxu0
    %v529 = vadd.f32 %v508, %v527
    %v530 = vadd.f32 %v529, %v223
    %v531 = vtanh.pop %v530
    %s532 = scalar_lea.vmem [#allocation3], 24
    %533 = vst [vmem:[%s532] sm:$0xff] %v531
    %s534 = sadd.s32 %s58, 4
    %s535 = sadd.s32 %s79, %s534
    %s536 = smul.u32 %s535, 128
    %s537 = sadd.s32 %s536, %s84
    %s538 = sld [smem:[#allocation5 + %s537]]
    %s539 = scalar_lea.vmem %s2, %s538
    %v540 = vld [vmem:[%s539] sm:$0x1]
    %s541 = sadd.s32 %s90, %s534
    %s542 = smul.u32 %s541, 128
    %s543 = sadd.s32 %s542, %s95
    %s544 = sld [smem:[#allocation5 + %s543]]
    %s545 = scalar_lea.vmem %s2, %s544
    %v546 = vld [vmem:[%s545] sm:$0x1]
    %s547 = sadd.s32 %s101, %s534
    %s548 = smul.u32 %s547, 128
    %s549 = sadd.s32 %s548, %s106
    %s550 = sld [smem:[#allocation5 + %s549]]
    %s551 = scalar_lea.vmem %s2, %s550
    %v552 = vld [vmem:[%s551] sm:$0x1]
    %s553 = sadd.s32 %s112, %s534
    %s554 = smul.u32 %s553, 128
    %s555 = sadd.s32 %s554, %s117
    %s556 = sld [smem:[#allocation5 + %s555]]
    %s557 = scalar_lea.vmem %s2, %s556
    %v558 = vld [vmem:[%s557] sm:$0x1]
    %s559 = sadd.s32 %s123, %s534
    %s560 = smul.u32 %s559, 128
    %s561 = sadd.s32 %s560, %s128
    %s562 = sld [smem:[#allocation5 + %s561]]
    %s563 = scalar_lea.vmem %s2, %s562
    %v564 = vld [vmem:[%s563] sm:$0x1]
    %s565 = sadd.s32 %s134, %s534
    %s566 = smul.u32 %s565, 128
    %s567 = sadd.s32 %s566, %s139
    %s568 = sld [smem:[#allocation5 + %s567]]
    %s569 = scalar_lea.vmem %s2, %s568
    %v570 = vld [vmem:[%s569] sm:$0x1]
    %s571 = sadd.s32 %s145, %s534
    %s572 = smul.u32 %s571, 128
    %s573 = sadd.s32 %s572, %s150
    %s574 = sld [smem:[#allocation5 + %s573]]
    %s575 = scalar_lea.vmem %s2, %s574
    %v576 = vld [vmem:[%s575] sm:$0x1]
    %s577 = sadd.s32 %s156, %s534
    %s578 = smul.u32 %s577, 128
    %s579 = sadd.s32 %s578, %s161
    %s580 = sld [smem:[#allocation5 + %s579]]
    %s581 = scalar_lea.vmem %s2, %s580
    %v582 = vld [vmem:[%s581] sm:$0x1]
    %v584 = vrot.slane %v546, 7
    %v587 = vrot.slane %v552, 6
    %v590 = vrot.slane %v558, 5
    %v593 = vrot.slane %v564, 4
    %v596 = vrot.slane %v570, 3
    %v599 = vrot.slane %v576, 2
    %v602 = vrot.slane %v582, 1
    %v604 = vsel %vm187, %v540, %v584
    %v605 = vsel %vm189, %v604, %v587
    %v606 = vsel %vm191, %v605, %v590
    %v607 = vsel %vm193, %v606, %v593
    %v608 = vsel %vm195, %v607, %v596
    %v609 = vsel %vm197, %v608, %v599
    %v610 = vsel %vm199, %v609, %v602
    %611 = vmatpush.msra.mxu0 %v74
    %612 = vmatpush.msra.mxu0 %v73
    %613 = vmatpush.msra.mxu0 %v72
    %614 = vmatpush.msra.mxu0 %v71
    %615 = vmatpush.msra.mxu0 %v70
    %616 = vmatpush.msra.mxu0 %v69
    %617 = vmatpush.msra.mxu0 %v68
    %618 = vmatpush.msra.mxu0 %v67
    %619 = vmatpush.msra.mxu0 %v66
    %620 = vmatpush.msra.mxu0 %v65
    %621 = vmatpush.msra.mxu0 %v64
    %622 = vmatpush.msra.mxu0 %v63
    %623 = vmatpush.msra.mxu0 %v62
    %624 = vmatpush.msra.mxu0 %v61
    %625 = vmatpush.msra.mxu0 %v60
    %626 = vmatpush.msra.mxu0 %v59
    %627 = vmatmul.f32.gmra.mxu0 %v531
    %v628 = vpop.f32.mrf.mxu0
    %v629 = vadd.f32 0.0, %v628
    %630 = vdwg.mxu0
    %v631 = vadd.f32 %v610, %v629
    %v632 = vadd.f32 %v631, %v223
    %v633 = vtanh.pop %v632
    %s634 = scalar_lea.vmem [#allocation3], 32
    %635 = vst [vmem:[%s634] sm:$0xff] %v633
    %s636 = sadd.s32 %s58, 5
    %s637 = sadd.s32 %s79, %s636
    %s638 = smul.u32 %s637, 128
    %s639 = sadd.s32 %s638, %s84
    %s640 = sld [smem:[#allocation5 + %s639]]
    %s641 = scalar_lea.vmem %s2, %s640
    %v642 = vld [vmem:[%s641] sm:$0x1]
    %s643 = sadd.s32 %s90, %s636
    %s644 = smul.u32 %s643, 128
    %s645 = sadd.s32 %s644, %s95
    %s646 = sld [smem:[#allocation5 + %s645]]
    %s647 = scalar_lea.vmem %s2, %s646
    %v648 = vld [vmem:[%s647] sm:$0x1]
    %s649 = sadd.s32 %s101, %s636
    %s650 = smul.u32 %s649, 128
    %s651 = sadd.s32 %s650, %s106
    %s652 = sld [smem:[#allocation5 + %s651]]
    %s653 = scalar_lea.vmem %s2, %s652
    %v654 = vld [vmem:[%s653] sm:$0x1]
    %s655 = sadd.s32 %s112, %s636
    %s656 = smul.u32 %s655, 128
    %s657 = sadd.s32 %s656, %s117
    %s658 = sld [smem:[#allocation5 + %s657]]
    %s659 = scalar_lea.vmem %s2, %s658
    %v660 = vld [vmem:[%s659] sm:$0x1]
    %s661 = sadd.s32 %s123, %s636
    %s662 = smul.u32 %s661, 128
    %s663 = sadd.s32 %s662, %s128
    %s664 = sld [smem:[#allocation5 + %s663]]
    %s665 = scalar_lea.vmem %s2, %s664
    %v666 = vld [vmem:[%s665] sm:$0x1]
    %s667 = sadd.s32 %s134, %s636
    %s668 = smul.u32 %s667, 128
    %s669 = sadd.s32 %s668, %s139
    %s670 = sld [smem:[#allocation5 + %s669]]
    %s671 = scalar_lea.vmem %s2, %s670
    %v672 = vld [vmem:[%s671] sm:$0x1]
    %s673 = sadd.s32 %s145, %s636
    %s674 = smul.u32 %s673, 128
    %s675 = sadd.s32 %s674, %s150
    %s676 = sld [smem:[#allocation5 + %s675]]
    %s677 = scalar_lea.vmem %s2, %s676
    %v678 = vld [vmem:[%s677] sm:$0x1]
    %s679 = sadd.s32 %s156, %s636
    %s680 = smul.u32 %s679, 128
    %s681 = sadd.s32 %s680, %s161
    %s682 = sld [smem:[#allocation5 + %s681]]
    %s683 = scalar_lea.vmem %s2, %s682
    %v684 = vld [vmem:[%s683] sm:$0x1]
    %v686 = vrot.slane %v648, 7
    %v689 = vrot.slane %v654, 6
    %v692 = vrot.slane %v660, 5
    %v695 = vrot.slane %v666, 4
    %v698 = vrot.slane %v672, 3
    %v701 = vrot.slane %v678, 2
    %v704 = vrot.slane %v684, 1
    %v706 = vsel %vm187, %v642, %v686
    %v707 = vsel %vm189, %v706, %v689
    %v708 = vsel %vm191, %v707, %v692
    %v709 = vsel %vm193, %v708, %v695
    %v710 = vsel %vm195, %v709, %v698
    %v711 = vsel %vm197, %v710, %v701
    %v712 = vsel %vm199, %v711, %v704
    %713 = vmatpush.msra.mxu0 %v74
    %714 = vmatpush.msra.mxu0 %v73
    %715 = vmatpush.msra.mxu0 %v72
    %716 = vmatpush.msra.mxu0 %v71
    %717 = vmatpush.msra.mxu0 %v70
    %718 = vmatpush.msra.mxu0 %v69
    %719 = vmatpush.msra.mxu0 %v68
    %720 = vmatpush.msra.mxu0 %v67
    %721 = vmatpush.msra.mxu0 %v66
    %722 = vmatpush.msra.mxu0 %v65
    %723 = vmatpush.msra.mxu0 %v64
    %724 = vmatpush.msra.mxu0 %v63
    %725 = vmatpush.msra.mxu0 %v62
    %726 = vmatpush.msra.mxu0 %v61
    %727 = vmatpush.msra.mxu0 %v60
    %728 = vmatpush.msra.mxu0 %v59
    %729 = vmatmul.f32.gmra.mxu0 %v633
    %v730 = vpop.f32.mrf.mxu0
    %v731 = vadd.f32 0.0, %v730
    %732 = vdwg.mxu0
    %v733 = vadd.f32 %v712, %v731
    %v734 = vadd.f32 %v733, %v223
    %v735 = vtanh.pop %v734
    %s736 = scalar_lea.vmem [#allocation3], 40
    %737 = vst [vmem:[%s736] sm:$0xff] %v735
    %s738 = sadd.s32 %s58, 6
    %s739 = sadd.s32 %s79, %s738
    %s740 = smul.u32 %s739, 128
    %s741 = sadd.s32 %s740, %s84
    %s742 = sld [smem:[#allocation5 + %s741]]
    %s743 = scalar_lea.vmem %s2, %s742
    %v744 = vld [vmem:[%s743] sm:$0x1]
    %s745 = sadd.s32 %s90, %s738
    %s746 = smul.u32 %s745, 128
    %s747 = sadd.s32 %s746, %s95
    %s748 = sld [smem:[#allocation5 + %s747]]
    %s749 = scalar_lea.vmem %s2, %s748
    %v750 = vld [vmem:[%s749] sm:$0x1]
    %s751 = sadd.s32 %s101, %s738
    %s752 = smul.u32 %s751, 128
    %s753 = sadd.s32 %s752, %s106
    %s754 = sld [smem:[#allocation5 + %s753]]
    %s755 = scalar_lea.vmem %s2, %s754
    %v756 = vld [vmem:[%s755] sm:$0x1]
    %s757 = sadd.s32 %s112, %s738
    %s758 = smul.u32 %s757, 128
    %s759 = sadd.s32 %s758, %s117
    %s760 = sld [smem:[#allocation5 + %s759]]
    %s761 = scalar_lea.vmem %s2, %s760
    %v762 = vld [vmem:[%s761] sm:$0x1]
    %s763 = sadd.s32 %s123, %s738
    %s764 = smul.u32 %s763, 128
    %s765 = sadd.s32 %s764, %s128
    %s766 = sld [smem:[#allocation5 + %s765]]
    %s767 = scalar_lea.vmem %s2, %s766
    %v768 = vld [vmem:[%s767] sm:$0x1]
    %s769 = sadd.s32 %s134, %s738
    %s770 = smul.u32 %s769, 128
    %s771 = sadd.s32 %s770, %s139
    %s772 = sld [smem:[#allocation5 + %s771]]
    %s773 = scalar_lea.vmem %s2, %s772
    %v774 = vld [vmem:[%s773] sm:$0x1]
    %s775 = sadd.s32 %s145, %s738
    %s776 = smul.u32 %s775, 128
    %s777 = sadd.s32 %s776, %s150
    %s778 = sld [smem:[#allocation5 + %s777]]
    %s779 = scalar_lea.vmem %s2, %s778
    %v780 = vld [vmem:[%s779] sm:$0x1]
    %s781 = sadd.s32 %s156, %s738
    %s782 = smul.u32 %s781, 128
    %s783 = sadd.s32 %s782, %s161
    %s784 = sld [smem:[#allocation5 + %s783]]
    %s785 = scalar_lea.vmem %s2, %s784
    %v786 = vld [vmem:[%s785] sm:$0x1]
    %v788 = vrot.slane %v750, 7
    %v791 = vrot.slane %v756, 6
    %v794 = vrot.slane %v762, 5
    %v797 = vrot.slane %v768, 4
    %v800 = vrot.slane %v774, 3
    %v803 = vrot.slane %v780, 2
    %v806 = vrot.slane %v786, 1
    %v808 = vsel %vm187, %v744, %v788
    %v809 = vsel %vm189, %v808, %v791
    %v810 = vsel %vm191, %v809, %v794
    %v811 = vsel %vm193, %v810, %v797
    %v812 = vsel %vm195, %v811, %v800
    %v813 = vsel %vm197, %v812, %v803
    %v814 = vsel %vm199, %v813, %v806
    %815 = vmatpush.msra.mxu0 %v74
    %816 = vmatpush.msra.mxu0 %v73
    %817 = vmatpush.msra.mxu0 %v72
    %818 = vmatpush.msra.mxu0 %v71
    %819 = vmatpush.msra.mxu0 %v70
    %820 = vmatpush.msra.mxu0 %v69
    %821 = vmatpush.msra.mxu0 %v68
    %822 = vmatpush.msra.mxu0 %v67
    %823 = vmatpush.msra.mxu0 %v66
    %824 = vmatpush.msra.mxu0 %v65
    %825 = vmatpush.msra.mxu0 %v64
    %826 = vmatpush.msra.mxu0 %v63
    %827 = vmatpush.msra.mxu0 %v62
    %828 = vmatpush.msra.mxu0 %v61
    %829 = vmatpush.msra.mxu0 %v60
    %830 = vmatpush.msra.mxu0 %v59
    %831 = vmatmul.f32.gmra.mxu0 %v735
    %v832 = vpop.f32.mrf.mxu0
    %v833 = vadd.f32 0.0, %v832
    %834 = vdwg.mxu0
    %v835 = vadd.f32 %v814, %v833
    %v836 = vadd.f32 %v835, %v223
    %v837 = vtanh.pop %v836
    %s838 = scalar_lea.vmem [#allocation3], 48
    %839 = vst [vmem:[%s838] sm:$0xff] %v837
    %s840 = sadd.s32 %s58, 7
    %s841 = sadd.s32 %s79, %s840
    %s842 = smul.u32 %s841, 128
    %s843 = sadd.s32 %s842, %s84
    %s844 = sld [smem:[#allocation5 + %s843]]
    %s845 = scalar_lea.vmem %s2, %s844
    %v846 = vld [vmem:[%s845] sm:$0x1]
    %s847 = sadd.s32 %s90, %s840
    %s848 = smul.u32 %s847, 128
    %s849 = sadd.s32 %s848, %s95
    %s850 = sld [smem:[#allocation5 + %s849]]
    %s851 = scalar_lea.vmem %s2, %s850
    %v852 = vld [vmem:[%s851] sm:$0x1]
    %s853 = sadd.s32 %s101, %s840
    %s854 = smul.u32 %s853, 128
    %s855 = sadd.s32 %s854, %s106
    %s856 = sld [smem:[#allocation5 + %s855]]
    %s857 = scalar_lea.vmem %s2, %s856
    %v858 = vld [vmem:[%s857] sm:$0x1]
    %s859 = sadd.s32 %s112, %s840
    %s860 = smul.u32 %s859, 128
    %s861 = sadd.s32 %s860, %s117
    %s862 = sld [smem:[#allocation5 + %s861]]
    %s863 = scalar_lea.vmem %s2, %s862
    %v864 = vld [vmem:[%s863] sm:$0x1]
    %s865 = sadd.s32 %s123, %s840
    %s866 = smul.u32 %s865, 128
    %s867 = sadd.s32 %s866, %s128
    %s868 = sld [smem:[#allocation5 + %s867]]
    %s869 = scalar_lea.vmem %s2, %s868
    %v870 = vld [vmem:[%s869] sm:$0x1]
    %s871 = sadd.s32 %s134, %s840
    %s872 = smul.u32 %s871, 128
    %s873 = sadd.s32 %s872, %s139
    %s874 = sld [smem:[#allocation5 + %s873]]
    %s875 = scalar_lea.vmem %s2, %s874
    %v876 = vld [vmem:[%s875] sm:$0x1]
    %s877 = sadd.s32 %s145, %s840
    %s878 = smul.u32 %s877, 128
    %s879 = sadd.s32 %s878, %s150
    %s880 = sld [smem:[#allocation5 + %s879]]
    %s881 = scalar_lea.vmem %s2, %s880
    %v882 = vld [vmem:[%s881] sm:$0x1]
    %s883 = sadd.s32 %s156, %s840
    %s884 = smul.u32 %s883, 128
    %s885 = sadd.s32 %s884, %s161
    %s886 = sld [smem:[#allocation5 + %s885]]
    %s887 = scalar_lea.vmem %s2, %s886
    %v888 = vld [vmem:[%s887] sm:$0x1]
    %v890 = vrot.slane %v852, 7
    %v893 = vrot.slane %v858, 6
    %v896 = vrot.slane %v864, 5
    %v899 = vrot.slane %v870, 4
    %v902 = vrot.slane %v876, 3
    %v905 = vrot.slane %v882, 2
    %v908 = vrot.slane %v888, 1
    %v910 = vsel %vm187, %v846, %v890
    %v911 = vsel %vm189, %v910, %v893
    %v912 = vsel %vm191, %v911, %v896
    %v913 = vsel %vm193, %v912, %v899
    %v914 = vsel %vm195, %v913, %v902
    %v915 = vsel %vm197, %v914, %v905
    %v916 = vsel %vm199, %v915, %v908
    %917 = vmatpush.msra.mxu0 %v74
    %918 = vmatpush.msra.mxu0 %v73
    %919 = vmatpush.msra.mxu0 %v72
    %920 = vmatpush.msra.mxu0 %v71
    %921 = vmatpush.msra.mxu0 %v70
    %922 = vmatpush.msra.mxu0 %v69
    %923 = vmatpush.msra.mxu0 %v68
    %924 = vmatpush.msra.mxu0 %v67
    %925 = vmatpush.msra.mxu0 %v66
    %926 = vmatpush.msra.mxu0 %v65
    %927 = vmatpush.msra.mxu0 %v64
    %928 = vmatpush.msra.mxu0 %v63
    %929 = vmatpush.msra.mxu0 %v62
    %930 = vmatpush.msra.mxu0 %v61
    %931 = vmatpush.msra.mxu0 %v60
    %932 = vmatpush.msra.mxu0 %v59
    %933 = vmatmul.f32.gmra.mxu0 %v837
    %v934 = vpop.f32.mrf.mxu0
    %v935 = vadd.f32 0.0, %v934
    %936 = vdwg.mxu0
    %v937 = vadd.f32 %v916, %v935
    %v938 = vadd.f32 %v937, %v223
    %v939 = vtanh.pop %v938
    %s940 = scalar_lea.vmem [#allocation3], 56
    %941 = vst [vmem:[%s940] sm:$0xff] %v939
    %942 = vst [vmem:[#allocation2] sm:$0xff] %v939
    %v943 = vld [vmem:[%s3] sm:$0xff]
    %v944 = vld [vmem:[%s3 + $0x8] sm:$0xff]
    %v945 = vld [vmem:[%s3 + $0x10] sm:$0xff]
    %v946 = vld [vmem:[%s3 + $0x18] sm:$0xff]
    %v947 = vld [vmem:[%s3 + $0x20] sm:$0xff]
    %v948 = vld [vmem:[%s3 + $0x28] sm:$0xff]
    %v949 = vld [vmem:[%s3 + $0x30] sm:$0xff]
    %v950 = vld [vmem:[%s3 + $0x38] sm:$0xff]
    %v951 = vld [vmem:[%s3 + $0x40] sm:$0xff]
    %v952 = vld [vmem:[%s3 + $0x48] sm:$0xff]
    %v953 = vld [vmem:[%s3 + $0x50] sm:$0xff]
    %v954 = vld [vmem:[%s3 + $0x58] sm:$0xff]
    %v955 = vld [vmem:[%s3 + $0x60] sm:$0xff]
    %v956 = vld [vmem:[%s3 + $0x68] sm:$0xff]
    %v957 = vld [vmem:[%s3 + $0x70] sm:$0xff]
    %v958 = vld [vmem:[%s3 + $0x78] sm:$0xff]
    %s959 = scalar_lea.vmem %s4, 128
    %v960 = vld [vmem:[%s959] sm:$0xff]
    %v961 = vld [vmem:[%s959 + $0x8] sm:$0xff]
    %v962 = vld [vmem:[%s959 + $0x10] sm:$0xff]
    %v963 = vld [vmem:[%s959 + $0x18] sm:$0xff]
    %v964 = vld [vmem:[%s959 + $0x20] sm:$0xff]
    %v965 = vld [vmem:[%s959 + $0x28] sm:$0xff]
    %v966 = vld [vmem:[%s959 + $0x30] sm:$0xff]
    %v967 = vld [vmem:[%s959 + $0x38] sm:$0xff]
    %v968 = vld [vmem:[%s959 + $0x40] sm:$0xff]
    %v969 = vld [vmem:[%s959 + $0x48] sm:$0xff]
    %v970 = vld [vmem:[%s959 + $0x50] sm:$0xff]
    %v971 = vld [vmem:[%s959 + $0x58] sm:$0xff]
    %v972 = vld [vmem:[%s959 + $0x60] sm:$0xff]
    %v973 = vld [vmem:[%s959 + $0x68] sm:$0xff]
    %v974 = vld [vmem:[%s959 + $0x70] sm:$0xff]
    %v975 = vld [vmem:[%s959 + $0x78] sm:$0xff]
    %s976 = scalar_lea.vmem %s5, 1
    %v977 = vld [vmem:[%s976] sm:$0x1]
    %s978 = scalar_lea.vmem %s6, 1
    %v979 = vld [vmem:[%s978] sm:$0x1]
    %v980 = vadd.f32 %v977, %v979
    %s981 = scalar_lea.vmem [#allocation2], 8
    %v982 = vld [vmem:[%s981] sm:$0xff]
    %v983 = vld [vmem:[#allocation3] sm:$0xff]
    %984 = vmatpush.msra.mxu0 %v975
    %985 = vmatpush.msra.mxu0 %v974
    %986 = vmatpush.msra.mxu0 %v973
    %987 = vmatpush.msra.mxu0 %v972
    %988 = vmatpush.msra.mxu0 %v971
    %989 = vmatpush.msra.mxu0 %v970
    %990 = vmatpush.msra.mxu0 %v969
    %991 = vmatpush.msra.mxu0 %v968
    %992 = vmatpush.msra.mxu0 %v967
    %993 = vmatpush.msra.mxu0 %v966
    %994 = vmatpush.msra.mxu0 %v965
    %995 = vmatpush.msra.mxu0 %v964
    %996 = vmatpush.msra.mxu0 %v963
    %997 = vmatpush.msra.mxu0 %v962
    %998 = vmatpush.msra.mxu0 %v961
    %999 = vmatpush.msra.mxu0 %v960
    %1000 = vmatmul.f32.gmra.mxu0 %v982
    %v1001 = vpop.f32.mrf.mxu0
    %v1002 = vadd.f32 0.0, %v1001
    %1003 = vdwg.mxu0
    %1004 = vmatpush.msra.mxu0 %v958
    %1005 = vmatpush.msra.mxu0 %v957
    %1006 = vmatpush.msra.mxu0 %v956
    %1007 = vmatpush.msra.mxu0 %v955
    %1008 = vmatpush.msra.mxu0 %v954
    %1009 = vmatpush.msra.mxu0 %v953
    %1010 = vmatpush.msra.mxu0 %v952
    %1011 = vmatpush.msra.mxu0 %v951
    %1012 = vmatpush.msra.mxu0 %v950
    %1013 = vmatpush.msra.mxu0 %v949
    %1014 = vmatpush.msra.mxu0 %v948
    %1015 = vmatpush.msra.mxu0 %v947
    %1016 = vmatpush.msra.mxu0 %v946
    %1017 = vmatpush.msra.mxu0 %v945
    %1018 = vmatpush.msra.mxu0 %v944
    %1019 = vmatpush.msra.mxu0 %v943
    %1020 = vmatmul.f32.gmra.mxu0 %v983
    %v1021 = vpop.f32.mrf.mxu0
    %v1022 = vadd.f32 %v1002, %v1021
    %1023 = vdwg.mxu0
    %v1025 = vperm.slane %v980, 0
    %v1027 = vadd.f32 %v1022, %v1025
    %v1028 = vtanh.pop %v1027
    %1029 = vst [vmem:[#allocation4] sm:$0xff] %v1028
    %v1030 = vld [vmem:[%s328] sm:$0xff]
    %1031 = vmatpush.msra.mxu0 %v975
    %1032 = vmatpush.msra.mxu0 %v974
    %1033 = vmatpush.msra.mxu0 %v973
    %1034 = vmatpush.msra.mxu0 %v972
    %1035 = vmatpush.msra.mxu0 %v971
    %1036 = vmatpush.msra.mxu0 %v970
    %1037 = vmatpush.msra.mxu0 %v969
    %1038 = vmatpush.msra.mxu0 %v968
    %1039 = vmatpush.msra.mxu0 %v967
    %1040 = vmatpush.msra.mxu0 %v966
    %1041 = vmatpush.msra.mxu0 %v965
    %1042 = vmatpush.msra.mxu0 %v964
    %1043 = vmatpush.msra.mxu0 %v963
    %1044 = vmatpush.msra.mxu0 %v962
    %1045 = vmatpush.msra.mxu0 %v961
    %1046 = vmatpush.msra.mxu0 %v960
    %1047 = vmatmul.f32.gmra.mxu0 %v1028
    %v1048 = vpop.f32.mrf.mxu0
    %v1049 = vadd.f32 0.0, %v1048
    %1050 = vdwg.mxu0
    %1051 = vmatpush.msra.mxu0 %v958
    %1052 = vmatpush.msra.mxu0 %v957
    %1053 = vmatpush.msra.mxu0 %v956
    %1054 = vmatpush.msra.mxu0 %v955
    %1055 = vmatpush.msra.mxu0 %v954
    %1056 = vmatpush.msra.mxu0 %v953
    %1057 = vmatpush.msra.mxu0 %v952
    %1058 = vmatpush.msra.mxu0 %v951
    %1059 = vmatpush.msra.mxu0 %v950
    %1060 = vmatpush.msra.mxu0 %v949
    %1061 = vmatpush.msra.mxu0 %v948
    %1062 = vmatpush.msra.mxu0 %v947
    %1063 = vmatpush.msra.mxu0 %v946
    %1064 = vmatpush.msra.mxu0 %v945
    %1065 = vmatpush.msra.mxu0 %v944
    %1066 = vmatpush.msra.mxu0 %v943
    %1067 = vmatmul.f32.gmra.mxu0 %v1030
    %v1068 = vpop.f32.mrf.mxu0
    %v1069 = vadd.f32 %v1049, %v1068
    %1070 = vdwg.mxu0
    %v1071 = vadd.f32 %v1069, %v1025
    %v1072 = vtanh.pop %v1071
    %s1073 = scalar_lea.vmem [#allocation4], 8
    %1074 = vst [vmem:[%s1073] sm:$0xff] %v1072
    %v1075 = vld [vmem:[%s430] sm:$0xff]
    %1076 = vmatpush.msra.mxu0 %v975
    %1077 = vmatpush.msra.mxu0 %v974
    %1078 = vmatpush.msra.mxu0 %v973
    %1079 = vmatpush.msra.mxu0 %v972
    %1080 = vmatpush.msra.mxu0 %v971
    %1081 = vmatpush.msra.mxu0 %v970
    %1082 = vmatpush.msra.mxu0 %v969
    %1083 = vmatpush.msra.mxu0 %v968
    %1084 = vmatpush.msra.mxu0 %v967
    %1085 = vmatpush.msra.mxu0 %v966
    %1086 = vmatpush.msra.mxu0 %v965
    %1087 = vmatpush.msra.mxu0 %v964
    %1088 = vmatpush.msra.mxu0 %v963
    %1089 = vmatpush.msra.mxu0 %v962
    %1090 = vmatpush.msra.mxu0 %v961
    %1091 = vmatpush.msra.mxu0 %v960
    %1092 = vmatmul.f32.gmra.mxu0 %v1072
    %v1093 = vpop.f32.mrf.mxu0
    %v1094 = vadd.f32 0.0, %v1093
    %1095 = vdwg.mxu0
    %1096 = vmatpush.msra.mxu0 %v958
    %1097 = vmatpush.msra.mxu0 %v957
    %1098 = vmatpush.msra.mxu0 %v956
    %1099 = vmatpush.msra.mxu0 %v955
    %1100 = vmatpush.msra.mxu0 %v954
    %1101 = vmatpush.msra.mxu0 %v953
    %1102 = vmatpush.msra.mxu0 %v952
    %1103 = vmatpush.msra.mxu0 %v951
    %1104 = vmatpush.msra.mxu0 %v950
    %1105 = vmatpush.msra.mxu0 %v949
    %1106 = vmatpush.msra.mxu0 %v948
    %1107 = vmatpush.msra.mxu0 %v947
    %1108 = vmatpush.msra.mxu0 %v946
    %1109 = vmatpush.msra.mxu0 %v945
    %1110 = vmatpush.msra.mxu0 %v944
    %1111 = vmatpush.msra.mxu0 %v943
    %1112 = vmatmul.f32.gmra.mxu0 %v1075
    %v1113 = vpop.f32.mrf.mxu0
    %v1114 = vadd.f32 %v1094, %v1113
    %1115 = vdwg.mxu0
    %v1116 = vadd.f32 %v1114, %v1025
    %v1117 = vtanh.pop %v1116
    %s1118 = scalar_lea.vmem [#allocation4], 16
    %1119 = vst [vmem:[%s1118] sm:$0xff] %v1117
    %v1120 = vld [vmem:[%s532] sm:$0xff]
    %1121 = vmatpush.msra.mxu0 %v975
    %1122 = vmatpush.msra.mxu0 %v974
    %1123 = vmatpush.msra.mxu0 %v973
    %1124 = vmatpush.msra.mxu0 %v972
    %1125 = vmatpush.msra.mxu0 %v971
    %1126 = vmatpush.msra.mxu0 %v970
    %1127 = vmatpush.msra.mxu0 %v969
    %1128 = vmatpush.msra.mxu0 %v968
    %1129 = vmatpush.msra.mxu0 %v967
    %1130 = vmatpush.msra.mxu0 %v966
    %1131 = vmatpush.msra.mxu0 %v965
    %1132 = vmatpush.msra.mxu0 %v964
    %1133 = vmatpush.msra.mxu0 %v963
    %1134 = vmatpush.msra.mxu0 %v962
    %1135 = vmatpush.msra.mxu0 %v961
    %1136 = vmatpush.msra.mxu0 %v960
    %1137 = vmatmul.f32.gmra.mxu0 %v1117
    %v1138 = vpop.f32.mrf.mxu0
    %v1139 = vadd.f32 0.0, %v1138
    %1140 = vdwg.mxu0
    %1141 = vmatpush.msra.mxu0 %v958
    %1142 = vmatpush.msra.mxu0 %v957
    %1143 = vmatpush.msra.mxu0 %v956
    %1144 = vmatpush.msra.mxu0 %v955
    %1145 = vmatpush.msra.mxu0 %v954
    %1146 = vmatpush.msra.mxu0 %v953
    %1147 = vmatpush.msra.mxu0 %v952
    %1148 = vmatpush.msra.mxu0 %v951
    %1149 = vmatpush.msra.mxu0 %v950
    %1150 = vmatpush.msra.mxu0 %v949
    %1151 = vmatpush.msra.mxu0 %v948
    %1152 = vmatpush.msra.mxu0 %v947
    %1153 = vmatpush.msra.mxu0 %v946
    %1154 = vmatpush.msra.mxu0 %v945
    %1155 = vmatpush.msra.mxu0 %v944
    %1156 = vmatpush.msra.mxu0 %v943
    %1157 = vmatmul.f32.gmra.mxu0 %v1120
    %v1158 = vpop.f32.mrf.mxu0
    %v1159 = vadd.f32 %v1139, %v1158
    %1160 = vdwg.mxu0
    %v1161 = vadd.f32 %v1159, %v1025
    %v1162 = vtanh.pop %v1161
    %s1163 = scalar_lea.vmem [#allocation4], 24
    %1164 = vst [vmem:[%s1163] sm:$0xff] %v1162
    %v1165 = vld [vmem:[%s634] sm:$0xff]
    %1166 = vmatpush.msra.mxu0 %v975
    %1167 = vmatpush.msra.mxu0 %v974
    %1168 = vmatpush.msra.mxu0 %v973
    %1169 = vmatpush.msra.mxu0 %v972
    %1170 = vmatpush.msra.mxu0 %v971
    %1171 = vmatpush.msra.mxu0 %v970
    %1172 = vmatpush.msra.mxu0 %v969
    %1173 = vmatpush.msra.mxu0 %v968
    %1174 = vmatpush.msra.mxu0 %v967
    %1175 = vmatpush.msra.mxu0 %v966
    %1176 = vmatpush.msra.mxu0 %v965
    %1177 = vmatpush.msra.mxu0 %v964
    %1178 = vmatpush.msra.mxu0 %v963
    %1179 = vmatpush.msra.mxu0 %v962
    %1180 = vmatpush.msra.mxu0 %v961
    %1181 = vmatpush.msra.mxu0 %v960
    %1182 = vmatmul.f32.gmra.mxu0 %v1162
    %v1183 = vpop.f32.mrf.mxu0
    %v1184 = vadd.f32 0.0, %v1183
    %1185 = vdwg.mxu0
    %1186 = vmatpush.msra.mxu0 %v958
    %1187 = vmatpush.msra.mxu0 %v957
    %1188 = vmatpush.msra.mxu0 %v956
    %1189 = vmatpush.msra.mxu0 %v955
    %1190 = vmatpush.msra.mxu0 %v954
    %1191 = vmatpush.msra.mxu0 %v953
    %1192 = vmatpush.msra.mxu0 %v952
    %1193 = vmatpush.msra.mxu0 %v951
    %1194 = vmatpush.msra.mxu0 %v950
    %1195 = vmatpush.msra.mxu0 %v949
    %1196 = vmatpush.msra.mxu0 %v948
    %1197 = vmatpush.msra.mxu0 %v947
    %1198 = vmatpush.msra.mxu0 %v946
    %1199 = vmatpush.msra.mxu0 %v945
    %1200 = vmatpush.msra.mxu0 %v944
    %1201 = vmatpush.msra.mxu0 %v943
    %1202 = vmatmul.f32.gmra.mxu0 %v1165
    %v1203 = vpop.f32.mrf.mxu0
    %v1204 = vadd.f32 %v1184, %v1203
    %1205 = vdwg.mxu0
    %v1206 = vadd.f32 %v1204, %v1025
    %v1207 = vtanh.pop %v1206
    %s1208 = scalar_lea.vmem [#allocation4], 32
    %1209 = vst [vmem:[%s1208] sm:$0xff] %v1207
    %v1210 = vld [vmem:[%s736] sm:$0xff]
    %1211 = vmatpush.msra.mxu0 %v975
    %1212 = vmatpush.msra.mxu0 %v974
    %1213 = vmatpush.msra.mxu0 %v973
    %1214 = vmatpush.msra.mxu0 %v972
    %1215 = vmatpush.msra.mxu0 %v971
    %1216 = vmatpush.msra.mxu0 %v970
    %1217 = vmatpush.msra.mxu0 %v969
    %1218 = vmatpush.msra.mxu0 %v968
    %1219 = vmatpush.msra.mxu0 %v967
    %1220 = vmatpush.msra.mxu0 %v966
    %1221 = vmatpush.msra.mxu0 %v965
    %1222 = vmatpush.msra.mxu0 %v964
    %1223 = vmatpush.msra.mxu0 %v963
    %1224 = vmatpush.msra.mxu0 %v962
    %1225 = vmatpush.msra.mxu0 %v961
    %1226 = vmatpush.msra.mxu0 %v960
    %1227 = vmatmul.f32.gmra.mxu0 %v1207
    %v1228 = vpop.f32.mrf.mxu0
    %v1229 = vadd.f32 0.0, %v1228
    %1230 = vdwg.mxu0
    %1231 = vmatpush.msra.mxu0 %v958
    %1232 = vmatpush.msra.mxu0 %v957
    %1233 = vmatpush.msra.mxu0 %v956
    %1234 = vmatpush.msra.mxu0 %v955
    %1235 = vmatpush.msra.mxu0 %v954
    %1236 = vmatpush.msra.mxu0 %v953
    %1237 = vmatpush.msra.mxu0 %v952
    %1238 = vmatpush.msra.mxu0 %v951
    %1239 = vmatpush.msra.mxu0 %v950
    %1240 = vmatpush.msra.mxu0 %v949
    %1241 = vmatpush.msra.mxu0 %v948
    %1242 = vmatpush.msra.mxu0 %v947
    %1243 = vmatpush.msra.mxu0 %v946
    %1244 = vmatpush.msra.mxu0 %v945
    %1245 = vmatpush.msra.mxu0 %v944
    %1246 = vmatpush.msra.mxu0 %v943
    %1247 = vmatmul.f32.gmra.mxu0 %v1210
    %v1248 = vpop.f32.mrf.mxu0
    %v1249 = vadd.f32 %v1229, %v1248
    %1250 = vdwg.mxu0
    %v1251 = vadd.f32 %v1249, %v1025
    %v1252 = vtanh.pop %v1251
    %s1253 = scalar_lea.vmem [#allocation4], 40
    %1254 = vst [vmem:[%s1253] sm:$0xff] %v1252
    %v1255 = vld [vmem:[%s838] sm:$0xff]
    %1256 = vmatpush.msra.mxu0 %v975
    %1257 = vmatpush.msra.mxu0 %v974
    %1258 = vmatpush.msra.mxu0 %v973
    %1259 = vmatpush.msra.mxu0 %v972
    %1260 = vmatpush.msra.mxu0 %v971
    %1261 = vmatpush.msra.mxu0 %v970
    %1262 = vmatpush.msra.mxu0 %v969
    %1263 = vmatpush.msra.mxu0 %v968
    %1264 = vmatpush.msra.mxu0 %v967
    %1265 = vmatpush.msra.mxu0 %v966
    %1266 = vmatpush.msra.mxu0 %v965
    %1267 = vmatpush.msra.mxu0 %v964
    %1268 = vmatpush.msra.mxu0 %v963
    %1269 = vmatpush.msra.mxu0 %v962
    %1270 = vmatpush.msra.mxu0 %v961
    %1271 = vmatpush.msra.mxu0 %v960
    %1272 = vmatmul.f32.gmra.mxu0 %v1252
    %v1273 = vpop.f32.mrf.mxu0
    %v1274 = vadd.f32 0.0, %v1273
    %1275 = vdwg.mxu0
    %1276 = vmatpush.msra.mxu0 %v958
    %1277 = vmatpush.msra.mxu0 %v957
    %1278 = vmatpush.msra.mxu0 %v956
    %1279 = vmatpush.msra.mxu0 %v955
    %1280 = vmatpush.msra.mxu0 %v954
    %1281 = vmatpush.msra.mxu0 %v953
    %1282 = vmatpush.msra.mxu0 %v952
    %1283 = vmatpush.msra.mxu0 %v951
    %1284 = vmatpush.msra.mxu0 %v950
    %1285 = vmatpush.msra.mxu0 %v949
    %1286 = vmatpush.msra.mxu0 %v948
    %1287 = vmatpush.msra.mxu0 %v947
    %1288 = vmatpush.msra.mxu0 %v946
    %1289 = vmatpush.msra.mxu0 %v945
    %1290 = vmatpush.msra.mxu0 %v944
    %1291 = vmatpush.msra.mxu0 %v943
    %1292 = vmatmul.f32.gmra.mxu0 %v1255
    %v1293 = vpop.f32.mrf.mxu0
    %v1294 = vadd.f32 %v1274, %v1293
    %1295 = vdwg.mxu0
    %v1296 = vadd.f32 %v1294, %v1025
    %v1297 = vtanh.pop %v1296
    %s1298 = scalar_lea.vmem [#allocation4], 48
    %1299 = vst [vmem:[%s1298] sm:$0xff] %v1297
    %v1300 = vld [vmem:[%s940] sm:$0xff]
    %1301 = vmatpush.msra.mxu0 %v975
    %1302 = vmatpush.msra.mxu0 %v974
    %1303 = vmatpush.msra.mxu0 %v973
    %1304 = vmatpush.msra.mxu0 %v972
    %1305 = vmatpush.msra.mxu0 %v971
    %1306 = vmatpush.msra.mxu0 %v970
    %1307 = vmatpush.msra.mxu0 %v969
    %1308 = vmatpush.msra.mxu0 %v968
    %1309 = vmatpush.msra.mxu0 %v967
    %1310 = vmatpush.msra.mxu0 %v966
    %1311 = vmatpush.msra.mxu0 %v965
    %1312 = vmatpush.msra.mxu0 %v964
    %1313 = vmatpush.msra.mxu0 %v963
    %1314 = vmatpush.msra.mxu0 %v962
    %1315 = vmatpush.msra.mxu0 %v961
    %1316 = vmatpush.msra.mxu0 %v960
    %1317 = vmatmul.f32.gmra.mxu0 %v1297
    %v1318 = vpop.f32.mrf.mxu0
    %v1319 = vadd.f32 0.0, %v1318
    %1320 = vdwg.mxu0
    %1321 = vmatpush.msra.mxu0 %v958
    %1322 = vmatpush.msra.mxu0 %v957
    %1323 = vmatpush.msra.mxu0 %v956
    %1324 = vmatpush.msra.mxu0 %v955
    %1325 = vmatpush.msra.mxu0 %v954
    %1326 = vmatpush.msra.mxu0 %v953
    %1327 = vmatpush.msra.mxu0 %v952
    %1328 = vmatpush.msra.mxu0 %v951
    %1329 = vmatpush.msra.mxu0 %v950
    %1330 = vmatpush.msra.mxu0 %v949
    %1331 = vmatpush.msra.mxu0 %v948
    %1332 = vmatpush.msra.mxu0 %v947
    %1333 = vmatpush.msra.mxu0 %v946
    %1334 = vmatpush.msra.mxu0 %v945
    %1335 = vmatpush.msra.mxu0 %v944
    %1336 = vmatpush.msra.mxu0 %v943
    %1337 = vmatmul.f32.gmra.mxu0 %v1300
    %v1338 = vpop.f32.mrf.mxu0
    %v1339 = vadd.f32 %v1319, %v1338
    %1340 = vdwg.mxu0
    %v1341 = vadd.f32 %v1339, %v1025
    %v1342 = vtanh.pop %v1341
    %s1343 = scalar_lea.vmem [#allocation4], 56
    %1344 = vst [vmem:[%s1343] sm:$0xff] %v1342
    %1345 = vst [vmem:[%s981] sm:$0xff] %v1342
    %s1346 = scalar_lea.vmem %s3, 128
    %v1347 = vld [vmem:[%s1346] sm:$0xff]
    %v1348 = vld [vmem:[%s1346 + $0x8] sm:$0xff]
    %v1349 = vld [vmem:[%s1346 + $0x10] sm:$0xff]
    %v1350 = vld [vmem:[%s1346 + $0x18] sm:$0xff]
    %v1351 = vld [vmem:[%s1346 + $0x20] sm:$0xff]
    %v1352 = vld [vmem:[%s1346 + $0x28] sm:$0xff]
    %v1353 = vld [vmem:[%s1346 + $0x30] sm:$0xff]
    %v1354 = vld [vmem:[%s1346 + $0x38] sm:$0xff]
    %v1355 = vld [vmem:[%s1346 + $0x40] sm:$0xff]
    %v1356 = vld [vmem:[%s1346 + $0x48] sm:$0xff]
    %v1357 = vld [vmem:[%s1346 + $0x50] sm:$0xff]
    %v1358 = vld [vmem:[%s1346 + $0x58] sm:$0xff]
    %v1359 = vld [vmem:[%s1346 + $0x60] sm:$0xff]
    %v1360 = vld [vmem:[%s1346 + $0x68] sm:$0xff]
    %v1361 = vld [vmem:[%s1346 + $0x70] sm:$0xff]
    %v1362 = vld [vmem:[%s1346 + $0x78] sm:$0xff]
    %s1363 = scalar_lea.vmem %s4, 256
    %v1364 = vld [vmem:[%s1363] sm:$0xff]
    %v1365 = vld [vmem:[%s1363 + $0x8] sm:$0xff]
    %v1366 = vld [vmem:[%s1363 + $0x10] sm:$0xff]
    %v1367 = vld [vmem:[%s1363 + $0x18] sm:$0xff]
    %v1368 = vld [vmem:[%s1363 + $0x20] sm:$0xff]
    %v1369 = vld [vmem:[%s1363 + $0x28] sm:$0xff]
    %v1370 = vld [vmem:[%s1363 + $0x30] sm:$0xff]
    %v1371 = vld [vmem:[%s1363 + $0x38] sm:$0xff]
    %v1372 = vld [vmem:[%s1363 + $0x40] sm:$0xff]
    %v1373 = vld [vmem:[%s1363 + $0x48] sm:$0xff]
    %v1374 = vld [vmem:[%s1363 + $0x50] sm:$0xff]
    %v1375 = vld [vmem:[%s1363 + $0x58] sm:$0xff]
    %v1376 = vld [vmem:[%s1363 + $0x60] sm:$0xff]
    %v1377 = vld [vmem:[%s1363 + $0x68] sm:$0xff]
    %v1378 = vld [vmem:[%s1363 + $0x70] sm:$0xff]
    %v1379 = vld [vmem:[%s1363 + $0x78] sm:$0xff]
    %s1380 = scalar_lea.vmem %s5, 2
    %v1381 = vld [vmem:[%s1380] sm:$0x1]
    %s1382 = scalar_lea.vmem %s6, 2
    %v1383 = vld [vmem:[%s1382] sm:$0x1]
    %v1384 = vadd.f32 %v1381, %v1383
    %s1385 = scalar_lea.vmem [#allocation2], 16
    %v1386 = vld [vmem:[%s1385] sm:$0xff]
    %v1387 = vld [vmem:[#allocation4] sm:$0xff]
    %1388 = vmatpush.msra.mxu0 %v1379
    %1389 = vmatpush.msra.mxu0 %v1378
    %1390 = vmatpush.msra.mxu0 %v1377
    %1391 = vmatpush.msra.mxu0 %v1376
    %1392 = vmatpush.msra.mxu0 %v1375
    %1393 = vmatpush.msra.mxu0 %v1374
    %1394 = vmatpush.msra.mxu0 %v1373
    %1395 = vmatpush.msra.mxu0 %v1372
    %1396 = vmatpush.msra.mxu0 %v1371
    %1397 = vmatpush.msra.mxu0 %v1370
    %1398 = vmatpush.msra.mxu0 %v1369
    %1399 = vmatpush.msra.mxu0 %v1368
    %1400 = vmatpush.msra.mxu0 %v1367
    %1401 = vmatpush.msra.mxu0 %v1366
    %1402 = vmatpush.msra.mxu0 %v1365
    %1403 = vmatpush.msra.mxu0 %v1364
    %1404 = vmatmul.f32.gmra.mxu0 %v1386
    %v1405 = vpop.f32.mrf.mxu0
    %v1406 = vadd.f32 0.0, %v1405
    %1407 = vdwg.mxu0
    %1408 = vmatpush.msra.mxu0 %v1362
    %1409 = vmatpush.msra.mxu0 %v1361
    %1410 = vmatpush.msra.mxu0 %v1360
    %1411 = vmatpush.msra.mxu0 %v1359
    %1412 = vmatpush.msra.mxu0 %v1358
    %1413 = vmatpush.msra.mxu0 %v1357
    %1414 = vmatpush.msra.mxu0 %v1356
    %1415 = vmatpush.msra.mxu0 %v1355
    %1416 = vmatpush.msra.mxu0 %v1354
    %1417 = vmatpush.msra.mxu0 %v1353
    %1418 = vmatpush.msra.mxu0 %v1352
    %1419 = vmatpush.msra.mxu0 %v1351
    %1420 = vmatpush.msra.mxu0 %v1350
    %1421 = vmatpush.msra.mxu0 %v1349
    %1422 = vmatpush.msra.mxu0 %v1348
    %1423 = vmatpush.msra.mxu0 %v1347
    %1424 = vmatmul.f32.gmra.mxu0 %v1387
    %v1425 = vpop.f32.mrf.mxu0
    %v1426 = vadd.f32 %v1406, %v1425
    %1427 = vdwg.mxu0
    %v1429 = vperm.slane %v1384, 0
    %v1431 = vadd.f32 %v1426, %v1429
    %v1432 = vtanh.pop %v1431
    %1433 = vst [vmem:[#allocation3] sm:$0xff] %v1432
    %v1434 = vld [vmem:[%s1073] sm:$0xff]
    %1435 = vmatpush.msra.mxu0 %v1379
    %1436 = vmatpush.msra.mxu0 %v1378
    %1437 = vmatpush.msra.mxu0 %v1377
    %1438 = vmatpush.msra.mxu0 %v1376
    %1439 = vmatpush.msra.mxu0 %v1375
    %1440 = vmatpush.msra.mxu0 %v1374
    %1441 = vmatpush.msra.mxu0 %v1373
    %1442 = vmatpush.msra.mxu0 %v1372
    %1443 = vmatpush.msra.mxu0 %v1371
    %1444 = vmatpush.msra.mxu0 %v1370
    %1445 = vmatpush.msra.mxu0 %v1369
    %1446 = vmatpush.msra.mxu0 %v1368
    %1447 = vmatpush.msra.mxu0 %v1367
    %1448 = vmatpush.msra.mxu0 %v1366
    %1449 = vmatpush.msra.mxu0 %v1365
    %1450 = vmatpush.msra.mxu0 %v1364
    %1451 = vmatmul.f32.gmra.mxu0 %v1432
    %v1452 = vpop.f32.mrf.mxu0
    %v1453 = vadd.f32 0.0, %v1452
    %1454 = vdwg.mxu0
    %1455 = vmatpush.msra.mxu0 %v1362
    %1456 = vmatpush.msra.mxu0 %v1361
    %1457 = vmatpush.msra.mxu0 %v1360
    %1458 = vmatpush.msra.mxu0 %v1359
    %1459 = vmatpush.msra.mxu0 %v1358
    %1460 = vmatpush.msra.mxu0 %v1357
    %1461 = vmatpush.msra.mxu0 %v1356
    %1462 = vmatpush.msra.mxu0 %v1355
    %1463 = vmatpush.msra.mxu0 %v1354
    %1464 = vmatpush.msra.mxu0 %v1353
    %1465 = vmatpush.msra.mxu0 %v1352
    %1466 = vmatpush.msra.mxu0 %v1351
    %1467 = vmatpush.msra.mxu0 %v1350
    %1468 = vmatpush.msra.mxu0 %v1349
    %1469 = vmatpush.msra.mxu0 %v1348
    %1470 = vmatpush.msra.mxu0 %v1347
    %1471 = vmatmul.f32.gmra.mxu0 %v1434
    %v1472 = vpop.f32.mrf.mxu0
    %v1473 = vadd.f32 %v1453, %v1472
    %1474 = vdwg.mxu0
    %v1475 = vadd.f32 %v1473, %v1429
    %v1476 = vtanh.pop %v1475
    %1477 = vst [vmem:[%s328] sm:$0xff] %v1476
    %v1478 = vld [vmem:[%s1118] sm:$0xff]
    %1479 = vmatpush.msra.mxu0 %v1379
    %1480 = vmatpush.msra.mxu0 %v1378
    %1481 = vmatpush.msra.mxu0 %v1377
    %1482 = vmatpush.msra.mxu0 %v1376
    %1483 = vmatpush.msra.mxu0 %v1375
    %1484 = vmatpush.msra.mxu0 %v1374
    %1485 = vmatpush.msra.mxu0 %v1373
    %1486 = vmatpush.msra.mxu0 %v1372
    %1487 = vmatpush.msra.mxu0 %v1371
    %1488 = vmatpush.msra.mxu0 %v1370
    %1489 = vmatpush.msra.mxu0 %v1369
    %1490 = vmatpush.msra.mxu0 %v1368
    %1491 = vmatpush.msra.mxu0 %v1367
    %1492 = vmatpush.msra.mxu0 %v1366
    %1493 = vmatpush.msra.mxu0 %v1365
    %1494 = vmatpush.msra.mxu0 %v1364
    %1495 = vmatmul.f32.gmra.mxu0 %v1476
    %v1496 = vpop.f32.mrf.mxu0
    %v1497 = vadd.f32 0.0, %v1496
    %1498 = vdwg.mxu0
    %1499 = vmatpush.msra.mxu0 %v1362
    %1500 = vmatpush.msra.mxu0 %v1361
    %1501 = vmatpush.msra.mxu0 %v1360
    %1502 = vmatpush.msra.mxu0 %v1359
    %1503 = vmatpush.msra.mxu0 %v1358
    %1504 = vmatpush.msra.mxu0 %v1357
    %1505 = vmatpush.msra.mxu0 %v1356
    %1506 = vmatpush.msra.mxu0 %v1355
    %1507 = vmatpush.msra.mxu0 %v1354
    %1508 = vmatpush.msra.mxu0 %v1353
    %1509 = vmatpush.msra.mxu0 %v1352
    %1510 = vmatpush.msra.mxu0 %v1351
    %1511 = vmatpush.msra.mxu0 %v1350
    %1512 = vmatpush.msra.mxu0 %v1349
    %1513 = vmatpush.msra.mxu0 %v1348
    %1514 = vmatpush.msra.mxu0 %v1347
    %1515 = vmatmul.f32.gmra.mxu0 %v1478
    %v1516 = vpop.f32.mrf.mxu0
    %v1517 = vadd.f32 %v1497, %v1516
    %1518 = vdwg.mxu0
    %v1519 = vadd.f32 %v1517, %v1429
    %v1520 = vtanh.pop %v1519
    %1521 = vst [vmem:[%s430] sm:$0xff] %v1520
    %v1522 = vld [vmem:[%s1163] sm:$0xff]
    %1523 = vmatpush.msra.mxu0 %v1379
    %1524 = vmatpush.msra.mxu0 %v1378
    %1525 = vmatpush.msra.mxu0 %v1377
    %1526 = vmatpush.msra.mxu0 %v1376
    %1527 = vmatpush.msra.mxu0 %v1375
    %1528 = vmatpush.msra.mxu0 %v1374
    %1529 = vmatpush.msra.mxu0 %v1373
    %1530 = vmatpush.msra.mxu0 %v1372
    %1531 = vmatpush.msra.mxu0 %v1371
    %1532 = vmatpush.msra.mxu0 %v1370
    %1533 = vmatpush.msra.mxu0 %v1369
    %1534 = vmatpush.msra.mxu0 %v1368
    %1535 = vmatpush.msra.mxu0 %v1367
    %1536 = vmatpush.msra.mxu0 %v1366
    %1537 = vmatpush.msra.mxu0 %v1365
    %1538 = vmatpush.msra.mxu0 %v1364
    %1539 = vmatmul.f32.gmra.mxu0 %v1520
    %v1540 = vpop.f32.mrf.mxu0
    %v1541 = vadd.f32 0.0, %v1540
    %1542 = vdwg.mxu0
    %1543 = vmatpush.msra.mxu0 %v1362
    %1544 = vmatpush.msra.mxu0 %v1361
    %1545 = vmatpush.msra.mxu0 %v1360
    %1546 = vmatpush.msra.mxu0 %v1359
    %1547 = vmatpush.msra.mxu0 %v1358
    %1548 = vmatpush.msra.mxu0 %v1357
    %1549 = vmatpush.msra.mxu0 %v1356
    %1550 = vmatpush.msra.mxu0 %v1355
    %1551 = vmatpush.msra.mxu0 %v1354
    %1552 = vmatpush.msra.mxu0 %v1353
    %1553 = vmatpush.msra.mxu0 %v1352
    %1554 = vmatpush.msra.mxu0 %v1351
    %1555 = vmatpush.msra.mxu0 %v1350
    %1556 = vmatpush.msra.mxu0 %v1349
    %1557 = vmatpush.msra.mxu0 %v1348
    %1558 = vmatpush.msra.mxu0 %v1347
    %1559 = vmatmul.f32.gmra.mxu0 %v1522
    %v1560 = vpop.f32.mrf.mxu0
    %v1561 = vadd.f32 %v1541, %v1560
    %1562 = vdwg.mxu0
    %v1563 = vadd.f32 %v1561, %v1429
    %v1564 = vtanh.pop %v1563
    %1565 = vst [vmem:[%s532] sm:$0xff] %v1564
    %v1566 = vld [vmem:[%s1208] sm:$0xff]
    %1567 = vmatpush.msra.mxu0 %v1379
    %1568 = vmatpush.msra.mxu0 %v1378
    %1569 = vmatpush.msra.mxu0 %v1377
    %1570 = vmatpush.msra.mxu0 %v1376
    %1571 = vmatpush.msra.mxu0 %v1375
    %1572 = vmatpush.msra.mxu0 %v1374
    %1573 = vmatpush.msra.mxu0 %v1373
    %1574 = vmatpush.msra.mxu0 %v1372
    %1575 = vmatpush.msra.mxu0 %v1371
    %1576 = vmatpush.msra.mxu0 %v1370
    %1577 = vmatpush.msra.mxu0 %v1369
    %1578 = vmatpush.msra.mxu0 %v1368
    %1579 = vmatpush.msra.mxu0 %v1367
    %1580 = vmatpush.msra.mxu0 %v1366
    %1581 = vmatpush.msra.mxu0 %v1365
    %1582 = vmatpush.msra.mxu0 %v1364
    %1583 = vmatmul.f32.gmra.mxu0 %v1564
    %v1584 = vpop.f32.mrf.mxu0
    %v1585 = vadd.f32 0.0, %v1584
    %1586 = vdwg.mxu0
    %1587 = vmatpush.msra.mxu0 %v1362
    %1588 = vmatpush.msra.mxu0 %v1361
    %1589 = vmatpush.msra.mxu0 %v1360
    %1590 = vmatpush.msra.mxu0 %v1359
    %1591 = vmatpush.msra.mxu0 %v1358
    %1592 = vmatpush.msra.mxu0 %v1357
    %1593 = vmatpush.msra.mxu0 %v1356
    %1594 = vmatpush.msra.mxu0 %v1355
    %1595 = vmatpush.msra.mxu0 %v1354
    %1596 = vmatpush.msra.mxu0 %v1353
    %1597 = vmatpush.msra.mxu0 %v1352
    %1598 = vmatpush.msra.mxu0 %v1351
    %1599 = vmatpush.msra.mxu0 %v1350
    %1600 = vmatpush.msra.mxu0 %v1349
    %1601 = vmatpush.msra.mxu0 %v1348
    %1602 = vmatpush.msra.mxu0 %v1347
    %1603 = vmatmul.f32.gmra.mxu0 %v1566
    %v1604 = vpop.f32.mrf.mxu0
    %v1605 = vadd.f32 %v1585, %v1604
    %1606 = vdwg.mxu0
    %v1607 = vadd.f32 %v1605, %v1429
    %v1608 = vtanh.pop %v1607
    %1609 = vst [vmem:[%s634] sm:$0xff] %v1608
    %v1610 = vld [vmem:[%s1253] sm:$0xff]
    %1611 = vmatpush.msra.mxu0 %v1379
    %1612 = vmatpush.msra.mxu0 %v1378
    %1613 = vmatpush.msra.mxu0 %v1377
    %1614 = vmatpush.msra.mxu0 %v1376
    %1615 = vmatpush.msra.mxu0 %v1375
    %1616 = vmatpush.msra.mxu0 %v1374
    %1617 = vmatpush.msra.mxu0 %v1373
    %1618 = vmatpush.msra.mxu0 %v1372
    %1619 = vmatpush.msra.mxu0 %v1371
    %1620 = vmatpush.msra.mxu0 %v1370
    %1621 = vmatpush.msra.mxu0 %v1369
    %1622 = vmatpush.msra.mxu0 %v1368
    %1623 = vmatpush.msra.mxu0 %v1367
    %1624 = vmatpush.msra.mxu0 %v1366
    %1625 = vmatpush.msra.mxu0 %v1365
    %1626 = vmatpush.msra.mxu0 %v1364
    %1627 = vmatmul.f32.gmra.mxu0 %v1608
    %v1628 = vpop.f32.mrf.mxu0
    %v1629 = vadd.f32 0.0, %v1628
    %1630 = vdwg.mxu0
    %1631 = vmatpush.msra.mxu0 %v1362
    %1632 = vmatpush.msra.mxu0 %v1361
    %1633 = vmatpush.msra.mxu0 %v1360
    %1634 = vmatpush.msra.mxu0 %v1359
    %1635 = vmatpush.msra.mxu0 %v1358
    %1636 = vmatpush.msra.mxu0 %v1357
    %1637 = vmatpush.msra.mxu0 %v1356
    %1638 = vmatpush.msra.mxu0 %v1355
    %1639 = vmatpush.msra.mxu0 %v1354
    %1640 = vmatpush.msra.mxu0 %v1353
    %1641 = vmatpush.msra.mxu0 %v1352
    %1642 = vmatpush.msra.mxu0 %v1351
    %1643 = vmatpush.msra.mxu0 %v1350
    %1644 = vmatpush.msra.mxu0 %v1349
    %1645 = vmatpush.msra.mxu0 %v1348
    %1646 = vmatpush.msra.mxu0 %v1347
    %1647 = vmatmul.f32.gmra.mxu0 %v1610
    %v1648 = vpop.f32.mrf.mxu0
    %v1649 = vadd.f32 %v1629, %v1648
    %1650 = vdwg.mxu0
    %v1651 = vadd.f32 %v1649, %v1429
    %v1652 = vtanh.pop %v1651
    %1653 = vst [vmem:[%s736] sm:$0xff] %v1652
    %v1654 = vld [vmem:[%s1298] sm:$0xff]
    %1655 = vmatpush.msra.mxu0 %v1379
    %1656 = vmatpush.msra.mxu0 %v1378
    %1657 = vmatpush.msra.mxu0 %v1377
    %1658 = vmatpush.msra.mxu0 %v1376
    %1659 = vmatpush.msra.mxu0 %v1375
    %1660 = vmatpush.msra.mxu0 %v1374
    %1661 = vmatpush.msra.mxu0 %v1373
    %1662 = vmatpush.msra.mxu0 %v1372
    %1663 = vmatpush.msra.mxu0 %v1371
    %1664 = vmatpush.msra.mxu0 %v1370
    %1665 = vmatpush.msra.mxu0 %v1369
    %1666 = vmatpush.msra.mxu0 %v1368
    %1667 = vmatpush.msra.mxu0 %v1367
    %1668 = vmatpush.msra.mxu0 %v1366
    %1669 = vmatpush.msra.mxu0 %v1365
    %1670 = vmatpush.msra.mxu0 %v1364
    %1671 = vmatmul.f32.gmra.mxu0 %v1652
    %v1672 = vpop.f32.mrf.mxu0
    %v1673 = vadd.f32 0.0, %v1672
    %1674 = vdwg.mxu0
    %1675 = vmatpush.msra.mxu0 %v1362
    %1676 = vmatpush.msra.mxu0 %v1361
    %1677 = vmatpush.msra.mxu0 %v1360
    %1678 = vmatpush.msra.mxu0 %v1359
    %1679 = vmatpush.msra.mxu0 %v1358
    %1680 = vmatpush.msra.mxu0 %v1357
    %1681 = vmatpush.msra.mxu0 %v1356
    %1682 = vmatpush.msra.mxu0 %v1355
    %1683 = vmatpush.msra.mxu0 %v1354
    %1684 = vmatpush.msra.mxu0 %v1353
    %1685 = vmatpush.msra.mxu0 %v1352
    %1686 = vmatpush.msra.mxu0 %v1351
    %1687 = vmatpush.msra.mxu0 %v1350
    %1688 = vmatpush.msra.mxu0 %v1349
    %1689 = vmatpush.msra.mxu0 %v1348
    %1690 = vmatpush.msra.mxu0 %v1347
    %1691 = vmatmul.f32.gmra.mxu0 %v1654
    %v1692 = vpop.f32.mrf.mxu0
    %v1693 = vadd.f32 %v1673, %v1692
    %1694 = vdwg.mxu0
    %v1695 = vadd.f32 %v1693, %v1429
    %v1696 = vtanh.pop %v1695
    %1697 = vst [vmem:[%s838] sm:$0xff] %v1696
    %v1698 = vld [vmem:[%s1343] sm:$0xff]
    %1699 = vmatpush.msra.mxu0 %v1379
    %1700 = vmatpush.msra.mxu0 %v1378
    %1701 = vmatpush.msra.mxu0 %v1377
    %1702 = vmatpush.msra.mxu0 %v1376
    %1703 = vmatpush.msra.mxu0 %v1375
    %1704 = vmatpush.msra.mxu0 %v1374
    %1705 = vmatpush.msra.mxu0 %v1373
    %1706 = vmatpush.msra.mxu0 %v1372
    %1707 = vmatpush.msra.mxu0 %v1371
    %1708 = vmatpush.msra.mxu0 %v1370
    %1709 = vmatpush.msra.mxu0 %v1369
    %1710 = vmatpush.msra.mxu0 %v1368
    %1711 = vmatpush.msra.mxu0 %v1367
    %1712 = vmatpush.msra.mxu0 %v1366
    %1713 = vmatpush.msra.mxu0 %v1365
    %1714 = vmatpush.msra.mxu0 %v1364
    %1715 = vmatmul.f32.gmra.mxu0 %v1696
    %v1716 = vpop.f32.mrf.mxu0
    %v1717 = vadd.f32 0.0, %v1716
    %1718 = vdwg.mxu0
    %1719 = vmatpush.msra.mxu0 %v1362
    %1720 = vmatpush.msra.mxu0 %v1361
    %1721 = vmatpush.msra.mxu0 %v1360
    %1722 = vmatpush.msra.mxu0 %v1359
    %1723 = vmatpush.msra.mxu0 %v1358
    %1724 = vmatpush.msra.mxu0 %v1357
    %1725 = vmatpush.msra.mxu0 %v1356
    %1726 = vmatpush.msra.mxu0 %v1355
    %1727 = vmatpush.msra.mxu0 %v1354
    %1728 = vmatpush.msra.mxu0 %v1353
    %1729 = vmatpush.msra.mxu0 %v1352
    %1730 = vmatpush.msra.mxu0 %v1351
    %1731 = vmatpush.msra.mxu0 %v1350
    %1732 = vmatpush.msra.mxu0 %v1349
    %1733 = vmatpush.msra.mxu0 %v1348
    %1734 = vmatpush.msra.mxu0 %v1347
    %1735 = vmatmul.f32.gmra.mxu0 %v1698
    %v1736 = vpop.f32.mrf.mxu0
    %v1737 = vadd.f32 %v1717, %v1736
    %1738 = vdwg.mxu0
    %v1739 = vadd.f32 %v1737, %v1429
    %v1740 = vtanh.pop %v1739
    %1741 = vst [vmem:[%s940] sm:$0xff] %v1740
    %1742 = vst [vmem:[%s1385] sm:$0xff] %v1740
    %v1743 = vld [vmem:[#allocation3] sm:$0xff]
    %v1744 = vld [vmem:[#allocation3 + $0x8] sm:$0xff]
    %v1745 = vld [vmem:[#allocation3 + $0x10] sm:$0xff]
    %v1746 = vld [vmem:[#allocation3 + $0x18] sm:$0xff]
    %v1747 = vld [vmem:[#allocation3 + $0x20] sm:$0xff]
    %v1748 = vld [vmem:[#allocation3 + $0x28] sm:$0xff]
    %v1749 = vld [vmem:[#allocation3 + $0x30] sm:$0xff]
    %v1750 = vld [vmem:[#allocation3 + $0x38] sm:$0xff]
    %v1751 = vld [vmem:[%s7] sm:$0xff]
    %v1752 = vld [vmem:[%s7 + $0x8] sm:$0xff]
    %v1753 = vld [vmem:[%s7 + $0x10] sm:$0xff]
    %v1754 = vld [vmem:[%s7 + $0x18] sm:$0xff]
    %v1755 = vld [vmem:[%s7 + $0x20] sm:$0xff]
    %v1756 = vld [vmem:[%s7 + $0x28] sm:$0xff]
    %v1757 = vld [vmem:[%s7 + $0x30] sm:$0xff]
    %v1758 = vld [vmem:[%s7 + $0x38] sm:$0xff]
    %v1759 = vld [vmem:[%s7 + $0x40] sm:$0xff]
    %v1760 = vld [vmem:[%s7 + $0x48] sm:$0xff]
    %v1761 = vld [vmem:[%s7 + $0x50] sm:$0xff]
    %v1762 = vld [vmem:[%s7 + $0x58] sm:$0xff]
    %v1763 = vld [vmem:[%s7 + $0x60] sm:$0xff]
    %v1764 = vld [vmem:[%s7 + $0x68] sm:$0xff]
    %v1765 = vld [vmem:[%s7 + $0x70] sm:$0xff]
    %v1766 = vld [vmem:[%s7 + $0x78] sm:$0xff]
    %v1767 = vld [vmem:[%s8] sm:$0x1]
    %v1769 = vperm.slane %v1767, 0
    %1771 = vmatpush.msra.mxu0 %v1766
    %1772 = vmatpush.msra.mxu0 %v1765
    %1773 = vmatpush.msra.mxu0 %v1764
    %1774 = vmatpush.msra.mxu0 %v1763
    %1775 = vmatpush.msra.mxu0 %v1762
    %1776 = vmatpush.msra.mxu0 %v1761
    %1777 = vmatpush.msra.mxu0 %v1760
    %1778 = vmatpush.msra.mxu0 %v1759
    %1779 = vmatpush.msra.mxu0 %v1758
    %1780 = vmatpush.msra.mxu0 %v1757
    %1781 = vmatpush.msra.mxu0 %v1756
    %1782 = vmatpush.msra.mxu0 %v1755
    %1783 = vmatpush.msra.mxu0 %v1754
    %1784 = vmatpush.msra.mxu0 %v1753
    %1785 = vmatpush.msra.mxu0 %v1752
    %1786 = vmatpush.msra.mxu0 %v1751
    %1787 = vmatmul.f32.gmra.mxu0 %v1743
    %v1788 = vpop.f32.mrf.mxu0
    %v1789 = vadd.f32 %v1769, %v1788
    %1790 = vmatmul.f32.gmra.mxu0 %v1744
    %v1791 = vpop.f32.mrf.mxu0
    %v1792 = vadd.f32 %v1769, %v1791
    %1793 = vmatmul.f32.gmra.mxu0 %v1745
    %v1794 = vpop.f32.mrf.mxu0
    %v1795 = vadd.f32 %v1769, %v1794
    %1796 = vmatmul.f32.gmra.mxu0 %v1746
    %v1797 = vpop.f32.mrf.mxu0
    %v1798 = vadd.f32 %v1769, %v1797
    %1799 = vmatmul.f32.gmra.mxu0 %v1747
    %v1800 = vpop.f32.mrf.mxu0
    %v1801 = vadd.f32 %v1769, %v1800
    %1802 = vmatmul.f32.gmra.mxu0 %v1748
    %v1803 = vpop.f32.mrf.mxu0
    %v1804 = vadd.f32 %v1769, %v1803
    %1805 = vmatmul.f32.gmra.mxu0 %v1749
    %v1806 = vpop.f32.mrf.mxu0
    %v1807 = vadd.f32 %v1769, %v1806
    %1808 = vmatmul.f32.gmra.mxu0 %v1750
    %v1809 = vpop.f32.mrf.mxu0
    %v1810 = vadd.f32 %v1769, %v1809
    %1811 = vdwg.mxu0
    %1812 = vst [vmem:[%s9] sm:$0xff] %v1789
    %1813 = vst [vmem:[%s9 + $0x8] sm:$0xff] %v1792
    %1814 = vst [vmem:[%s9 + $0x10] sm:$0xff] %v1795
    %1815 = vst [vmem:[%s9 + $0x18] sm:$0xff] %v1798
    %1816 = vst [vmem:[%s9 + $0x20] sm:$0xff] %v1801
    %1817 = vst [vmem:[%s9 + $0x28] sm:$0xff] %v1804
    %1818 = vst [vmem:[%s9 + $0x30] sm:$0xff] %v1807
    %1819 = vst [vmem:[%s9 + $0x38] sm:$0xff] %v1810
    %v1820 = vld [vmem:[#allocation2] sm:$0xff]
    %v1821 = vld [vmem:[#allocation2 + $0x8] sm:$0xff]
    %v1822 = vld [vmem:[#allocation2 + $0x10] sm:$0xff]
    %1823 = vst [vmem:[%s10] sm:$0xff] %v1820
    %1824 = vst [vmem:[%s10 + $0x8] sm:$0xff] %v1821
    %1825 = vst [vmem:[%s10 + $0x10] sm:$0xff] %v1822
    // Predicated region
    $region46: #{char_rnn_forward.1} parent=1 // pred_check
      _
    $region47: #{char_rnn_forward.1} parent=1 // pred_check_branch
      %1827 = sbr.rel (0) target = $region49
    $region48: #{char_rnn_forward.1} parent=1 // pred_region
      _
    $region49: #{char_rnn_forward.1} parent=1 // pred_fallthru
      _
    // Predicated region
    $region50: #{char_rnn_forward.1} parent=1 // pred_check
      _
    $region51: #{char_rnn_forward.1} parent=1 // pred_check_branch
      %1829 = sbr.rel (0) target = $region53
    $region52: #{char_rnn_forward.1} parent=1 // pred_region
      _
    $region53: #{char_rnn_forward.1} parent=1 // pred_fallthru
      _
    // Predicated region
    $region54: #{char_rnn_forward.1} parent=1 // pred_check
      _
    $region55: #{char_rnn_forward.1} parent=1 // pred_check_branch
      %1831 = sbr.rel (0) target = $region57
    $region56: #{char_rnn_forward.1} parent=1 // pred_region
      _
    $region57: #{char_rnn_forward.1} parent=1 // pred_fallthru
      _
    // Predicated region
    $region58: #{char_rnn_forward.1} parent=1 // pred_check
      _
    $region59: #{char_rnn_forward.1} parent=1 // pred_check_branch
      %1833 = sbr.rel (0) target = $region61
    $region60: #{char_rnn_forward.1} parent=1 // pred_region
      _
    $region61: #{char_rnn_forward.1} parent=1 // pred_fallthru
      _
    %1834 = vsyncpa [#allocation6], 1

</llo_original>
